<compile_context>
chip_gen: v7x
topology: tpu7x:2x2x1
jax: 0.10.0
libtpu: 0.0.40
codegen_flags: <defaults>
</compile_context>

<pallas_src>
import functools

import jax
import jax.numpy as jnp
from jax.experimental import pallas as pl
from jax.experimental.pallas import tpu as pltpu

EPS = 1e-20

# Model hyperparameters (args.latent_dim / args.categorical_dim of the PyTorch script).
LATENT_DIM = 8
CATEGORICAL_DIM = 4
NUM_CLASSES = LATENT_DIM * CATEGORICAL_DIM  # 32

_ENC_DEC_DIMS = [(784, 512), (512, 256), (256, NUM_CLASSES),
                 (NUM_CLASSES, 256), (256, 512), (512, 784)]
_TILE_GRAN = 16  # bf16 sublane packing granularity on the batch (row) axis


def _round_up(x, m):
    return ((x + m - 1) // m) * m


def _pick_max_tile_b():
    """Generation-aware batch-tile cap: 2048 on 128 MiB-VMEM parts (v5e/v6e),
    1024 on 64 MiB parts (v7x). Conservative fallback is 1024."""
    try:
        info = pltpu.get_tpu_info()
        vmem = getattr(info, "vmem_capacity_bytes", None)
    except Exception:
        vmem = None
    if vmem is None:
        return 1024
    return 2048 if vmem >= 96 * 1024 * 1024 else 1024


MAX_TILE_B = _pick_max_tile_b()


def _vmem_limit_bytes(tile_b, recon_el_bytes):
    weights = 2 * 2 * sum(fi * fo for fi, fo in _ENC_DEC_DIMS)            # bf16, double-buffered
    io = tile_b * 2 * (784 * 2 + NUM_CLASSES * 4                          # x (bf16) + u tiles
                       + 784 * recon_el_bytes + NUM_CLASSES * 4)          # recon + probs tiles
    scratch = tile_b * 12 * 1024                                          # f32 h1..h5/q/y/z live values
    cap = 100 * 1024 * 1024 if MAX_TILE_B >= 2048 else 52 * 1024 * 1024   # leave headroom on v7x
    return min(cap, weights + io + scratch + 16 * 1024 * 1024)


# ---------------------------------------------------------------------------
# Lane-dense grouped reductions via constant 0/1 selector matmuls (groups are
# CATEGORICAL_DIM contiguous features along the lane axis). The selector
# matrices are precomputed on the host and passed in as a VMEM-resident input.
# ---------------------------------------------------------------------------

def _selector_stack():
    """(1 + g, 32, 32) bf16: [group-sum broadcast, extract-k for k = 0..g-1]."""
    n, g = NUM_CLASSES, CATEGORICAL_DIM
    j = jnp.arange(n)[:, None]   # source feature index
    i = jnp.arange(n)[None, :]   # destination feature index
    gsum = (j // g) == (i // g)                                 # group-sum broadcast
    sels = [j == ((i // g) * g + k) for k in range(g)]          # k-th element of i's group
    return jnp.stack([gsum] + sels, axis=0).astype(jnp.bfloat16)


def _extract(x_bf16, sel_bf16):
    # Each selector column has exactly one 1 -> exact copy of the bf16 operand values.
    return jnp.dot(x_bf16, sel_bf16, preferred_element_type=jnp.float32)


def _group_max(x_bf16, sels):
    m = _extract(x_bf16, sels[0])
    for s in sels[1:]:
        m = jnp.maximum(m, _extract(x_bf16, s))
    return m


def _group_min(x_bf16, sels):
    m = _extract(x_bf16, sels[0])
    for s in sels[1:]:
        m = jnp.minimum(m, _extract(x_bf16, s))
    return m


# ---------------------------------------------------------------------------
# Fused kernel: encoder -> softmax -> gumbel-softmax (+ optional hard) -> decoder
# ---------------------------------------------------------------------------

def _fused_vae_gumbel_kernel(temp_ref, x_ref, u_ref, sel_ref,
                             w1_ref, b1_ref, w2_ref, b2_ref, w3_ref, b3_ref,
                             w4_ref, b4_ref, w5_ref, b5_ref, w6_ref, b6_ref,
                             recon_ref, probs_ref, *, hard):
    f32 = jnp.float32
    bf16 = jnp.bfloat16

    # ---- encoder: relu(fc1) -> relu(fc2) -> relu(fc3); bf16 MXU inputs, f32 accumulation
    x = x_ref[...]                                                      # already bf16
    h1 = jnp.maximum(jnp.dot(x, w1_ref[...], preferred_element_type=f32) + b1_ref[...], 0.0)
    h2 = jnp.maximum(jnp.dot(h1.astype(bf16), w2_ref[...], preferred_element_type=f32)
                     + b2_ref[...], 0.0)
    q = jnp.maximum(jnp.dot(h2.astype(bf16), w3_ref[...], preferred_element_type=f32)
                    + b3_ref[...], 0.0)                                 # (tile_b, 32), lane-dense f32

    gsum = sel_ref[0]                                                   # (32, 32) bf16
    sels = [sel_ref[1 + k] for k in range(CATEGORICAL_DIM)]

    # ---- probabilities = softmax(q) within each group of CATEGORICAL_DIM features
    q_max = _group_max(q.astype(bf16), sels)
    q_exp = jnp.exp(q - q_max)
    denom = jnp.dot(q_exp.astype(bf16), gsum, preferred_element_type=f32)
    probs = q_exp * pl.reciprocal(denom, approx=True)
    probs_ref[...] = probs

    # ---- gumbel-softmax sample; matches reference: logits = log(probs + EPS)
    logits = jnp.log(probs + EPS)
    gumbel = -jnp.log(-jnp.log(u_ref[...] + EPS) + EPS)
    inv_temp = 1.0 / temp_ref[0]
    y = (logits + gumbel) * inv_temp
    y_bf = y.astype(bf16)
    y_max = _group_max(y_bf, sels)

    if hard:
        # Straight-through forward value: per-group one-hot argmax of y (== argmax of the
        # soft sample, softmax is monotone). Compare against the bf16 rounding of y so the
        # extracted group max matches at least one element exactly (first index on ties).
        # TODO(synk): straight-through backward estimator is not implemented (forward only).
        lane = jax.lax.broadcasted_iota(jnp.int32, y.shape, 1).astype(f32)
        cand = jnp.where(y_bf.astype(f32) >= y_max, lane, 1e9)
        first = _group_min(cand.astype(bf16), sels)
        z = jnp.where(lane == first, 1.0, 0.0)
    else:
        y_exp = jnp.exp(y - y_max)
        z = y_exp * pl.reciprocal(
            jnp.dot(y_exp.astype(bf16), gsum, preferred_element_type=f32), approx=True)

    # ---- decoder: relu(fc4) -> relu(fc5) -> fc6 (no activation)
    h4 = jnp.maximum(jnp.dot(z.astype(bf16), w4_ref[...], preferred_element_type=f32)
                     + b4_ref[...], 0.0)
    h5 = jnp.maximum(jnp.dot(h4.astype(bf16), w5_ref[...], preferred_element_type=f32)
                     + b5_ref[...], 0.0)
    recon = jnp.dot(h5.astype(bf16), w6_ref[...], preferred_element_type=f32) + b6_ref[...]
    recon_ref[...] = recon.astype(recon_ref.dtype)


# ---------------------------------------------------------------------------
# Wrapper
# ---------------------------------------------------------------------------

@functools.partial(jax.jit, static_argnames=("hard", "recon_dtype"))
def vae_gumbel_forward(params, x, u, temp, hard=False, recon_dtype=jnp.float32):
    """Forward pass equivalent to VAE_gumbel.forward with args.argmax_solver == 'gumbel'.

    x:    (B, 1, 28, 28) float32 (NCHW, like the PyTorch MNIST input)
    u:    (B, latent_dim, categorical_dim) uniform[0,1) noise (replaces torch.rand)
    temp: scalar temperature
    Returns (reconstruction (B, 784), probabilities (B, latent_dim*categorical_dim)).
    """
    B = x.shape[0]
    # bf16 input halves the dominant HBM read; the MXU consumes bf16 anyway.
    x_flat = x.reshape(B, 784).astype(jnp.bfloat16)
    u_flat = u.reshape(B, NUM_CLASSES).astype(jnp.float32)
    temp_arr = jnp.full((1,), temp, dtype=jnp.float32)
    sel_stack = _selector_stack()

    ws = [params[f"w{i}"].astype(jnp.bfloat16) for i in range(1, 7)]
    bs = [params[f"b{i}"].astype(jnp.float32) for i in range(1, 7)]

    # Batch tiling: no host-side padding (Pallas masks the partial last block, rows are
    # independent); guarantee >= 2 grid steps for mid-sized batches so v7x megacore splits.
    if B > MAX_TILE_B:
        tile_b = MAX_TILE_B
    elif B > 2 * _TILE_GRAN:
        tile_b = min(MAX_TILE_B, _round_up(pl.cdiv(B, 2), _TILE_GRAN))
    else:
        tile_b = _round_up(B, _TILE_GRAN)
    grid = (pl.cdiv(B, tile_b),)

    def row_spec(feat):
        return pl.BlockSpec((tile_b, feat), lambda i: (i, 0))

    def resident_spec(shape):
        zeros = (0,) * len(shape)
        return pl.BlockSpec(shape, lambda i, _z=zeros: _z)   # VMEM-resident across grid steps

    in_specs = [
        pl.BlockSpec((1,), lambda i: (0,), memory_space=pltpu.MemorySpace.SMEM),  # temp
        row_spec(784),           # x tile (bf16)
        row_spec(NUM_CLASSES),   # u tile (f32)
        resident_spec(sel_stack.shape),
    ]
    wb_inputs = []
    for w, b in zip(ws, bs):
        in_specs.append(resident_spec(w.shape))
        in_specs.append(resident_spec(b.shape))
        wb_inputs.extend([w, b])

    # TODO(synk): probs is a 32-lane output (masked-store path); it is only ~4% of output
    # bytes, so it is left as-is unless a bundle dump shows store-slot pressure.
    out_specs = (row_spec(784), row_spec(NUM_CLASSES))
    out_shape = (jax.ShapeDtypeStruct((B, 784), recon_dtype),
                 jax.ShapeDtypeStruct((B, NUM_CLASSES), jnp.float32))

    recon_el_bytes = jnp.dtype(recon_dtype).itemsize
    matmul_flops = 2 * B * sum(fi * fo for fi, fo in _ENC_DEC_DIMS)
    weight_bytes = sum(int(w.size) * 2 for w in ws) + sum(int(b.size) * 4 for b in bs)
    io_bytes = B * (784 * 2 + NUM_CLASSES * 4 + 784 * recon_el_bytes + NUM_CLASSES * 4)
    cost = pl.CostEstimate(flops=matmul_flops,
                           transcendentals=B * NUM_CLASSES * 7,
                           bytes_accessed=weight_bytes + io_bytes)

    recon, probs = pl.pallas_call(
        functools.partial(_fused_vae_gumbel_kernel, hard=hard),
        grid=grid,
        in_specs=in_specs,
        out_specs=out_specs,
        out_shape=out_shape,
        compiler_params=pltpu.CompilerParams(
            dimension_semantics=("parallel",),                 # megacore sharding on v7x
            vmem_limit_bytes=_vmem_limit_bytes(tile_b, recon_el_bytes)),
        cost_estimate=cost,
    )(temp_arr, x_flat, u_flat, sel_stack, *wb_inputs)

    return recon, probs


# ---------------------------------------------------------------------------
# Deterministic parameter initialization (shapes from VAE_gumbel.__init__)
# ---------------------------------------------------------------------------

def init_params(key):
    params = {}
    keys = jax.random.split(key, len(_ENC_DEC_DIMS))
    for n, (k, (fin, fout)) in enumerate(zip(keys, _ENC_DEC_DIMS), start=1):
        kw, kb = jax.random.split(k)
        bound = float(fin) ** -0.5
        # weights stored (in, out) in bf16 for the MXU; biases stay f32.
        params[f"w{n}"] = jax.random.uniform(
            kw, (fin, fout), jnp.float32, -bound, bound).astype(jnp.bfloat16)
        params[f"b{n}"] = jax.random.uniform(kb, (1, fout), jnp.float32, -bound, bound)
    return params


if __name__ == "__main__":
    key = jax.random.PRNGKey(0)
    k_params, k_x, k_u = jax.random.split(key, 3)

    params = init_params(k_params)

    B = 2
    x = jax.random.uniform(k_x, (B, 1, 28, 28), jnp.float32)        # MNIST-like NCHW
    u = jax.random.uniform(k_u, (B, LATENT_DIM, CATEGORICAL_DIM), jnp.float32)
    temp = 1.0

    recon, probabilities = vae_gumbel_forward(params, x, u, temp, hard=False)
    recon_hard, _ = vae_gumbel_forward(params, x, u, temp, hard=True)
    jax.block_until_ready((recon, probabilities, recon_hard))

    assert recon.shape == (B, 784)
    assert recon_hard.shape == (B, 784)
    assert probabilities.shape == (B, NUM_CLASSES)
    assert bool(jnp.all(jnp.isfinite(recon))) and bool(jnp.all(jnp.isfinite(recon_hard)))
    group_sums = probabilities.reshape(B, LATENT_DIM, CATEGORICAL_DIM).sum(-1)
    assert bool(jnp.all(jnp.abs(group_sums - 1.0) < 5e-2))
    print("KERNEL_OK")
</pallas_src>

<mosaic_0001>
module attributes {stable_mosaic.version = 11 : i64} {
  func.func @_fused_vae_gumbel_kernel(%arg0: i32, %arg1: memref<1xf32, #tpu.memory_space<smem>>, %arg2: memref<16x784xbf16, #tpu.memory_space<vmem>>, %arg3: memref<16x32xf32, #tpu.memory_space<vmem>>, %arg4: memref<5x32x32xbf16, #tpu.memory_space<vmem>>, %arg5: memref<784x512xbf16, #tpu.memory_space<vmem>>, %arg6: memref<1x512xf32, #tpu.memory_space<vmem>>, %arg7: memref<512x256xbf16, #tpu.memory_space<vmem>>, %arg8: memref<1x256xf32, #tpu.memory_space<vmem>>, %arg9: memref<256x32xbf16, #tpu.memory_space<vmem>>, %arg10: memref<1x32xf32, #tpu.memory_space<vmem>>, %arg11: memref<32x256xbf16, #tpu.memory_space<vmem>>, %arg12: memref<1x256xf32, #tpu.memory_space<vmem>>, %arg13: memref<256x512xbf16, #tpu.memory_space<vmem>>, %arg14: memref<1x512xf32, #tpu.memory_space<vmem>>, %arg15: memref<512x784xbf16, #tpu.memory_space<vmem>>, %arg16: memref<1x784xf32, #tpu.memory_space<vmem>>, %arg17: memref<16x784xf32, #tpu.memory_space<vmem>>, %arg18: memref<16x32xf32, #tpu.memory_space<vmem>>) attributes {dimension_semantics = [#tpu.dimension_semantics<parallel>], iteration_bounds = array<i64: 1>, scalar_prefetch = 0 : i64, scratch_operands = 0 : i64, tpu.core_type = #tpu.core_type<tc>, window_params = [{transform_indices = @transform_0, window_bounds = array<i64: 1>}, {transform_indices = @transform_1, window_bounds = array<i64: 16, 784>}, {transform_indices = @transform_2, window_bounds = array<i64: 16, 32>}, {pipeline_mode = #tpu.pipeline_mode<synchronous>, transform_indices = @transform_3, window_bounds = array<i64: 5, 32, 32>}, {pipeline_mode = #tpu.pipeline_mode<synchronous>, transform_indices = @transform_4, window_bounds = array<i64: 784, 512>}, {pipeline_mode = #tpu.pipeline_mode<synchronous>, transform_indices = @transform_5, window_bounds = array<i64: 1, 512>}, {pipeline_mode = #tpu.pipeline_mode<synchronous>, transform_indices = @transform_6, window_bounds = array<i64: 512, 256>}, {pipeline_mode = #tpu.pipeline_mode<synchronous>, transform_indices = @transform_7, window_bounds = array<i64: 1, 256>}, {pipeline_mode = #tpu.pipeline_mode<synchronous>, transform_indices = @transform_8, window_bounds = array<i64: 256, 32>}, {pipeline_mode = #tpu.pipeline_mode<synchronous>, transform_indices = @transform_9, window_bounds = array<i64: 1, 32>}, {pipeline_mode = #tpu.pipeline_mode<synchronous>, transform_indices = @transform_10, window_bounds = array<i64: 32, 256>}, {pipeline_mode = #tpu.pipeline_mode<synchronous>, transform_indices = @transform_11, window_bounds = array<i64: 1, 256>}, {pipeline_mode = #tpu.pipeline_mode<synchronous>, transform_indices = @transform_12, window_bounds = array<i64: 256, 512>}, {pipeline_mode = #tpu.pipeline_mode<synchronous>, transform_indices = @transform_13, window_bounds = array<i64: 1, 512>}, {pipeline_mode = #tpu.pipeline_mode<synchronous>, transform_indices = @transform_14, window_bounds = array<i64: 512, 784>}, {pipeline_mode = #tpu.pipeline_mode<synchronous>, transform_indices = @transform_15, window_bounds = array<i64: 1, 784>}, {transform_indices = @transform_16, window_bounds = array<i64: 16, 784>}, {transform_indices = @transform_17, window_bounds = array<i64: 16, 32>}]} {
    %c0 = arith.constant 0 : index
    %c0_0 = arith.constant 0 : index
    %0 = vector.load %arg2[%c0, %c0_0] : memref<16x784xbf16, #tpu.memory_space<vmem>>, vector<16x784xbf16>
    %c0_1 = arith.constant 0 : index
    %c0_2 = arith.constant 0 : index
    %1 = vector.load %arg5[%c0_1, %c0_2] : memref<784x512xbf16, #tpu.memory_space<vmem>>, vector<784x512xbf16>
    %cst = arith.constant dense<0.000000e+00> : vector<16x512xf32>
    %2 = tpu.matmul %0, %1, %cst {dimension_numbers = #tpu.dot_dimension_numbers<[1], [0], [0], [1], [0, 0, 1, 1], [], []>} : vector<16x784xbf16>, vector<784x512xbf16>, vector<16x512xf32> -> vector<16x512xf32>
    %c0_3 = arith.constant 0 : index
    %c0_4 = arith.constant 0 : index
    %3 = vector.load %arg6[%c0_3, %c0_4] : memref<1x512xf32, #tpu.memory_space<vmem>>, vector<1x512xf32>
    %4 = vector.broadcast %3 : vector<1x512xf32> to vector<16x512xf32>
    %5 = arith.addf %2, %4 : vector<16x512xf32>
    %cst_5 = arith.constant 0.000000e+00 : f32
    %6 = vector.broadcast %cst_5 : f32 to vector<16x512xf32>
    %7 = arith.maximumf %5, %6 : vector<16x512xf32>
    %8 = arith.truncf %7 : vector<16x512xf32> to vector<16x512xbf16>
    %c0_6 = arith.constant 0 : index
    %c0_7 = arith.constant 0 : index
    %9 = vector.load %arg7[%c0_6, %c0_7] : memref<512x256xbf16, #tpu.memory_space<vmem>>, vector<512x256xbf16>
    %cst_8 = arith.constant dense<0.000000e+00> : vector<16x256xf32>
    %10 = tpu.matmul %8, %9, %cst_8 {dimension_numbers = #tpu.dot_dimension_numbers<[1], [0], [0], [1], [0, 0, 1, 1], [], []>} : vector<16x512xbf16>, vector<512x256xbf16>, vector<16x256xf32> -> vector<16x256xf32>
    %c0_9 = arith.constant 0 : index
    %c0_10 = arith.constant 0 : index
    %11 = vector.load %arg8[%c0_9, %c0_10] : memref<1x256xf32, #tpu.memory_space<vmem>>, vector<1x256xf32>
    %12 = vector.broadcast %11 : vector<1x256xf32> to vector<16x256xf32>
    %13 = arith.addf %10, %12 : vector<16x256xf32>
    %cst_11 = arith.constant 0.000000e+00 : f32
    %14 = vector.broadcast %cst_11 : f32 to vector<16x256xf32>
    %15 = arith.maximumf %13, %14 : vector<16x256xf32>
    %16 = arith.truncf %15 : vector<16x256xf32> to vector<16x256xbf16>
    %c0_12 = arith.constant 0 : index
    %c0_13 = arith.constant 0 : index
    %17 = vector.load %arg9[%c0_12, %c0_13] : memref<256x32xbf16, #tpu.memory_space<vmem>>, vector<256x32xbf16>
    %cst_14 = arith.constant dense<0.000000e+00> : vector<16x32xf32>
    %18 = tpu.matmul %16, %17, %cst_14 {dimension_numbers = #tpu.dot_dimension_numbers<[1], [0], [0], [1], [0, 0, 1, 1], [], []>} : vector<16x256xbf16>, vector<256x32xbf16>, vector<16x32xf32> -> vector<16x32xf32>
    %c0_15 = arith.constant 0 : index
    %c0_16 = arith.constant 0 : index
    %19 = vector.load %arg10[%c0_15, %c0_16] : memref<1x32xf32, #tpu.memory_space<vmem>>, vector<1x32xf32>
    %20 = vector.broadcast %19 : vector<1x32xf32> to vector<16x32xf32>
    %21 = arith.addf %18, %20 : vector<16x32xf32>
    %cst_17 = arith.constant 0.000000e+00 : f32
    %22 = vector.broadcast %cst_17 : f32 to vector<16x32xf32>
    %23 = arith.maximumf %21, %22 : vector<16x32xf32>
    %c0_18 = arith.constant 0 : index
    %c0_19 = arith.constant 0 : index
    %c0_20 = arith.constant 0 : index
    %24 = vector.load %arg4[%c0_18, %c0_19, %c0_20] : memref<5x32x32xbf16, #tpu.memory_space<vmem>>, vector<1x32x32xbf16>
    %25 = vector.shape_cast %24 : vector<1x32x32xbf16> to vector<32x32xbf16>
    %c1 = arith.constant 1 : index
    %c0_21 = arith.constant 0 : index
    %c0_22 = arith.constant 0 : index
    %26 = vector.load %arg4[%c1, %c0_21, %c0_22] : memref<5x32x32xbf16, #tpu.memory_space<vmem>>, vector<1x32x32xbf16>
    %27 = vector.shape_cast %26 : vector<1x32x32xbf16> to vector<32x32xbf16>
    %c2 = arith.constant 2 : index
    %c0_23 = arith.constant 0 : index
    %c0_24 = arith.constant 0 : index
    %28 = vector.load %arg4[%c2, %c0_23, %c0_24] : memref<5x32x32xbf16, #tpu.memory_space<vmem>>, vector<1x32x32xbf16>
    %29 = vector.shape_cast %28 : vector<1x32x32xbf16> to vector<32x32xbf16>
    %c3 = arith.constant 3 : index
    %c0_25 = arith.constant 0 : index
    %c0_26 = arith.constant 0 : index
    %30 = vector.load %arg4[%c3, %c0_25, %c0_26] : memref<5x32x32xbf16, #tpu.memory_space<vmem>>, vector<1x32x32xbf16>
    %31 = vector.shape_cast %30 : vector<1x32x32xbf16> to vector<32x32xbf16>
    %c4 = arith.constant 4 : index
    %c0_27 = arith.constant 0 : index
    %c0_28 = arith.constant 0 : index
    %32 = vector.load %arg4[%c4, %c0_27, %c0_28] : memref<5x32x32xbf16, #tpu.memory_space<vmem>>, vector<1x32x32xbf16>
    %33 = vector.shape_cast %32 : vector<1x32x32xbf16> to vector<32x32xbf16>
    %34 = arith.truncf %23 : vector<16x32xf32> to vector<16x32xbf16>
    %cst_29 = arith.constant dense<0.000000e+00> : vector<16x32xf32>
    %35 = tpu.matmul %34, %27, %cst_29 {dimension_numbers = #tpu.dot_dimension_numbers<[1], [0], [0], [1], [0, 0, 1, 1], [], []>} : vector<16x32xbf16>, vector<32x32xbf16>, vector<16x32xf32> -> vector<16x32xf32>
    %cst_30 = arith.constant dense<0.000000e+00> : vector<16x32xf32>
    %36 = tpu.matmul %34, %29, %cst_30 {dimension_numbers = #tpu.dot_dimension_numbers<[1], [0], [0], [1], [0, 0, 1, 1], [], []>} : vector<16x32xbf16>, vector<32x32xbf16>, vector<16x32xf32> -> vector<16x32xf32>
    %37 = arith.maximumf %35, %36 : vector<16x32xf32>
    %cst_31 = arith.constant dense<0.000000e+00> : vector<16x32xf32>
    %38 = tpu.matmul %34, %31, %cst_31 {dimension_numbers = #tpu.dot_dimension_numbers<[1], [0], [0], [1], [0, 0, 1, 1], [], []>} : vector<16x32xbf16>, vector<32x32xbf16>, vector<16x32xf32> -> vector<16x32xf32>
    %39 = arith.maximumf %37, %38 : vector<16x32xf32>
    %cst_32 = arith.constant dense<0.000000e+00> : vector<16x32xf32>
    %40 = tpu.matmul %34, %33, %cst_32 {dimension_numbers = #tpu.dot_dimension_numbers<[1], [0], [0], [1], [0, 0, 1, 1], [], []>} : vector<16x32xbf16>, vector<32x32xbf16>, vector<16x32xf32> -> vector<16x32xf32>
    %41 = arith.maximumf %39, %40 : vector<16x32xf32>
    %42 = arith.subf %23, %41 : vector<16x32xf32>
    %43 = math.exp %42 : vector<16x32xf32>
    %44 = arith.truncf %43 : vector<16x32xf32> to vector<16x32xbf16>
    %cst_33 = arith.constant dense<0.000000e+00> : vector<16x32xf32>
    %45 = tpu.matmul %44, %25, %cst_33 {dimension_numbers = #tpu.dot_dimension_numbers<[1], [0], [0], [1], [0, 0, 1, 1], [], []>} : vector<16x32xbf16>, vector<32x32xbf16>, vector<16x32xf32> -> vector<16x32xf32>
    %46 = tpu.reciprocal %45 {approx = true} : vector<16x32xf32> -> vector<16x32xf32>
    %47 = arith.mulf %43, %46 : vector<16x32xf32>
    %c0_34 = arith.constant 0 : index
    %c0_35 = arith.constant 0 : index
    %48 = vector.load %arg18[%c0_34, %c0_35] : memref<16x32xf32, #tpu.memory_space<vmem>>, vector<16x32xf32>
    tpu.vector_store %arg18[%c0_34, %c0_35], %47 {strides = array<i32>} : memref<16x32xf32, #tpu.memory_space<vmem>>, vector<16x32xf32>,
    %cst_36 = arith.constant 9.99999968E-21 : f32
    %49 = vector.broadcast %cst_36 : f32 to vector<16x32xf32>
    %50 = arith.addf %47, %49 : vector<16x32xf32>
    %51 = math.log %50 : vector<16x32xf32>
    %c0_37 = arith.constant 0 : index
    %c0_38 = arith.constant 0 : index
    %52 = vector.load %arg3[%c0_37, %c0_38] : memref<16x32xf32, #tpu.memory_space<vmem>>, vector<16x32xf32>
    %cst_39 = arith.constant 9.99999968E-21 : f32
    %53 = vector.broadcast %cst_39 : f32 to vector<16x32xf32>
    %54 = arith.addf %52, %53 : vector<16x32xf32>
    %55 = math.log %54 : vector<16x32xf32>
    %cst_40 = arith.constant 0.000000e+00 : f32
    %56 = vector.broadcast %cst_40 : f32 to vector<16x32xf32>
    %57 = arith.subf %56, %55 : vector<16x32xf32>
    %cst_41 = arith.constant 9.99999968E-21 : f32
    %58 = vector.broadcast %cst_41 : f32 to vector<16x32xf32>
    %59 = arith.addf %57, %58 : vector<16x32xf32>
    %60 = math.log %59 : vector<16x32xf32>
    %cst_42 = arith.constant 0.000000e+00 : f32
    %61 = vector.broadcast %cst_42 : f32 to vector<16x32xf32>
    %62 = arith.subf %61, %60 : vector<16x32xf32>
    %c0_43 = arith.constant 0 : index
    %63 = memref.load %arg1[%c0_43] : memref<1xf32, #tpu.memory_space<smem>>
    %cst_44 = arith.constant 1.000000e+00 : f32
    %64 = arith.divf %cst_44, %63 : f32
    %65 = arith.addf %51, %62 : vector<16x32xf32>
    %66 = vector.broadcast %64 : f32 to vector<16x32xf32>
    %67 = arith.mulf %65, %66 : vector<16x32xf32>
    %68 = arith.truncf %67 : vector<16x32xf32> to vector<16x32xbf16>
    %cst_45 = arith.constant dense<0.000000e+00> : vector<16x32xf32>
    %69 = tpu.matmul %68, %27, %cst_45 {dimension_numbers = #tpu.dot_dimension_numbers<[1], [0], [0], [1], [0, 0, 1, 1], [], []>} : vector<16x32xbf16>, vector<32x32xbf16>, vector<16x32xf32> -> vector<16x32xf32>
    %cst_46 = arith.constant dense<0.000000e+00> : vector<16x32xf32>
    %70 = tpu.matmul %68, %29, %cst_46 {dimension_numbers = #tpu.dot_dimension_numbers<[1], [0], [0], [1], [0, 0, 1, 1], [], []>} : vector<16x32xbf16>, vector<32x32xbf16>, vector<16x32xf32> -> vector<16x32xf32>
    %71 = arith.maximumf %69, %70 : vector<16x32xf32>
    %cst_47 = arith.constant dense<0.000000e+00> : vector<16x32xf32>
    %72 = tpu.matmul %68, %31, %cst_47 {dimension_numbers = #tpu.dot_dimension_numbers<[1], [0], [0], [1], [0, 0, 1, 1], [], []>} : vector<16x32xbf16>, vector<32x32xbf16>, vector<16x32xf32> -> vector<16x32xf32>
    %73 = arith.maximumf %71, %72 : vector<16x32xf32>
    %cst_48 = arith.constant dense<0.000000e+00> : vector<16x32xf32>
    %74 = tpu.matmul %68, %33, %cst_48 {dimension_numbers = #tpu.dot_dimension_numbers<[1], [0], [0], [1], [0, 0, 1, 1], [], []>} : vector<16x32xbf16>, vector<32x32xbf16>, vector<16x32xf32> -> vector<16x32xf32>
    %75 = arith.maximumf %73, %74 : vector<16x32xf32>
    %76 = arith.subf %67, %75 : vector<16x32xf32>
    %77 = math.exp %76 : vector<16x32xf32>
    %78 = arith.truncf %77 : vector<16x32xf32> to vector<16x32xbf16>
    %cst_49 = arith.constant dense<0.000000e+00> : vector<16x32xf32>
    %79 = tpu.matmul %78, %25, %cst_49 {dimension_numbers = #tpu.dot_dimension_numbers<[1], [0], [0], [1], [0, 0, 1, 1], [], []>} : vector<16x32xbf16>, vector<32x32xbf16>, vector<16x32xf32> -> vector<16x32xf32>
    %80 = tpu.reciprocal %79 {approx = true} : vector<16x32xf32> -> vector<16x32xf32>
    %81 = arith.mulf %77, %80 : vector<16x32xf32>
    %82 = arith.truncf %81 : vector<16x32xf32> to vector<16x32xbf16>
    %c0_50 = arith.constant 0 : index
    %c0_51 = arith.constant 0 : index
    %83 = vector.load %arg11[%c0_50, %c0_51] : memref<32x256xbf16, #tpu.memory_space<vmem>>, vector<32x256xbf16>
    %cst_52 = arith.constant dense<0.000000e+00> : vector<16x256xf32>
    %84 = tpu.matmul %82, %83, %cst_52 {dimension_numbers = #tpu.dot_dimension_numbers<[1], [0], [0], [1], [0, 0, 1, 1], [], []>} : vector<16x32xbf16>, vector<32x256xbf16>, vector<16x256xf32> -> vector<16x256xf32>
    %c0_53 = arith.constant 0 : index
    %c0_54 = arith.constant 0 : index
    %85 = vector.load %arg12[%c0_53, %c0_54] : memref<1x256xf32, #tpu.memory_space<vmem>>, vector<1x256xf32>
    %86 = vector.broadcast %85 : vector<1x256xf32> to vector<16x256xf32>
    %87 = arith.addf %84, %86 : vector<16x256xf32>
    %cst_55 = arith.constant 0.000000e+00 : f32
    %88 = vector.broadcast %cst_55 : f32 to vector<16x256xf32>
    %89 = arith.maximumf %87, %88 : vector<16x256xf32>
    %90 = arith.truncf %89 : vector<16x256xf32> to vector<16x256xbf16>
    %c0_56 = arith.constant 0 : index
    %c0_57 = arith.constant 0 : index
    %91 = vector.load %arg13[%c0_56, %c0_57] : memref<256x512xbf16, #tpu.memory_space<vmem>>, vector<256x512xbf16>
    %cst_58 = arith.constant dense<0.000000e+00> : vector<16x512xf32>
    %92 = tpu.matmul %90, %91, %cst_58 {dimension_numbers = #tpu.dot_dimension_numbers<[1], [0], [0], [1], [0, 0, 1, 1], [], []>} : vector<16x256xbf16>, vector<256x512xbf16>, vector<16x512xf32> -> vector<16x512xf32>
    %c0_59 = arith.constant 0 : index
    %c0_60 = arith.constant 0 : index
    %93 = vector.load %arg14[%c0_59, %c0_60] : memref<1x512xf32, #tpu.memory_space<vmem>>, vector<1x512xf32>
    %94 = vector.broadcast %93 : vector<1x512xf32> to vector<16x512xf32>
    %95 = arith.addf %92, %94 : vector<16x512xf32>
    %cst_61 = arith.constant 0.000000e+00 : f32
    %96 = vector.broadcast %cst_61 : f32 to vector<16x512xf32>
    %97 = arith.maximumf %95, %96 : vector<16x512xf32>
    %98 = arith.truncf %97 : vector<16x512xf32> to vector<16x512xbf16>
    %c0_62 = arith.constant 0 : index
    %c0_63 = arith.constant 0 : index
    %99 = vector.load %arg15[%c0_62, %c0_63] : memref<512x784xbf16, #tpu.memory_space<vmem>>, vector<512x784xbf16>
    %cst_64 = arith.constant dense<0.000000e+00> : vector<16x784xf32>
    %100 = tpu.matmul %98, %99, %cst_64 {dimension_numbers = #tpu.dot_dimension_numbers<[1], [0], [0], [1], [0, 0, 1, 1], [], []>} : vector<16x512xbf16>, vector<512x784xbf16>, vector<16x784xf32> -> vector<16x784xf32>
    %c0_65 = arith.constant 0 : index
    %c0_66 = arith.constant 0 : index
    %101 = vector.load %arg16[%c0_65, %c0_66] : memref<1x784xf32, #tpu.memory_space<vmem>>, vector<1x784xf32>
    %102 = vector.broadcast %101 : vector<1x784xf32> to vector<16x784xf32>
    %103 = arith.addf %100, %102 : vector<16x784xf32>
    %c0_67 = arith.constant 0 : index
    %c0_68 = arith.constant 0 : index
    %104 = vector.load %arg17[%c0_67, %c0_68] : memref<16x784xf32, #tpu.memory_space<vmem>>, vector<16x784xf32>
    tpu.vector_store %arg17[%c0_67, %c0_68], %103 {strides = array<i32>} : memref<16x784xf32, #tpu.memory_space<vmem>>, vector<16x784xf32>,
    return
  }
  func.func @transform_0(%arg0: i32) -> i32 {
    %c0_i32 = arith.constant 0 : i32
    %c0_i32_0 = arith.constant 0 : i32
    return %c0_i32 : i32
  }
  func.func @transform_1(%arg0: i32) -> (i32, i32) {
    %c0_i32 = arith.constant 0 : i32
    %c0_i32_0 = arith.constant 0 : i32
    return %arg0, %c0_i32 : i32, i32
  }
  func.func @transform_2(%arg0: i32) -> (i32, i32) {
    %c0_i32 = arith.constant 0 : i32
    %c0_i32_0 = arith.constant 0 : i32
    return %arg0, %c0_i32 : i32, i32
  }
  func.func @transform_3(%arg0: i32) -> (i32, i32, i32) {
    %c0_i32 = arith.constant 0 : i32
    %c0_i32_0 = arith.constant 0 : i32
    %c0_i32_1 = arith.constant 0 : i32
    %c0_i32_2 = arith.constant 0 : i32
    return %c0_i32, %c0_i32_0, %c0_i32_1 : i32, i32, i32
  }
  func.func @transform_4(%arg0: i32) -> (i32, i32) {
    %c0_i32 = arith.constant 0 : i32
    %c0_i32_0 = arith.constant 0 : i32
    %c0_i32_1 = arith.constant 0 : i32
    return %c0_i32, %c0_i32_0 : i32, i32
  }
  func.func @transform_5(%arg0: i32) -> (i32, i32) {
    %c0_i32 = arith.constant 0 : i32
    %c0_i32_0 = arith.constant 0 : i32
    %c0_i32_1 = arith.constant 0 : i32
    return %c0_i32, %c0_i32_0 : i32, i32
  }
  func.func @transform_6(%arg0: i32) -> (i32, i32) {
    %c0_i32 = arith.constant 0 : i32
    %c0_i32_0 = arith.constant 0 : i32
    %c0_i32_1 = arith.constant 0 : i32
    return %c0_i32, %c0_i32_0 : i32, i32
  }
  func.func @transform_7(%arg0: i32) -> (i32, i32) {
    %c0_i32 = arith.constant 0 : i32
    %c0_i32_0 = arith.constant 0 : i32
    %c0_i32_1 = arith.constant 0 : i32
    return %c0_i32, %c0_i32_0 : i32, i32
  }
  func.func @transform_8(%arg0: i32) -> (i32, i32) {
    %c0_i32 = arith.constant 0 : i32
    %c0_i32_0 = arith.constant 0 : i32
    %c0_i32_1 = arith.constant 0 : i32
    return %c0_i32, %c0_i32_0 : i32, i32
  }
  func.func @transform_9(%arg0: i32) -> (i32, i32) {
    %c0_i32 = arith.constant 0 : i32
    %c0_i32_0 = arith.constant 0 : i32
    %c0_i32_1 = arith.constant 0 : i32
    return %c0_i32, %c0_i32_0 : i32, i32
  }
  func.func @transform_10(%arg0: i32) -> (i32, i32) {
    %c0_i32 = arith.constant 0 : i32
    %c0_i32_0 = arith.constant 0 : i32
    %c0_i32_1 = arith.constant 0 : i32
    return %c0_i32, %c0_i32_0 : i32, i32
  }
  func.func @transform_11(%arg0: i32) -> (i32, i32) {
    %c0_i32 = arith.constant 0 : i32
    %c0_i32_0 = arith.constant 0 : i32
    %c0_i32_1 = arith.constant 0 : i32
    return %c0_i32, %c0_i32_0 : i32, i32
  }
  func.func @transform_12(%arg0: i32) -> (i32, i32) {
    %c0_i32 = arith.constant 0 : i32
    %c0_i32_0 = arith.constant 0 : i32
    %c0_i32_1 = arith.constant 0 : i32
    return %c0_i32, %c0_i32_0 : i32, i32
  }
  func.func @transform_13(%arg0: i32) -> (i32, i32) {
    %c0_i32 = arith.constant 0 : i32
    %c0_i32_0 = arith.constant 0 : i32
    %c0_i32_1 = arith.constant 0 : i32
    return %c0_i32, %c0_i32_0 : i32, i32
  }
  func.func @transform_14(%arg0: i32) -> (i32, i32) {
    %c0_i32 = arith.constant 0 : i32
    %c0_i32_0 = arith.constant 0 : i32
    %c0_i32_1 = arith.constant 0 : i32
    return %c0_i32, %c0_i32_0 : i32, i32
  }
  func.func @transform_15(%arg0: i32) -> (i32, i32) {
    %c0_i32 = arith.constant 0 : i32
    %c0_i32_0 = arith.constant 0 : i32
    %c0_i32_1 = arith.constant 0 : i32
    return %c0_i32, %c0_i32_0 : i32, i32
  }
  func.func @transform_16(%arg0: i32) -> (i32, i32) {
    %c0_i32 = arith.constant 0 : i32
    %c0_i32_0 = arith.constant 0 : i32
    return %arg0, %c0_i32 : i32, i32
  }
  func.func @transform_17(%arg0: i32) -> (i32, i32) {
    %c0_i32 = arith.constant 0 : i32
    %c0_i32_0 = arith.constant 0 : i32
    return %arg0, %c0_i32 : i32, i32
  }
}

</mosaic_0001>

<llo_original>
// kernel: vae_gumbel_forward.1
$region0: #{vae_gumbel_forward.1}
  #allocation0 [shape = 'u32[]', space=smem, size = 0x4, offset = 0x4, fixed_abs, tag = 'smem constant byte address 0x4 - core index']
  #allocation1 [shape = 'u32[144,128]{1,0:T(1,128)}', space=vmem, size = 0x12000, scoped, tag = 'internal scratch']
  #allocation2 [shape = 'f32[1]{0:T(128)S(6)}', space=smem, size = 0x200, scoped, tag = 'scoped memory for vae_gumbel_forward.1']
  %s0 = inlined_call_operand.<no memory space> [shape: f32[1], index: 0, kind: input, shape index: {}]
  %s1 = inlined_call_operand.vmem [shape: bf16[2,784], index: 1, kind: input, shape index: {}]
  %s2 = inlined_call_operand.vmem [shape: f32[2,32], index: 2, kind: input, shape index: {}]
  %s3 = inlined_call_operand.vmem [shape: bf16[5,32,32], index: 3, kind: input, shape index: {}]
  %s4 = inlined_call_operand.vmem [shape: bf16[784,512], index: 4, kind: input, shape index: {}]
  %s5 = inlined_call_operand.vmem [shape: f32[1,512], index: 5, kind: input, shape index: {}]
  %s6 = inlined_call_operand.vmem [shape: bf16[512,256], index: 6, kind: input, shape index: {}]
  %s7 = inlined_call_operand.vmem [shape: f32[1,256], index: 7, kind: input, shape index: {}]
  %s8 = inlined_call_operand.vmem [shape: bf16[256,32], index: 8, kind: input, shape index: {}]
  %s9 = inlined_call_operand.vmem [shape: f32[1,32], index: 9, kind: input, shape index: {}]
  %s10 = inlined_call_operand.vmem [shape: bf16[32,256], index: 10, kind: input, shape index: {}]
  %s11 = inlined_call_operand.vmem [shape: f32[1,256], index: 11, kind: input, shape index: {}]
  %s12 = inlined_call_operand.vmem [shape: bf16[256,512], index: 12, kind: input, shape index: {}]
  %s13 = inlined_call_operand.vmem [shape: f32[1,512], index: 13, kind: input, shape index: {}]
  %s14 = inlined_call_operand.vmem [shape: bf16[512,784], index: 14, kind: input, shape index: {}]
  %s15 = inlined_call_operand.vmem [shape: f32[1,784], index: 15, kind: input, shape index: {}]
  %s16 = inlined_call_operand.hbm [shape: f32[2,784], index: 16, kind: output, shape index: {0}]
  %s17 = inlined_call_operand.hbm [shape: f32[2,32], index: 17, kind: output, shape index: {1}]
  %18 = xla_tuple %s16, %s17
  %s19 = sld [smem:[#allocation0]]
  $region82: #{vae_gumbel_forward.1} parent=0
    _
  %s21 = ssub.s32 1, %s19
  %s22 = scalar_select 0, %s21, %s19
  %23 = sst [smem:[#allocation2]] %s0
  $region1: #{vae_gumbel_forward.1} parent=0
    #allocation3 [shape = 'u8[57344]{0}', space=vmem, size = 0xe000, scoped, tag = 'output window, operand 0, single buffered']
    #allocation4 [shape = 's32[1]{0}', space=sflag, size = 0x4, scoped, tag = 'scoped memory for vae_gumbel_forward.1']
    #allocation5 [shape = 'u8[8192]{0}', space=vmem, size = 0x2000, scoped, tag = 'output window, operand 1, single buffered']
    #allocation6 [shape = 's32[1]{0}', space=sflag, size = 0x4, scoped, tag = 'scoped memory for vae_gumbel_forward.1']
    %24 = vsyncpa [#allocation4], 0
    %25 = vsyncpa [#allocation6], 0
    // Predicated region
    $region2: #{vae_gumbel_forward.1} parent=1 // pred_check
      _
    $region3: #{vae_gumbel_forward.1} parent=1 // pred_check_branch
      %27 = sbr.rel (0) target = $region5
    $region4: #{vae_gumbel_forward.1} parent=1 // pred_region
      _
    $region5: #{vae_gumbel_forward.1} parent=1 // pred_fallthru
      _
    // Predicated region
    $region6: #{vae_gumbel_forward.1} parent=1 // pred_check
      _
    $region7: #{vae_gumbel_forward.1} parent=1 // pred_check_branch
      %29 = sbr.rel (0) target = $region9
    $region8: #{vae_gumbel_forward.1} parent=1 // pred_region
      _
    $region9: #{vae_gumbel_forward.1} parent=1 // pred_fallthru
      _
    // Predicated region
    $region10: #{vae_gumbel_forward.1} parent=1 // pred_check
      _
    $region11: #{vae_gumbel_forward.1} parent=1 // pred_check_branch
      %31 = sbr.rel (0) target = $region13
    $region12: #{vae_gumbel_forward.1} parent=1 // pred_region
      _
    $region13: #{vae_gumbel_forward.1} parent=1 // pred_fallthru
      _
    // Predicated region
    $region14: #{vae_gumbel_forward.1} parent=1 // pred_check
      _
    $region15: #{vae_gumbel_forward.1} parent=1 // pred_check_branch
      %33 = sbr.rel (0) target = $region17
    $region16: #{vae_gumbel_forward.1} parent=1 // pred_region
      _
    $region17: #{vae_gumbel_forward.1} parent=1 // pred_fallthru
      _
    // Predicated region
    $region18: #{vae_gumbel_forward.1} parent=1 // pred_check
      _
    $region19: #{vae_gumbel_forward.1} parent=1 // pred_check_branch
      %35 = sbr.rel (0) target = $region21
    $region20: #{vae_gumbel_forward.1} parent=1 // pred_region
      _
    $region21: #{vae_gumbel_forward.1} parent=1 // pred_fallthru
      _
    // Predicated region
    $region22: #{vae_gumbel_forward.1} parent=1 // pred_check
      _
    $region23: #{vae_gumbel_forward.1} parent=1 // pred_check_branch
      %37 = sbr.rel (0) target = $region25
    $region24: #{vae_gumbel_forward.1} parent=1 // pred_region
      _
    $region25: #{vae_gumbel_forward.1} parent=1 // pred_fallthru
      _
    // Predicated region
    $region26: #{vae_gumbel_forward.1} parent=1 // pred_check
      _
    $region27: #{vae_gumbel_forward.1} parent=1 // pred_check_branch
      %39 = sbr.rel (0) target = $region29
    $region28: #{vae_gumbel_forward.1} parent=1 // pred_region
      _
    $region29: #{vae_gumbel_forward.1} parent=1 // pred_fallthru
      _
    // Predicated region
    $region30: #{vae_gumbel_forward.1} parent=1 // pred_check
      _
    $region31: #{vae_gumbel_forward.1} parent=1 // pred_check_branch
      %41 = sbr.rel (0) target = $region33
    $region32: #{vae_gumbel_forward.1} parent=1 // pred_region
      _
    $region33: #{vae_gumbel_forward.1} parent=1 // pred_fallthru
      _
    // Predicated region
    $region34: #{vae_gumbel_forward.1} parent=1 // pred_check
      _
    $region35: #{vae_gumbel_forward.1} parent=1 // pred_check_branch
      %43 = sbr.rel (0) target = $region37
    $region36: #{vae_gumbel_forward.1} parent=1 // pred_region
      _
    $region37: #{vae_gumbel_forward.1} parent=1 // pred_fallthru
      _
    // Predicated region
    $region38: #{vae_gumbel_forward.1} parent=1 // pred_check
      _
    $region39: #{vae_gumbel_forward.1} parent=1 // pred_check_branch
      %45 = sbr.rel (0) target = $region41
    $region40: #{vae_gumbel_forward.1} parent=1 // pred_region
      _
    $region41: #{vae_gumbel_forward.1} parent=1 // pred_fallthru
      _
    // Predicated region
    $region42: #{vae_gumbel_forward.1} parent=1 // pred_check
      _
    $region43: #{vae_gumbel_forward.1} parent=1 // pred_check_branch
      %47 = sbr.rel (0) target = $region45
    $region44: #{vae_gumbel_forward.1} parent=1 // pred_region
      _
    $region45: #{vae_gumbel_forward.1} parent=1 // pred_fallthru
      _
    // Predicated region
    $region46: #{vae_gumbel_forward.1} parent=1 // pred_check
      _
    $region47: #{vae_gumbel_forward.1} parent=1 // pred_check_branch
      %49 = sbr.rel (0) target = $region49
    $region48: #{vae_gumbel_forward.1} parent=1 // pred_region
      _
    $region49: #{vae_gumbel_forward.1} parent=1 // pred_fallthru
      _
    // Predicated region
    $region50: #{vae_gumbel_forward.1} parent=1 // pred_check
      _
    $region51: #{vae_gumbel_forward.1} parent=1 // pred_check_branch
      %51 = sbr.rel (0) target = $region53
    $region52: #{vae_gumbel_forward.1} parent=1 // pred_region
      _
    $region53: #{vae_gumbel_forward.1} parent=1 // pred_fallthru
      _
    // Predicated region
    $region54: #{vae_gumbel_forward.1} parent=1 // pred_check
      _
    $region55: #{vae_gumbel_forward.1} parent=1 // pred_check_branch
      %53 = sbr.rel (0) target = $region57
    $region56: #{vae_gumbel_forward.1} parent=1 // pred_region
      _
    $region57: #{vae_gumbel_forward.1} parent=1 // pred_fallthru
      _
    // Predicated region
    $region58: #{vae_gumbel_forward.1} parent=1 // pred_check
      _
    $region59: #{vae_gumbel_forward.1} parent=1 // pred_check_branch
      %55 = sbr.rel (0) target = $region61
    $region60: #{vae_gumbel_forward.1} parent=1 // pred_region
      _
    $region61: #{vae_gumbel_forward.1} parent=1 // pred_fallthru
      _
    // Predicated region
    $region62: #{vae_gumbel_forward.1} parent=1 // pred_check
      _
    $region63: #{vae_gumbel_forward.1} parent=1 // pred_check_branch
      %57 = sbr.rel (0) target = $region65
    $region64: #{vae_gumbel_forward.1} parent=1 // pred_region
      _
    $region65: #{vae_gumbel_forward.1} parent=1 // pred_fallthru
      _
    %v59 = vld [vmem:[%s1] sm:$0x7f]
    %v60 = vld [vmem:[%s1 + $0x7] sm:$0x7f]
    %v61 = vld [vmem:[%s1 + $0xe] sm:$0x7f]
    %v62 = vld [vmem:[%s1 + $0x15] sm:$0x7f]
    %v63 = vld [vmem:[%s1 + $0x1c] sm:$0x7f]
    %v64 = vld [vmem:[%s1 + $0x23] sm:$0x7f]
    %v65 = vld [vmem:[%s1 + $0x2a] sm:$0x7f]
    %v66 = vld [vmem:[%s1 + $0x31] sm:$0x7f]
    %v67 = vld [vmem:[%s4] sm:$0xff]
    %v68 = vld [vmem:[%s4 + $0x8] sm:$0xff]
    %v69 = vld [vmem:[%s4 + $0x10] sm:$0xff]
    %v70 = vld [vmem:[%s4 + $0x18] sm:$0xff]
    %v71 = vld [vmem:[%s4 + $0x20] sm:$0xff]
    %v72 = vld [vmem:[%s4 + $0x28] sm:$0xff]
    %v73 = vld [vmem:[%s4 + $0x30] sm:$0xff]
    %v74 = vld [vmem:[%s4 + $0x38] sm:$0xff]
    %v75 = vld [vmem:[%s4 + $0x40] sm:$0xff]
    %v76 = vld [vmem:[%s4 + $0x48] sm:$0xff]
    %v77 = vld [vmem:[%s4 + $0x50] sm:$0xff]
    %v78 = vld [vmem:[%s4 + $0x58] sm:$0xff]
    %v79 = vld [vmem:[%s4 + $0x60] sm:$0xff]
    %v80 = vld [vmem:[%s4 + $0x68] sm:$0xff]
    %v81 = vld [vmem:[%s4 + $0x70] sm:$0xff]
    %v82 = vld [vmem:[%s4 + $0x78] sm:$0xff]
    %v83 = vld [vmem:[%s4 + $0x80] sm:$0xff]
    %v84 = vld [vmem:[%s4 + $0x88] sm:$0xff]
    %v85 = vld [vmem:[%s4 + $0x90] sm:$0xff]
    %v86 = vld [vmem:[%s4 + $0x98] sm:$0xff]
    %v87 = vld [vmem:[%s4 + $0xa0] sm:$0xff]
    %v88 = vld [vmem:[%s4 + $0xa8] sm:$0xff]
    %v89 = vld [vmem:[%s4 + $0xb0] sm:$0xff]
    %v90 = vld [vmem:[%s4 + $0xb8] sm:$0xff]
    %v91 = vld [vmem:[%s4 + $0xc0] sm:$0xff]
    %v92 = vld [vmem:[%s4 + $0xc8] sm:$0xff]
    %v93 = vld [vmem:[%s4 + $0xd0] sm:$0xff]
    %v94 = vld [vmem:[%s4 + $0xd8] sm:$0xff]
    %v95 = vld [vmem:[%s4 + $0xe0] sm:$0xff]
    %v96 = vld [vmem:[%s4 + $0xe8] sm:$0xff]
    %v97 = vld [vmem:[%s4 + $0xf0] sm:$0xff]
    %v98 = vld [vmem:[%s4 + $0xf8] sm:$0xff]
    %v99 = vld [vmem:[%s4 + $0x100] sm:$0xff]
    %v100 = vld [vmem:[%s4 + $0x108] sm:$0xff]
    %v101 = vld [vmem:[%s4 + $0x110] sm:$0xff]
    %v102 = vld [vmem:[%s4 + $0x118] sm:$0xff]
    %v103 = vld [vmem:[%s4 + $0x120] sm:$0xff]
    %v104 = vld [vmem:[%s4 + $0x128] sm:$0xff]
    %v105 = vld [vmem:[%s4 + $0x130] sm:$0xff]
    %v106 = vld [vmem:[%s4 + $0x138] sm:$0xff]
    %v107 = vld [vmem:[%s4 + $0x140] sm:$0xff]
    %v108 = vld [vmem:[%s4 + $0x148] sm:$0xff]
    %v109 = vld [vmem:[%s4 + $0x150] sm:$0xff]
    %v110 = vld [vmem:[%s4 + $0x158] sm:$0xff]
    %v111 = vld [vmem:[%s4 + $0x160] sm:$0xff]
    %v112 = vld [vmem:[%s4 + $0x168] sm:$0xff]
    %v113 = vld [vmem:[%s4 + $0x170] sm:$0xff]
    %v114 = vld [vmem:[%s4 + $0x178] sm:$0xff]
    %v115 = vld [vmem:[%s4 + $0x180] sm:$0xff]
    %v116 = vld [vmem:[%s4 + $0x188] sm:$0xff]
    %v117 = vld [vmem:[%s4 + $0x190] sm:$0xff]
    %v118 = vld [vmem:[%s4 + $0x198] sm:$0xff]
    %v119 = vld [vmem:[%s4 + $0x1a0] sm:$0xff]
    %v120 = vld [vmem:[%s4 + $0x1a8] sm:$0xff]
    %v121 = vld [vmem:[%s4 + $0x1b0] sm:$0xff]
    %v122 = vld [vmem:[%s4 + $0x1b8] sm:$0xff]
    %v123 = vld [vmem:[%s4 + $0x1c0] sm:$0xff]
    %v124 = vld [vmem:[%s4 + $0x1c8] sm:$0xff]
    %v125 = vld [vmem:[%s4 + $0x1d0] sm:$0xff]
    %v126 = vld [vmem:[%s4 + $0x1d8] sm:$0xff]
    %v127 = vld [vmem:[%s4 + $0x1e0] sm:$0xff]
    %v128 = vld [vmem:[%s4 + $0x1e8] sm:$0xff]
    %v129 = vld [vmem:[%s4 + $0x1f0] sm:$0xff]
    %v130 = vld [vmem:[%s4 + $0x1f8] sm:$0xff]
    %v131 = vld [vmem:[%s4 + $0x200] sm:$0xff]
    %v132 = vld [vmem:[%s4 + $0x208] sm:$0xff]
    %v133 = vld [vmem:[%s4 + $0x210] sm:$0xff]
    %v134 = vld [vmem:[%s4 + $0x218] sm:$0xff]
    %v135 = vld [vmem:[%s4 + $0x220] sm:$0xff]
    %v136 = vld [vmem:[%s4 + $0x228] sm:$0xff]
    %v137 = vld [vmem:[%s4 + $0x230] sm:$0xff]
    %v138 = vld [vmem:[%s4 + $0x238] sm:$0xff]
    %v139 = vld [vmem:[%s4 + $0x240] sm:$0xff]
    %v140 = vld [vmem:[%s4 + $0x248] sm:$0xff]
    %v141 = vld [vmem:[%s4 + $0x250] sm:$0xff]
    %v142 = vld [vmem:[%s4 + $0x258] sm:$0xff]
    %v143 = vld [vmem:[%s4 + $0x260] sm:$0xff]
    %v144 = vld [vmem:[%s4 + $0x268] sm:$0xff]
    %v145 = vld [vmem:[%s4 + $0x270] sm:$0xff]
    %v146 = vld [vmem:[%s4 + $0x278] sm:$0xff]
    %v147 = vld [vmem:[%s4 + $0x280] sm:$0xff]
    %v148 = vld [vmem:[%s4 + $0x288] sm:$0xff]
    %v149 = vld [vmem:[%s4 + $0x290] sm:$0xff]
    %v150 = vld [vmem:[%s4 + $0x298] sm:$0xff]
    %v151 = vld [vmem:[%s4 + $0x2a0] sm:$0xff]
    %v152 = vld [vmem:[%s4 + $0x2a8] sm:$0xff]
    %v153 = vld [vmem:[%s4 + $0x2b0] sm:$0xff]
    %v154 = vld [vmem:[%s4 + $0x2b8] sm:$0xff]
    %v155 = vld [vmem:[%s4 + $0x2c0] sm:$0xff]
    %v156 = vld [vmem:[%s4 + $0x2c8] sm:$0xff]
    %v157 = vld [vmem:[%s4 + $0x2d0] sm:$0xff]
    %v158 = vld [vmem:[%s4 + $0x2d8] sm:$0xff]
    %v159 = vld [vmem:[%s4 + $0x2e0] sm:$0xff]
    %v160 = vld [vmem:[%s4 + $0x2e8] sm:$0xff]
    %v161 = vld [vmem:[%s4 + $0x2f0] sm:$0xff]
    %v162 = vld [vmem:[%s4 + $0x2f8] sm:$0xff]
    %v163 = vld [vmem:[%s4 + $0x300] sm:$0xff]
    %v164 = vld [vmem:[%s4 + $0x308] sm:$0xff]
    %v165 = vld [vmem:[%s4 + $0x310] sm:$0xff]
    %v166 = vld [vmem:[%s4 + $0x318] sm:$0xff]
    %v167 = vld [vmem:[%s4 + $0x320] sm:$0xff]
    %v168 = vld [vmem:[%s4 + $0x328] sm:$0xff]
    %v169 = vld [vmem:[%s4 + $0x330] sm:$0xff]
    %v170 = vld [vmem:[%s4 + $0x338] sm:$0xff]
    %v171 = vld [vmem:[%s4 + $0x340] sm:$0xff]
    %v172 = vld [vmem:[%s4 + $0x348] sm:$0xff]
    %v173 = vld [vmem:[%s4 + $0x350] sm:$0xff]
    %v174 = vld [vmem:[%s4 + $0x358] sm:$0xff]
    %v175 = vld [vmem:[%s4 + $0x360] sm:$0xff]
    %v176 = vld [vmem:[%s4 + $0x368] sm:$0xff]
    %v177 = vld [vmem:[%s4 + $0x370] sm:$0xff]
    %v178 = vld [vmem:[%s4 + $0x378] sm:$0xff]
    %v179 = vld [vmem:[%s4 + $0x380] sm:$0xff]
    %v180 = vld [vmem:[%s4 + $0x388] sm:$0xff]
    %v181 = vld [vmem:[%s4 + $0x390] sm:$0xff]
    %v182 = vld [vmem:[%s4 + $0x398] sm:$0xff]
    %v183 = vld [vmem:[%s4 + $0x3a0] sm:$0xff]
    %v184 = vld [vmem:[%s4 + $0x3a8] sm:$0xff]
    %v185 = vld [vmem:[%s4 + $0x3b0] sm:$0xff]
    %v186 = vld [vmem:[%s4 + $0x3b8] sm:$0xff]
    %v187 = vld [vmem:[%s4 + $0x3c0] sm:$0xff]
    %v188 = vld [vmem:[%s4 + $0x3c8] sm:$0xff]
    %v189 = vld [vmem:[%s4 + $0x3d0] sm:$0xff]
    %v190 = vld [vmem:[%s4 + $0x3d8] sm:$0xff]
    %v191 = vld [vmem:[%s4 + $0x3e0] sm:$0xff]
    %v192 = vld [vmem:[%s4 + $0x3e8] sm:$0xff]
    %v193 = vld [vmem:[%s4 + $0x3f0] sm:$0xff]
    %v194 = vld [vmem:[%s4 + $0x3f8] sm:$0xff]
    %v195 = vld [vmem:[%s4 + $0x400] sm:$0xff]
    %v196 = vld [vmem:[%s4 + $0x408] sm:$0xff]
    %v197 = vld [vmem:[%s4 + $0x410] sm:$0xff]
    %v198 = vld [vmem:[%s4 + $0x418] sm:$0xff]
    %v199 = vld [vmem:[%s4 + $0x420] sm:$0xff]
    %v200 = vld [vmem:[%s4 + $0x428] sm:$0xff]
    %v201 = vld [vmem:[%s4 + $0x430] sm:$0xff]
    %v202 = vld [vmem:[%s4 + $0x438] sm:$0xff]
    %v203 = vld [vmem:[%s4 + $0x440] sm:$0xff]
    %v204 = vld [vmem:[%s4 + $0x448] sm:$0xff]
    %v205 = vld [vmem:[%s4 + $0x450] sm:$0xff]
    %v206 = vld [vmem:[%s4 + $0x458] sm:$0xff]
    %v207 = vld [vmem:[%s4 + $0x460] sm:$0xff]
    %v208 = vld [vmem:[%s4 + $0x468] sm:$0xff]
    %v209 = vld [vmem:[%s4 + $0x470] sm:$0xff]
    %v210 = vld [vmem:[%s4 + $0x478] sm:$0xff]
    %v211 = vld [vmem:[%s4 + $0x480] sm:$0xff]
    %v212 = vld [vmem:[%s4 + $0x488] sm:$0xff]
    %v213 = vld [vmem:[%s4 + $0x490] sm:$0xff]
    %v214 = vld [vmem:[%s4 + $0x498] sm:$0xff]
    %v215 = vld [vmem:[%s4 + $0x4a0] sm:$0xff]
    %v216 = vld [vmem:[%s4 + $0x4a8] sm:$0xff]
    %v217 = vld [vmem:[%s4 + $0x4b0] sm:$0xff]
    %v218 = vld [vmem:[%s4 + $0x4b8] sm:$0xff]
    %v219 = vld [vmem:[%s4 + $0x4c0] sm:$0xff]
    %v220 = vld [vmem:[%s4 + $0x4c8] sm:$0xff]
    %v221 = vld [vmem:[%s4 + $0x4d0] sm:$0xff]
    %v222 = vld [vmem:[%s4 + $0x4d8] sm:$0xff]
    %v223 = vld [vmem:[%s4 + $0x4e0] sm:$0xff]
    %v224 = vld [vmem:[%s4 + $0x4e8] sm:$0xff]
    %v225 = vld [vmem:[%s4 + $0x4f0] sm:$0xff]
    %v226 = vld [vmem:[%s4 + $0x4f8] sm:$0xff]
    %v227 = vld [vmem:[%s4 + $0x500] sm:$0xff]
    %v228 = vld [vmem:[%s4 + $0x508] sm:$0xff]
    %v229 = vld [vmem:[%s4 + $0x510] sm:$0xff]
    %v230 = vld [vmem:[%s4 + $0x518] sm:$0xff]
    %v231 = vld [vmem:[%s4 + $0x520] sm:$0xff]
    %v232 = vld [vmem:[%s4 + $0x528] sm:$0xff]
    %v233 = vld [vmem:[%s4 + $0x530] sm:$0xff]
    %v234 = vld [vmem:[%s4 + $0x538] sm:$0xff]
    %v235 = vld [vmem:[%s4 + $0x540] sm:$0xff]
    %v236 = vld [vmem:[%s4 + $0x548] sm:$0xff]
    %v237 = vld [vmem:[%s4 + $0x550] sm:$0xff]
    %v238 = vld [vmem:[%s4 + $0x558] sm:$0xff]
    %v239 = vld [vmem:[%s4 + $0x560] sm:$0xff]
    %v240 = vld [vmem:[%s4 + $0x568] sm:$0xff]
    %v241 = vld [vmem:[%s4 + $0x570] sm:$0xff]
    %v242 = vld [vmem:[%s4 + $0x578] sm:$0xff]
    %v243 = vld [vmem:[%s4 + $0x580] sm:$0xff]
    %v244 = vld [vmem:[%s4 + $0x588] sm:$0xff]
    %v245 = vld [vmem:[%s4 + $0x590] sm:$0xff]
    %v246 = vld [vmem:[%s4 + $0x598] sm:$0xff]
    %v247 = vld [vmem:[%s4 + $0x5a0] sm:$0xff]
    %v248 = vld [vmem:[%s4 + $0x5a8] sm:$0xff]
    %v249 = vld [vmem:[%s4 + $0x5b0] sm:$0xff]
    %v250 = vld [vmem:[%s4 + $0x5b8] sm:$0xff]
    %v251 = vld [vmem:[%s4 + $0x5c0] sm:$0xff]
    %v252 = vld [vmem:[%s4 + $0x5c8] sm:$0xff]
    %v253 = vld [vmem:[%s4 + $0x5d0] sm:$0xff]
    %v254 = vld [vmem:[%s4 + $0x5d8] sm:$0xff]
    %v255 = vld [vmem:[%s4 + $0x5e0] sm:$0xff]
    %v256 = vld [vmem:[%s4 + $0x5e8] sm:$0xff]
    %v257 = vld [vmem:[%s4 + $0x5f0] sm:$0xff]
    %v258 = vld [vmem:[%s4 + $0x5f8] sm:$0xff]
    %v259 = vld [vmem:[%s4 + $0x600] sm:$0xff]
    %v260 = vld [vmem:[%s4 + $0x608] sm:$0xff]
    %v261 = vld [vmem:[%s4 + $0x610] sm:$0xff]
    %v262 = vld [vmem:[%s4 + $0x618] sm:$0xff]
    %v263 = vld [vmem:[%s5] sm:$0xf]
    %v265 = vlaneseq
    %v266 = vshrl.u32 %v265, 7
    %v267 = vsub.s32 0, %v266
    %v268 = vrot.slane %v263, %v267
    %v269 = vlaneseq
    %v270 = vshrl.u32 %v269, 7
    %v271 = vsub.s32 1, %v270
    %v272 = vrot.slane %v263, %v271
    %v273 = vlaneseq
    %v274 = vshrl.u32 %v273, 7
    %v275 = vsub.s32 2, %v274
    %v276 = vrot.slane %v263, %v275
    %v277 = vlaneseq
    %v278 = vshrl.u32 %v277, 7
    %v279 = vsub.s32 3, %v278
    %v280 = vrot.slane %v263, %v279
    %v293 = vcombine.low %v59, %v60
    %v294 = vcombine.high %v59, %v60
    %v295 = vcombine.low %v61, %v62
    %v296 = vcombine.high %v61, %v62
    %v297 = vcombine.low %v63, %v64
    %v298 = vcombine.high %v63, %v64
    %v299 = vcombine.low %v65, %v66
    %v300 = vcombine.high %v65, %v66
    %v302 = vunpack.c.l.s4 1966171168
    %v303 = vunpack.c.0.s8 %v302
    %v304 = vlaneseq
    %v305 = vshrl.u32 %v304, 7
    %v306 = vsub.s32 %v303, %v305
    %v307 = vrot.slane %v293, %v306
    %v309 = vunpack.c.l.s4 1966171168
    %v310 = vunpack.c.0.s8 %v309
    %v311 = vlaneseq
    %v312 = vshrl.u32 %v311, 7
    %v313 = vsub.s32 %v310, %v312
    %v314 = vrot.slane %v294, %v313
    %v316 = vunpack.c.l.s4 1966171168
    %v317 = vunpack.c.0.s8 %v316
    %v318 = vlaneseq
    %v319 = vshrl.u32 %v318, 7
    %v320 = vsub.s32 %v317, %v319
    %v321 = vrot.slane %v295, %v320
    %v323 = vunpack.c.l.s4 1966171168
    %v324 = vunpack.c.0.s8 %v323
    %v325 = vlaneseq
    %v326 = vshrl.u32 %v325, 7
    %v327 = vsub.s32 %v324, %v326
    %v328 = vrot.slane %v296, %v327
    %v330 = vunpack.c.l.s4 1966171168
    %v331 = vunpack.c.0.s8 %v330
    %v332 = vlaneseq
    %v333 = vshrl.u32 %v332, 7
    %v334 = vsub.s32 %v331, %v333
    %v335 = vrot.slane %v297, %v334
    %v337 = vunpack.c.l.s4 1966171168
    %v338 = vunpack.c.0.s8 %v337
    %v339 = vlaneseq
    %v340 = vshrl.u32 %v339, 7
    %v341 = vsub.s32 %v338, %v340
    %v342 = vrot.slane %v298, %v341
    %v344 = vunpack.c.l.s4 1966171168
    %v345 = vunpack.c.0.s8 %v344
    %v346 = vlaneseq
    %v347 = vshrl.u32 %v346, 7
    %v348 = vsub.s32 %v345, %v347
    %v349 = vrot.slane %v299, %v348
    %v351 = vunpack.c.l.s4 1966171168
    %v352 = vunpack.c.0.s8 %v351
    %v353 = vlaneseq
    %v354 = vshrl.u32 %v353, 7
    %v355 = vsub.s32 %v352, %v354
    %v356 = vrot.slane %v300, %v355
    %v357 = vcombine.low %v307, %v321
    %v358 = vcombine.high %v307, %v321
    %v359 = vcombine.low %v314, %v328
    %v360 = vcombine.high %v314, %v328
    %v361 = vcombine.low %v335, %v349
    %v362 = vcombine.high %v335, %v349
    %v363 = vcombine.low %v342, %v356
    %v364 = vcombine.high %v342, %v356
    %v366 = vunpack.c.l.s4 1966171168
    %v367 = vunpack.c.0.s8 %v366
    %v368 = vlaneseq
    %v369 = vshrl.u32 %v368, 7
    %v370 = vsub.s32 %v367, %v369
    %v371 = vrot.slane %v357, %v370
    %v373 = vunpack.c.l.s4 1966171168
    %v374 = vunpack.c.0.s8 %v373
    %v375 = vlaneseq
    %v376 = vshrl.u32 %v375, 7
    %v377 = vsub.s32 %v374, %v376
    %v378 = vrot.slane %v359, %v377
    %v380 = vunpack.c.l.s4 1966171168
    %v381 = vunpack.c.0.s8 %v380
    %v382 = vlaneseq
    %v383 = vshrl.u32 %v382, 7
    %v384 = vsub.s32 %v381, %v383
    %v385 = vrot.slane %v358, %v384
    %v387 = vunpack.c.l.s4 1966171168
    %v388 = vunpack.c.0.s8 %v387
    %v389 = vlaneseq
    %v390 = vshrl.u32 %v389, 7
    %v391 = vsub.s32 %v388, %v390
    %v392 = vrot.slane %v360, %v391
    %v394 = vunpack.c.l.s4 1966171168
    %v395 = vunpack.c.0.s8 %v394
    %v396 = vlaneseq
    %v397 = vshrl.u32 %v396, 7
    %v398 = vsub.s32 %v395, %v397
    %v399 = vrot.slane %v361, %v398
    %v401 = vunpack.c.l.s4 1966171168
    %v402 = vunpack.c.0.s8 %v401
    %v403 = vlaneseq
    %v404 = vshrl.u32 %v403, 7
    %v405 = vsub.s32 %v402, %v404
    %v406 = vrot.slane %v363, %v405
    %v408 = vunpack.c.l.s4 1966171168
    %v409 = vunpack.c.0.s8 %v408
    %v410 = vlaneseq
    %v411 = vshrl.u32 %v410, 7
    %v412 = vsub.s32 %v409, %v411
    %v413 = vrot.slane %v362, %v412
    %v415 = vunpack.c.l.s4 1966171168
    %v416 = vunpack.c.0.s8 %v415
    %v417 = vlaneseq
    %v418 = vshrl.u32 %v417, 7
    %v419 = vsub.s32 %v416, %v418
    %v420 = vrot.slane %v364, %v419
    %v421 = vcombine.low %v371, %v399
    %v422 = vcombine.high %v371, %v399
    %v423 = vcombine.low %v378, %v406
    %v424 = vcombine.high %v378, %v406
    %v425 = vcombine.low %v385, %v413
    %v426 = vcombine.high %v385, %v413
    %v427 = vcombine.low %v392, %v420
    %v630 = vunpack.c.l.b16 %v67
    %v631 = vunpack.c.h.b16 %v67
    %v632 = vunpack.c.l.b16 %v68
    %v633 = vunpack.c.h.b16 %v68
    %v634 = vunpack.c.l.b16 %v69
    %v635 = vunpack.c.h.b16 %v69
    %v636 = vunpack.c.l.b16 %v70
    %v637 = vunpack.c.h.b16 %v70
    %v638 = vunpack.c.l.b16 %v71
    %v639 = vunpack.c.h.b16 %v71
    %v640 = vunpack.c.l.b16 %v72
    %v641 = vunpack.c.h.b16 %v72
    %v642 = vunpack.c.l.b16 %v73
    %v643 = vunpack.c.h.b16 %v73
    %v644 = vunpack.c.l.b16 %v74
    %v645 = vunpack.c.h.b16 %v74
    %v646 = vunpack.c.l.b16 %v75
    %v647 = vunpack.c.h.b16 %v75
    %v648 = vunpack.c.l.b16 %v76
    %v649 = vunpack.c.h.b16 %v76
    %v650 = vunpack.c.l.b16 %v77
    %v651 = vunpack.c.h.b16 %v77
    %v652 = vunpack.c.l.b16 %v78
    %v653 = vunpack.c.h.b16 %v78
    %v654 = vunpack.c.l.b16 %v79
    %v655 = vunpack.c.h.b16 %v79
    %v656 = vunpack.c.l.b16 %v80
    %v657 = vunpack.c.h.b16 %v80
    %v658 = vunpack.c.l.b16 %v81
    %v659 = vunpack.c.h.b16 %v81
    %v660 = vunpack.c.l.b16 %v82
    %v661 = vunpack.c.h.b16 %v82
    %v662 = vunpack.c.l.b16 %v83
    %v663 = vunpack.c.h.b16 %v83
    %v664 = vunpack.c.l.b16 %v84
    %v665 = vunpack.c.h.b16 %v84
    %v666 = vunpack.c.l.b16 %v85
    %v667 = vunpack.c.h.b16 %v85
    %v668 = vunpack.c.l.b16 %v86
    %v669 = vunpack.c.h.b16 %v86
    %v670 = vunpack.c.l.b16 %v87
    %v671 = vunpack.c.h.b16 %v87
    %v672 = vunpack.c.l.b16 %v88
    %v673 = vunpack.c.h.b16 %v88
    %v674 = vunpack.c.l.b16 %v89
    %v675 = vunpack.c.h.b16 %v89
    %v676 = vunpack.c.l.b16 %v90
    %v677 = vunpack.c.h.b16 %v90
    %v678 = vunpack.c.l.b16 %v91
    %v679 = vunpack.c.h.b16 %v91
    %v680 = vunpack.c.l.b16 %v92
    %v681 = vunpack.c.h.b16 %v92
    %v682 = vunpack.c.l.b16 %v93
    %v683 = vunpack.c.h.b16 %v93
    %v684 = vunpack.c.l.b16 %v94
    %v685 = vunpack.c.h.b16 %v94
    %v686 = vunpack.c.l.b16 %v95
    %v687 = vunpack.c.h.b16 %v95
    %v688 = vunpack.c.l.b16 %v96
    %v689 = vunpack.c.h.b16 %v96
    %v690 = vunpack.c.l.b16 %v97
    %v691 = vunpack.c.h.b16 %v97
    %v692 = vunpack.c.l.b16 %v98
    %v693 = vunpack.c.h.b16 %v98
    %v694 = vunpack.c.l.b16 %v99
    %v695 = vunpack.c.h.b16 %v99
    %v696 = vunpack.c.l.b16 %v100
    %v697 = vunpack.c.h.b16 %v100
    %v698 = vunpack.c.l.b16 %v101
    %v699 = vunpack.c.h.b16 %v101
    %v700 = vunpack.c.l.b16 %v102
    %v701 = vunpack.c.h.b16 %v102
    %v702 = vunpack.c.l.b16 %v103
    %v703 = vunpack.c.h.b16 %v103
    %v704 = vunpack.c.l.b16 %v104
    %v705 = vunpack.c.h.b16 %v104
    %v706 = vunpack.c.l.b16 %v105
    %v707 = vunpack.c.h.b16 %v105
    %v708 = vunpack.c.l.b16 %v106
    %v709 = vunpack.c.h.b16 %v106
    %v710 = vunpack.c.l.b16 %v107
    %v711 = vunpack.c.h.b16 %v107
    %v712 = vunpack.c.l.b16 %v108
    %v713 = vunpack.c.h.b16 %v108
    %v714 = vunpack.c.l.b16 %v109
    %v715 = vunpack.c.h.b16 %v109
    %v716 = vunpack.c.l.b16 %v110
    %v717 = vunpack.c.h.b16 %v110
    %v718 = vunpack.c.l.b16 %v111
    %v719 = vunpack.c.h.b16 %v111
    %v720 = vunpack.c.l.b16 %v112
    %v721 = vunpack.c.h.b16 %v112
    %v722 = vunpack.c.l.b16 %v113
    %v723 = vunpack.c.h.b16 %v113
    %v724 = vunpack.c.l.b16 %v114
    %v725 = vunpack.c.h.b16 %v114
    %v726 = vunpack.c.l.b16 %v115
    %v727 = vunpack.c.h.b16 %v115
    %v728 = vunpack.c.l.b16 %v116
    %v729 = vunpack.c.h.b16 %v116
    %v730 = vunpack.c.l.b16 %v117
    %v731 = vunpack.c.h.b16 %v117
    %v732 = vunpack.c.l.b16 %v118
    %v733 = vunpack.c.h.b16 %v118
    %v734 = vunpack.c.l.b16 %v119
    %v735 = vunpack.c.h.b16 %v119
    %v736 = vunpack.c.l.b16 %v120
    %v737 = vunpack.c.h.b16 %v120
    %v738 = vunpack.c.l.b16 %v121
    %v739 = vunpack.c.h.b16 %v121
    %v740 = vunpack.c.l.b16 %v122
    %v741 = vunpack.c.h.b16 %v122
    %v742 = vunpack.c.l.b16 %v123
    %v743 = vunpack.c.h.b16 %v123
    %v744 = vunpack.c.l.b16 %v124
    %v745 = vunpack.c.h.b16 %v124
    %v746 = vunpack.c.l.b16 %v125
    %v747 = vunpack.c.h.b16 %v125
    %v748 = vunpack.c.l.b16 %v126
    %v749 = vunpack.c.h.b16 %v126
    %v750 = vunpack.c.l.b16 %v127
    %v751 = vunpack.c.h.b16 %v127
    %v752 = vunpack.c.l.b16 %v128
    %v753 = vunpack.c.h.b16 %v128
    %v754 = vunpack.c.l.b16 %v129
    %v755 = vunpack.c.h.b16 %v129
    %v756 = vunpack.c.l.b16 %v130
    %v757 = vunpack.c.h.b16 %v130
    %v758 = vunpack.c.l.b16 %v131
    %v759 = vunpack.c.h.b16 %v131
    %v760 = vunpack.c.l.b16 %v132
    %v761 = vunpack.c.h.b16 %v132
    %v762 = vunpack.c.l.b16 %v133
    %v763 = vunpack.c.h.b16 %v133
    %v764 = vunpack.c.l.b16 %v134
    %v765 = vunpack.c.h.b16 %v134
    %v766 = vunpack.c.l.b16 %v135
    %v767 = vunpack.c.h.b16 %v135
    %v768 = vunpack.c.l.b16 %v136
    %v769 = vunpack.c.h.b16 %v136
    %v770 = vunpack.c.l.b16 %v137
    %v771 = vunpack.c.h.b16 %v137
    %v772 = vunpack.c.l.b16 %v138
    %v773 = vunpack.c.h.b16 %v138
    %v774 = vunpack.c.l.b16 %v139
    %v775 = vunpack.c.h.b16 %v139
    %v776 = vunpack.c.l.b16 %v140
    %v777 = vunpack.c.h.b16 %v140
    %v778 = vunpack.c.l.b16 %v141
    %v779 = vunpack.c.h.b16 %v141
    %v780 = vunpack.c.l.b16 %v142
    %v781 = vunpack.c.h.b16 %v142
    %v782 = vunpack.c.l.b16 %v143
    %v783 = vunpack.c.h.b16 %v143
    %v784 = vunpack.c.l.b16 %v144
    %v785 = vunpack.c.h.b16 %v144
    %v786 = vunpack.c.l.b16 %v145
    %v787 = vunpack.c.h.b16 %v145
    %v788 = vunpack.c.l.b16 %v146
    %v789 = vunpack.c.h.b16 %v146
    %v790 = vunpack.c.l.b16 %v147
    %v791 = vunpack.c.h.b16 %v147
    %v792 = vunpack.c.l.b16 %v148
    %v793 = vunpack.c.h.b16 %v148
    %v794 = vunpack.c.l.b16 %v149
    %v795 = vunpack.c.h.b16 %v149
    %v796 = vunpack.c.l.b16 %v150
    %v797 = vunpack.c.h.b16 %v150
    %v798 = vunpack.c.l.b16 %v151
    %v799 = vunpack.c.h.b16 %v151
    %v800 = vunpack.c.l.b16 %v152
    %v801 = vunpack.c.h.b16 %v152
    %v802 = vunpack.c.l.b16 %v153
    %v803 = vunpack.c.h.b16 %v153
    %v804 = vunpack.c.l.b16 %v154
    %v805 = vunpack.c.h.b16 %v154
    %v806 = vunpack.c.l.b16 %v155
    %v807 = vunpack.c.h.b16 %v155
    %v808 = vunpack.c.l.b16 %v156
    %v809 = vunpack.c.h.b16 %v156
    %v810 = vunpack.c.l.b16 %v157
    %v811 = vunpack.c.h.b16 %v157
    %v812 = vunpack.c.l.b16 %v158
    %v813 = vunpack.c.h.b16 %v158
    %v814 = vunpack.c.l.b16 %v159
    %v815 = vunpack.c.h.b16 %v159
    %v816 = vunpack.c.l.b16 %v160
    %v817 = vunpack.c.h.b16 %v160
    %v818 = vunpack.c.l.b16 %v161
    %v819 = vunpack.c.h.b16 %v161
    %v820 = vunpack.c.l.b16 %v162
    %v821 = vunpack.c.h.b16 %v162
    %v822 = vunpack.c.l.b16 %v163
    %v823 = vunpack.c.h.b16 %v163
    %v824 = vunpack.c.l.b16 %v164
    %v825 = vunpack.c.h.b16 %v164
    %v826 = vunpack.c.l.b16 %v165
    %v827 = vunpack.c.h.b16 %v165
    %v828 = vunpack.c.l.b16 %v166
    %v829 = vunpack.c.h.b16 %v166
    %v830 = vunpack.c.l.b16 %v167
    %v831 = vunpack.c.h.b16 %v167
    %v832 = vunpack.c.l.b16 %v168
    %v833 = vunpack.c.h.b16 %v168
    %v834 = vunpack.c.l.b16 %v169
    %v835 = vunpack.c.h.b16 %v169
    %v836 = vunpack.c.l.b16 %v170
    %v837 = vunpack.c.h.b16 %v170
    %v838 = vunpack.c.l.b16 %v171
    %v839 = vunpack.c.h.b16 %v171
    %v840 = vunpack.c.l.b16 %v172
    %v841 = vunpack.c.h.b16 %v172
    %v842 = vunpack.c.l.b16 %v173
    %v843 = vunpack.c.h.b16 %v173
    %v844 = vunpack.c.l.b16 %v174
    %v845 = vunpack.c.h.b16 %v174
    %v846 = vunpack.c.l.b16 %v175
    %v847 = vunpack.c.h.b16 %v175
    %v848 = vunpack.c.l.b16 %v176
    %v849 = vunpack.c.h.b16 %v176
    %v850 = vunpack.c.l.b16 %v177
    %v851 = vunpack.c.h.b16 %v177
    %v852 = vunpack.c.l.b16 %v178
    %v853 = vunpack.c.h.b16 %v178
    %v854 = vunpack.c.l.b16 %v179
    %v855 = vunpack.c.h.b16 %v179
    %v856 = vunpack.c.l.b16 %v180
    %v857 = vunpack.c.h.b16 %v180
    %v858 = vunpack.c.l.b16 %v181
    %v859 = vunpack.c.h.b16 %v181
    %v860 = vunpack.c.l.b16 %v182
    %v861 = vunpack.c.h.b16 %v182
    %v862 = vunpack.c.l.b16 %v183
    %v863 = vunpack.c.h.b16 %v183
    %v864 = vunpack.c.l.b16 %v184
    %v865 = vunpack.c.h.b16 %v184
    %v866 = vunpack.c.l.b16 %v185
    %v867 = vunpack.c.h.b16 %v185
    %v868 = vunpack.c.l.b16 %v186
    %v869 = vunpack.c.h.b16 %v186
    %v870 = vunpack.c.l.b16 %v187
    %v871 = vunpack.c.h.b16 %v187
    %v872 = vunpack.c.l.b16 %v188
    %v873 = vunpack.c.h.b16 %v188
    %v874 = vunpack.c.l.b16 %v189
    %v875 = vunpack.c.h.b16 %v189
    %v876 = vunpack.c.l.b16 %v190
    %v877 = vunpack.c.h.b16 %v190
    %v878 = vunpack.c.l.b16 %v191
    %v879 = vunpack.c.h.b16 %v191
    %v880 = vunpack.c.l.b16 %v192
    %v881 = vunpack.c.h.b16 %v192
    %v882 = vunpack.c.l.b16 %v193
    %v883 = vunpack.c.h.b16 %v193
    %v884 = vunpack.c.l.b16 %v194
    %v885 = vunpack.c.h.b16 %v194
    %v886 = vunpack.c.l.b16 %v195
    %v887 = vunpack.c.h.b16 %v195
    %v888 = vunpack.c.l.b16 %v196
    %v889 = vunpack.c.h.b16 %v196
    %v890 = vunpack.c.l.b16 %v197
    %v891 = vunpack.c.h.b16 %v197
    %v892 = vunpack.c.l.b16 %v198
    %v893 = vunpack.c.h.b16 %v198
    %v894 = vunpack.c.l.b16 %v199
    %v895 = vunpack.c.h.b16 %v199
    %v896 = vunpack.c.l.b16 %v200
    %v897 = vunpack.c.h.b16 %v200
    %v898 = vunpack.c.l.b16 %v201
    %v899 = vunpack.c.h.b16 %v201
    %v900 = vunpack.c.l.b16 %v202
    %v901 = vunpack.c.h.b16 %v202
    %v902 = vunpack.c.l.b16 %v203
    %v903 = vunpack.c.h.b16 %v203
    %v904 = vunpack.c.l.b16 %v204
    %v905 = vunpack.c.h.b16 %v204
    %v906 = vunpack.c.l.b16 %v205
    %v907 = vunpack.c.h.b16 %v205
    %v908 = vunpack.c.l.b16 %v206
    %v909 = vunpack.c.h.b16 %v206
    %v910 = vunpack.c.l.b16 %v207
    %v911 = vunpack.c.h.b16 %v207
    %v912 = vunpack.c.l.b16 %v208
    %v913 = vunpack.c.h.b16 %v208
    %v914 = vunpack.c.l.b16 %v209
    %v915 = vunpack.c.h.b16 %v209
    %v916 = vunpack.c.l.b16 %v210
    %v917 = vunpack.c.h.b16 %v210
    %v918 = vunpack.c.l.b16 %v211
    %v919 = vunpack.c.h.b16 %v211
    %v920 = vunpack.c.l.b16 %v212
    %v921 = vunpack.c.h.b16 %v212
    %v922 = vunpack.c.l.b16 %v213
    %v923 = vunpack.c.h.b16 %v213
    %v924 = vunpack.c.l.b16 %v214
    %v925 = vunpack.c.h.b16 %v214
    %v926 = vunpack.c.l.b16 %v215
    %v927 = vunpack.c.h.b16 %v215
    %v928 = vunpack.c.l.b16 %v216
    %v929 = vunpack.c.h.b16 %v216
    %v930 = vunpack.c.l.b16 %v217
    %v931 = vunpack.c.h.b16 %v217
    %v932 = vunpack.c.l.b16 %v218
    %v933 = vunpack.c.h.b16 %v218
    %v934 = vunpack.c.l.b16 %v219
    %v935 = vunpack.c.h.b16 %v219
    %v936 = vunpack.c.l.b16 %v220
    %v937 = vunpack.c.h.b16 %v220
    %v938 = vunpack.c.l.b16 %v221
    %v939 = vunpack.c.h.b16 %v221
    %v940 = vunpack.c.l.b16 %v222
    %v941 = vunpack.c.h.b16 %v222
    %v942 = vunpack.c.l.b16 %v223
    %v943 = vunpack.c.h.b16 %v223
    %v944 = vunpack.c.l.b16 %v224
    %v945 = vunpack.c.h.b16 %v224
    %v946 = vunpack.c.l.b16 %v225
    %v947 = vunpack.c.h.b16 %v225
    %v948 = vunpack.c.l.b16 %v226
    %v949 = vunpack.c.h.b16 %v226
    %v950 = vunpack.c.l.b16 %v227
    %v951 = vunpack.c.h.b16 %v227
    %v952 = vunpack.c.l.b16 %v228
    %v953 = vunpack.c.h.b16 %v228
    %v954 = vunpack.c.l.b16 %v229
    %v955 = vunpack.c.h.b16 %v229
    %v956 = vunpack.c.l.b16 %v230
    %v957 = vunpack.c.h.b16 %v230
    %v958 = vunpack.c.l.b16 %v231
    %v959 = vunpack.c.h.b16 %v231
    %v960 = vunpack.c.l.b16 %v232
    %v961 = vunpack.c.h.b16 %v232
    %v962 = vunpack.c.l.b16 %v233
    %v963 = vunpack.c.h.b16 %v233
    %v964 = vunpack.c.l.b16 %v234
    %v965 = vunpack.c.h.b16 %v234
    %v966 = vunpack.c.l.b16 %v235
    %v967 = vunpack.c.h.b16 %v235
    %v968 = vunpack.c.l.b16 %v236
    %v969 = vunpack.c.h.b16 %v236
    %v970 = vunpack.c.l.b16 %v237
    %v971 = vunpack.c.h.b16 %v237
    %v972 = vunpack.c.l.b16 %v238
    %v973 = vunpack.c.h.b16 %v238
    %v974 = vunpack.c.l.b16 %v239
    %v975 = vunpack.c.h.b16 %v239
    %v976 = vunpack.c.l.b16 %v240
    %v977 = vunpack.c.h.b16 %v240
    %v978 = vunpack.c.l.b16 %v241
    %v979 = vunpack.c.h.b16 %v241
    %v980 = vunpack.c.l.b16 %v242
    %v981 = vunpack.c.h.b16 %v242
    %v982 = vunpack.c.l.b16 %v243
    %v983 = vunpack.c.h.b16 %v243
    %v984 = vunpack.c.l.b16 %v244
    %v985 = vunpack.c.h.b16 %v244
    %v986 = vunpack.c.l.b16 %v245
    %v987 = vunpack.c.h.b16 %v245
    %v988 = vunpack.c.l.b16 %v246
    %v989 = vunpack.c.h.b16 %v246
    %v990 = vunpack.c.l.b16 %v247
    %v991 = vunpack.c.h.b16 %v247
    %v992 = vunpack.c.l.b16 %v248
    %v993 = vunpack.c.h.b16 %v248
    %v994 = vunpack.c.l.b16 %v249
    %v995 = vunpack.c.h.b16 %v249
    %v996 = vunpack.c.l.b16 %v250
    %v997 = vunpack.c.h.b16 %v250
    %v998 = vunpack.c.l.b16 %v251
    %v999 = vunpack.c.h.b16 %v251
    %v1000 = vunpack.c.l.b16 %v252
    %v1001 = vunpack.c.h.b16 %v252
    %v1002 = vunpack.c.l.b16 %v253
    %v1003 = vunpack.c.h.b16 %v253
    %v1004 = vunpack.c.l.b16 %v254
    %v1005 = vunpack.c.h.b16 %v254
    %v1006 = vunpack.c.l.b16 %v255
    %v1007 = vunpack.c.h.b16 %v255
    %v1008 = vunpack.c.l.b16 %v256
    %v1009 = vunpack.c.h.b16 %v256
    %v1010 = vunpack.c.l.b16 %v257
    %v1011 = vunpack.c.h.b16 %v257
    %v1012 = vunpack.c.l.b16 %v258
    %v1013 = vunpack.c.h.b16 %v258
    %v1014 = vunpack.c.l.b16 %v259
    %v1015 = vunpack.c.h.b16 %v259
    %v1016 = vunpack.c.l.b16 %v260
    %v1017 = vunpack.c.h.b16 %v260
    %v1018 = vunpack.c.l.b16 %v261
    %v1019 = vunpack.c.h.b16 %v261
    %v1020 = vunpack.c.l.b16 %v262
    %v1021 = vunpack.c.h.b16 %v262
    %v1022 = vpack.c.b16 %v634, %v630
    %v1023 = vpack.c.b16 %v635, %v631
    %v1024 = vpack.c.b16 %v636, %v632
    %v1025 = vpack.c.b16 %v637, %v633
    %v1026 = vpack.c.b16 %v642, %v638
    %v1027 = vpack.c.b16 %v643, %v639
    %v1028 = vpack.c.b16 %v644, %v640
    %v1029 = vpack.c.b16 %v645, %v641
    %v1030 = vpack.c.b16 %v650, %v646
    %v1031 = vpack.c.b16 %v651, %v647
    %v1032 = vpack.c.b16 %v652, %v648
    %v1033 = vpack.c.b16 %v653, %v649
    %v1034 = vpack.c.b16 %v658, %v654
    %v1035 = vpack.c.b16 %v659, %v655
    %v1036 = vpack.c.b16 %v660, %v656
    %v1037 = vpack.c.b16 %v661, %v657
    %v1038 = vpack.c.b16 %v666, %v662
    %v1039 = vpack.c.b16 %v667, %v663
    %v1040 = vpack.c.b16 %v668, %v664
    %v1041 = vpack.c.b16 %v669, %v665
    %v1042 = vpack.c.b16 %v674, %v670
    %v1043 = vpack.c.b16 %v675, %v671
    %v1044 = vpack.c.b16 %v676, %v672
    %v1045 = vpack.c.b16 %v677, %v673
    %v1046 = vpack.c.b16 %v682, %v678
    %v1047 = vpack.c.b16 %v683, %v679
    %v1048 = vpack.c.b16 %v684, %v680
    %v1049 = vpack.c.b16 %v685, %v681
    %v1050 = vpack.c.b16 %v690, %v686
    %v1051 = vpack.c.b16 %v691, %v687
    %v1052 = vpack.c.b16 %v692, %v688
    %v1053 = vpack.c.b16 %v693, %v689
    %v1054 = vpack.c.b16 %v698, %v694
    %v1055 = vpack.c.b16 %v699, %v695
    %v1056 = vpack.c.b16 %v700, %v696
    %v1057 = vpack.c.b16 %v701, %v697
    %v1058 = vpack.c.b16 %v706, %v702
    %v1059 = vpack.c.b16 %v707, %v703
    %v1060 = vpack.c.b16 %v708, %v704
    %v1061 = vpack.c.b16 %v709, %v705
    %v1062 = vpack.c.b16 %v714, %v710
    %v1063 = vpack.c.b16 %v715, %v711
    %v1064 = vpack.c.b16 %v716, %v712
    %v1065 = vpack.c.b16 %v717, %v713
    %v1066 = vpack.c.b16 %v722, %v718
    %v1067 = vpack.c.b16 %v723, %v719
    %v1068 = vpack.c.b16 %v724, %v720
    %v1069 = vpack.c.b16 %v725, %v721
    %v1070 = vpack.c.b16 %v730, %v726
    %v1071 = vpack.c.b16 %v731, %v727
    %v1072 = vpack.c.b16 %v732, %v728
    %v1073 = vpack.c.b16 %v733, %v729
    %v1074 = vpack.c.b16 %v738, %v734
    %v1075 = vpack.c.b16 %v739, %v735
    %v1076 = vpack.c.b16 %v740, %v736
    %v1077 = vpack.c.b16 %v741, %v737
    %v1078 = vpack.c.b16 %v746, %v742
    %v1079 = vpack.c.b16 %v747, %v743
    %v1080 = vpack.c.b16 %v748, %v744
    %v1081 = vpack.c.b16 %v749, %v745
    %v1082 = vpack.c.b16 %v754, %v750
    %v1083 = vpack.c.b16 %v755, %v751
    %v1084 = vpack.c.b16 %v756, %v752
    %v1085 = vpack.c.b16 %v757, %v753
    %v1086 = vpack.c.b16 %v762, %v758
    %v1087 = vpack.c.b16 %v763, %v759
    %v1088 = vpack.c.b16 %v764, %v760
    %v1089 = vpack.c.b16 %v765, %v761
    %v1090 = vpack.c.b16 %v770, %v766
    %v1091 = vpack.c.b16 %v771, %v767
    %v1092 = vpack.c.b16 %v772, %v768
    %v1093 = vpack.c.b16 %v773, %v769
    %v1094 = vpack.c.b16 %v778, %v774
    %v1095 = vpack.c.b16 %v779, %v775
    %v1096 = vpack.c.b16 %v780, %v776
    %v1097 = vpack.c.b16 %v781, %v777
    %v1098 = vpack.c.b16 %v786, %v782
    %v1099 = vpack.c.b16 %v787, %v783
    %v1100 = vpack.c.b16 %v788, %v784
    %v1101 = vpack.c.b16 %v789, %v785
    %v1102 = vpack.c.b16 %v794, %v790
    %v1103 = vpack.c.b16 %v795, %v791
    %v1104 = vpack.c.b16 %v796, %v792
    %v1105 = vpack.c.b16 %v797, %v793
    %v1106 = vpack.c.b16 %v802, %v798
    %v1107 = vpack.c.b16 %v803, %v799
    %v1108 = vpack.c.b16 %v804, %v800
    %v1109 = vpack.c.b16 %v805, %v801
    %v1110 = vpack.c.b16 %v810, %v806
    %v1111 = vpack.c.b16 %v811, %v807
    %v1112 = vpack.c.b16 %v812, %v808
    %v1113 = vpack.c.b16 %v813, %v809
    %v1114 = vpack.c.b16 %v818, %v814
    %v1115 = vpack.c.b16 %v819, %v815
    %v1116 = vpack.c.b16 %v820, %v816
    %v1117 = vpack.c.b16 %v821, %v817
    %v1118 = vpack.c.b16 %v826, %v822
    %v1119 = vpack.c.b16 %v827, %v823
    %v1120 = vpack.c.b16 %v828, %v824
    %v1121 = vpack.c.b16 %v829, %v825
    %v1122 = vpack.c.b16 %v834, %v830
    %v1123 = vpack.c.b16 %v835, %v831
    %v1124 = vpack.c.b16 %v836, %v832
    %v1125 = vpack.c.b16 %v837, %v833
    %v1126 = vpack.c.b16 %v842, %v838
    %v1127 = vpack.c.b16 %v843, %v839
    %v1128 = vpack.c.b16 %v844, %v840
    %v1129 = vpack.c.b16 %v845, %v841
    %v1130 = vpack.c.b16 %v850, %v846
    %v1131 = vpack.c.b16 %v851, %v847
    %v1132 = vpack.c.b16 %v852, %v848
    %v1133 = vpack.c.b16 %v853, %v849
    %v1134 = vpack.c.b16 %v858, %v854
    %v1135 = vpack.c.b16 %v859, %v855
    %v1136 = vpack.c.b16 %v860, %v856
    %v1137 = vpack.c.b16 %v861, %v857
    %v1138 = vpack.c.b16 %v866, %v862
    %v1139 = vpack.c.b16 %v867, %v863
    %v1140 = vpack.c.b16 %v868, %v864
    %v1141 = vpack.c.b16 %v869, %v865
    %v1142 = vpack.c.b16 %v874, %v870
    %v1143 = vpack.c.b16 %v875, %v871
    %v1144 = vpack.c.b16 %v876, %v872
    %v1145 = vpack.c.b16 %v877, %v873
    %v1146 = vpack.c.b16 %v882, %v878
    %v1147 = vpack.c.b16 %v883, %v879
    %v1148 = vpack.c.b16 %v884, %v880
    %v1149 = vpack.c.b16 %v885, %v881
    %v1150 = vpack.c.b16 %v890, %v886
    %v1151 = vpack.c.b16 %v891, %v887
    %v1152 = vpack.c.b16 %v892, %v888
    %v1153 = vpack.c.b16 %v893, %v889
    %v1154 = vpack.c.b16 %v898, %v894
    %v1155 = vpack.c.b16 %v899, %v895
    %v1156 = vpack.c.b16 %v900, %v896
    %v1157 = vpack.c.b16 %v901, %v897
    %v1158 = vpack.c.b16 %v906, %v902
    %v1159 = vpack.c.b16 %v907, %v903
    %v1160 = vpack.c.b16 %v908, %v904
    %v1161 = vpack.c.b16 %v909, %v905
    %v1162 = vpack.c.b16 %v914, %v910
    %v1163 = vpack.c.b16 %v915, %v911
    %v1164 = vpack.c.b16 %v916, %v912
    %v1165 = vpack.c.b16 %v917, %v913
    %v1166 = vpack.c.b16 %v922, %v918
    %v1167 = vpack.c.b16 %v923, %v919
    %v1168 = vpack.c.b16 %v924, %v920
    %v1169 = vpack.c.b16 %v925, %v921
    %v1170 = vpack.c.b16 %v930, %v926
    %v1171 = vpack.c.b16 %v931, %v927
    %v1172 = vpack.c.b16 %v932, %v928
    %v1173 = vpack.c.b16 %v933, %v929
    %v1174 = vpack.c.b16 %v938, %v934
    %v1175 = vpack.c.b16 %v939, %v935
    %v1176 = vpack.c.b16 %v940, %v936
    %v1177 = vpack.c.b16 %v941, %v937
    %v1178 = vpack.c.b16 %v946, %v942
    %v1179 = vpack.c.b16 %v947, %v943
    %v1180 = vpack.c.b16 %v948, %v944
    %v1181 = vpack.c.b16 %v949, %v945
    %v1182 = vpack.c.b16 %v954, %v950
    %v1183 = vpack.c.b16 %v955, %v951
    %v1184 = vpack.c.b16 %v956, %v952
    %v1185 = vpack.c.b16 %v957, %v953
    %v1186 = vpack.c.b16 %v962, %v958
    %v1187 = vpack.c.b16 %v963, %v959
    %v1188 = vpack.c.b16 %v964, %v960
    %v1189 = vpack.c.b16 %v965, %v961
    %v1190 = vpack.c.b16 %v970, %v966
    %v1191 = vpack.c.b16 %v971, %v967
    %v1192 = vpack.c.b16 %v972, %v968
    %v1193 = vpack.c.b16 %v973, %v969
    %v1194 = vpack.c.b16 %v978, %v974
    %v1195 = vpack.c.b16 %v979, %v975
    %v1196 = vpack.c.b16 %v980, %v976
    %v1197 = vpack.c.b16 %v981, %v977
    %v1198 = vpack.c.b16 %v986, %v982
    %v1199 = vpack.c.b16 %v987, %v983
    %v1200 = vpack.c.b16 %v988, %v984
    %v1201 = vpack.c.b16 %v989, %v985
    %v1202 = vpack.c.b16 %v994, %v990
    %v1203 = vpack.c.b16 %v995, %v991
    %v1204 = vpack.c.b16 %v996, %v992
    %v1205 = vpack.c.b16 %v997, %v993
    %v1206 = vpack.c.b16 %v1002, %v998
    %v1207 = vpack.c.b16 %v1003, %v999
    %v1208 = vpack.c.b16 %v1004, %v1000
    %v1209 = vpack.c.b16 %v1005, %v1001
    %v1210 = vpack.c.b16 %v1010, %v1006
    %v1211 = vpack.c.b16 %v1011, %v1007
    %v1212 = vpack.c.b16 %v1012, %v1008
    %v1213 = vpack.c.b16 %v1013, %v1009
    %v1214 = vpack.c.b16 %v1018, %v1014
    %v1215 = vpack.c.b16 %v1019, %v1015
    %v1216 = vpack.c.b16 %v1020, %v1016
    %v1217 = vpack.c.b16 %v1021, %v1017
    %vm1414 = vcmask 130048
    %v1416 = vsel %vm1414, %v424, 0
    %1418 = vmatprep.subr.bf16.mxu0 %v1023
    %1419 = vmatpush1.bf16.msra.mxu0 %v1022
    %1420 = vmatprep.subr.bf16.mxu0 %v1027
    %1421 = vmatpush1.bf16.msra.mxu0 %v1026
    %1422 = vmatprep.subr.bf16.mxu0 %v1031
    %1423 = vmatpush1.bf16.msra.mxu0 %v1030
    %1424 = vmatprep.subr.bf16.mxu0 %v1035
    %1425 = vmatpush1.bf16.msra.mxu0 %v1034
    %1426 = vmatprep.subr.bf16.mxu0 %v1039
    %1427 = vmatpush1.bf16.msra.mxu0 %v1038
    %1428 = vmatprep.subr.bf16.mxu0 %v1043
    %1429 = vmatpush1.bf16.msra.mxu0 %v1042
    %1430 = vmatprep.subr.bf16.mxu0 %v1047
    %1431 = vmatpush1.bf16.msra.mxu0 %v1046
    %1432 = vmatprep.subr.bf16.mxu0 %v1051
    %1433 = vmatpush1.bf16.msra.mxu0 %v1050
    %1434 = vmatprep.subr.bf16.mxu0 %v1055
    %1435 = vmatpush1.bf16.msra.mxu0 %v1054
    %1436 = vmatprep.subr.bf16.mxu0 %v1059
    %1437 = vmatpush1.bf16.msra.mxu0 %v1058
    %1438 = vmatprep.subr.bf16.mxu0 %v1063
    %1439 = vmatpush1.bf16.msra.mxu0 %v1062
    %1440 = vmatprep.subr.bf16.mxu0 %v1067
    %1441 = vmatpush1.bf16.msra.mxu0 %v1066
    %1442 = vmatprep.subr.bf16.mxu0 %v1071
    %1443 = vmatpush1.bf16.msra.mxu0 %v1070
    %1444 = vmatprep.subr.bf16.mxu0 %v1075
    %1445 = vmatpush1.bf16.msra.mxu0 %v1074
    %1446 = vmatprep.subr.bf16.mxu0 %v1079
    %1447 = vmatpush1.bf16.msra.mxu0 %v1078
    %1448 = vmatprep.subr.bf16.mxu0 %v1083
    %1449 = vmatpush1.bf16.msra.mxu0 %v1082
    %1450 = vmatprep.mubr.bf16.mxu0 %v425
    %1451 = vmatmul.mubr.bf16.gmra.mrb[0].mxu0 %v421
    %v1452 = vpop.f32.mrb[0].mxu0
    %v1453 = vadd.f32 %v268, %v1452
    %v1454 = vpop.f32.mrb[0].mxu0
    %v1455 = vadd.f32 %v272, %v1454
    %v1456 = vpop.f32.mrb[0].mxu0
    %v1457 = vadd.f32 %v268, %v1456
    %v1458 = vpop.f32.mrb[0].mxu0
    %v1459 = vadd.f32 %v272, %v1458
    %1460 = vdwg.mxu0
    %1461 = vmatprep.subr.bf16.mxu0 %v1087
    %1462 = vmatpush1.bf16.msra.mxu0 %v1086
    %1463 = vmatprep.subr.bf16.mxu0 %v1091
    %1464 = vmatpush1.bf16.msra.mxu0 %v1090
    %1465 = vmatprep.subr.bf16.mxu0 %v1095
    %1466 = vmatpush1.bf16.msra.mxu0 %v1094
    %1467 = vmatprep.subr.bf16.mxu0 %v1099
    %1468 = vmatpush1.bf16.msra.mxu0 %v1098
    %1469 = vmatprep.subr.bf16.mxu0 %v1103
    %1470 = vmatpush1.bf16.msra.mxu0 %v1102
    %1471 = vmatprep.subr.bf16.mxu0 %v1107
    %1472 = vmatpush1.bf16.msra.mxu0 %v1106
    %1473 = vmatprep.subr.bf16.mxu0 %v1111
    %1474 = vmatpush1.bf16.msra.mxu0 %v1110
    %1475 = vmatprep.subr.bf16.mxu0 %v1115
    %1476 = vmatpush1.bf16.msra.mxu0 %v1114
    %1477 = vmatprep.subr.bf16.mxu0 %v1119
    %1478 = vmatpush1.bf16.msra.mxu0 %v1118
    %1479 = vmatprep.subr.bf16.mxu0 %v1123
    %1480 = vmatpush1.bf16.msra.mxu0 %v1122
    %1481 = vmatprep.subr.bf16.mxu0 %v1127
    %1482 = vmatpush1.bf16.msra.mxu0 %v1126
    %1483 = vmatprep.subr.bf16.mxu0 %v1131
    %1484 = vmatpush1.bf16.msra.mxu0 %v1130
    %1485 = vmatprep.subr.bf16.mxu0 %v1135
    %1486 = vmatpush1.bf16.msra.mxu0 %v1134
    %1487 = vmatprep.subr.bf16.mxu0 %v1139
    %1488 = vmatpush1.bf16.msra.mxu0 %v1138
    %1489 = vmatprep.subr.bf16.mxu0 %v1143
    %1490 = vmatpush1.bf16.msra.mxu0 %v1142
    %1491 = vmatprep.subr.bf16.mxu0 %v1147
    %1492 = vmatpush1.bf16.msra.mxu0 %v1146
    %1493 = vmatprep.mubr.bf16.mxu0 %v426
    %1494 = vmatmul.mubr.bf16.gmra.mrb[0].mxu0 %v422
    %v1495 = vpop.f32.mrb[0].mxu0
    %v1496 = vadd.f32 %v1453, %v1495
    %v1497 = vpop.f32.mrb[0].mxu0
    %v1498 = vadd.f32 %v1455, %v1497
    %v1499 = vpop.f32.mrb[0].mxu0
    %v1500 = vadd.f32 %v1457, %v1499
    %v1501 = vpop.f32.mrb[0].mxu0
    %v1502 = vadd.f32 %v1459, %v1501
    %1503 = vdwg.mxu0
    %1504 = vmatprep.subr.bf16.mxu0 %v1151
    %1505 = vmatpush1.bf16.msra.mxu0 %v1150
    %1506 = vmatprep.subr.bf16.mxu0 %v1155
    %1507 = vmatpush1.bf16.msra.mxu0 %v1154
    %1508 = vmatprep.subr.bf16.mxu0 %v1159
    %1509 = vmatpush1.bf16.msra.mxu0 %v1158
    %1510 = vmatprep.subr.bf16.mxu0 %v1163
    %1511 = vmatpush1.bf16.msra.mxu0 %v1162
    %1512 = vmatprep.subr.bf16.mxu0 %v1167
    %1513 = vmatpush1.bf16.msra.mxu0 %v1166
    %1514 = vmatprep.subr.bf16.mxu0 %v1171
    %1515 = vmatpush1.bf16.msra.mxu0 %v1170
    %1516 = vmatprep.subr.bf16.mxu0 %v1175
    %1517 = vmatpush1.bf16.msra.mxu0 %v1174
    %1518 = vmatprep.subr.bf16.mxu0 %v1179
    %1519 = vmatpush1.bf16.msra.mxu0 %v1178
    %1520 = vmatprep.subr.bf16.mxu0 %v1183
    %1521 = vmatpush1.bf16.msra.mxu0 %v1182
    %1522 = vmatprep.subr.bf16.mxu0 %v1187
    %1523 = vmatpush1.bf16.msra.mxu0 %v1186
    %1524 = vmatprep.subr.bf16.mxu0 %v1191
    %1525 = vmatpush1.bf16.msra.mxu0 %v1190
    %1526 = vmatprep.subr.bf16.mxu0 %v1195
    %1527 = vmatpush1.bf16.msra.mxu0 %v1194
    %1528 = vmatprep.subr.bf16.mxu0 %v1199
    %1529 = vmatpush1.bf16.msra.mxu0 %v1198
    %1530 = vmatprep.subr.bf16.mxu0 %v1203
    %1531 = vmatpush1.bf16.msra.mxu0 %v1202
    %1532 = vmatprep.subr.bf16.mxu0 %v1207
    %1533 = vmatpush1.bf16.msra.mxu0 %v1206
    %1534 = vmatprep.subr.bf16.mxu0 %v1211
    %1535 = vmatpush1.bf16.msra.mxu0 %v1210
    %1536 = vmatprep.mubr.bf16.mxu0 %v427
    %1537 = vmatmul.mubr.bf16.gmra.mrb[0].mxu0 %v423
    %v1538 = vpop.f32.mrb[0].mxu0
    %v1539 = vadd.f32 %v1496, %v1538
    %v1540 = vpop.f32.mrb[0].mxu0
    %v1541 = vadd.f32 %v1498, %v1540
    %v1542 = vpop.f32.mrb[0].mxu0
    %v1543 = vadd.f32 %v1500, %v1542
    %v1544 = vpop.f32.mrb[0].mxu0
    %v1545 = vadd.f32 %v1502, %v1544
    %1546 = vdwg.mxu0
    %1547 = vmatprep.subr.bf16.mxu0 %v1215
    %1548 = vmatpush1.bf16.msra.mxu0 %v1214
    %1549 = vmatprep.subr.bf16.mxu0 0
    %1550 = vmatpush1.bf16.msra.mxu0 0
    %1551 = vmatprep.subr.bf16.mxu0 0
    %1552 = vmatpush1.bf16.msra.mxu0 0
    %1553 = vmatprep.subr.bf16.mxu0 0
    %1554 = vmatpush1.bf16.msra.mxu0 0
    %1555 = vmatprep.subr.bf16.mxu0 0
    %1556 = vmatpush1.bf16.msra.mxu0 0
    %1557 = vmatprep.subr.bf16.mxu0 0
    %1558 = vmatpush1.bf16.msra.mxu0 0
    %1559 = vmatprep.subr.bf16.mxu0 0
    %1560 = vmatpush1.bf16.msra.mxu0 0
    %1561 = vmatprep.subr.bf16.mxu0 0
    %1562 = vmatpush1.bf16.msra.mxu0 0
    %1563 = vmatprep.subr.bf16.mxu0 0
    %1564 = vmatpush1.bf16.msra.mxu0 0
    %1565 = vmatprep.subr.bf16.mxu0 0
    %1566 = vmatpush1.bf16.msra.mxu0 0
    %1567 = vmatprep.subr.bf16.mxu0 0
    %1568 = vmatpush1.bf16.msra.mxu0 0
    %1569 = vmatprep.subr.bf16.mxu0 0
    %1570 = vmatpush1.bf16.msra.mxu0 0
    %1571 = vmatprep.subr.bf16.mxu0 0
    %1572 = vmatpush1.bf16.msra.mxu0 0
    %1573 = vmatprep.subr.bf16.mxu0 0
    %1574 = vmatpush1.bf16.msra.mxu0 0
    %1575 = vmatprep.subr.bf16.mxu0 0
    %1576 = vmatpush1.bf16.msra.mxu0 0
    %1577 = vmatprep.subr.bf16.mxu0 0
    %1578 = vmatpush1.bf16.msra.mxu0 0
    %1579 = vmatprep.mubr.bf16.mxu0 0
    %1580 = vmatmul.mubr.bf16.gmra.mrb[0].mxu0 %v1416
    %v1581 = vpop.f32.mrb[0].mxu0
    %v1582 = vadd.f32 %v1539, %v1581
    %v1583 = vpop.f32.mrb[0].mxu0
    %v1584 = vadd.f32 %v1541, %v1583
    %v1585 = vpop.f32.mrb[0].mxu0
    %v1586 = vadd.f32 %v1543, %v1585
    %v1587 = vpop.f32.mrb[0].mxu0
    %v1588 = vadd.f32 %v1545, %v1587
    %1589 = vdwg.mxu0
    %1590 = vmatprep.subr.bf16.mxu0 %v1025
    %1591 = vmatpush1.bf16.msra.mxu0 %v1024
    %1592 = vmatprep.subr.bf16.mxu0 %v1029
    %1593 = vmatpush1.bf16.msra.mxu0 %v1028
    %1594 = vmatprep.subr.bf16.mxu0 %v1033
    %1595 = vmatpush1.bf16.msra.mxu0 %v1032
    %1596 = vmatprep.subr.bf16.mxu0 %v1037
    %1597 = vmatpush1.bf16.msra.mxu0 %v1036
    %1598 = vmatprep.subr.bf16.mxu0 %v1041
    %1599 = vmatpush1.bf16.msra.mxu0 %v1040
    %1600 = vmatprep.subr.bf16.mxu0 %v1045
    %1601 = vmatpush1.bf16.msra.mxu0 %v1044
    %1602 = vmatprep.subr.bf16.mxu0 %v1049
    %1603 = vmatpush1.bf16.msra.mxu0 %v1048
    %1604 = vmatprep.subr.bf16.mxu0 %v1053
    %1605 = vmatpush1.bf16.msra.mxu0 %v1052
    %1606 = vmatprep.subr.bf16.mxu0 %v1057
    %1607 = vmatpush1.bf16.msra.mxu0 %v1056
    %1608 = vmatprep.subr.bf16.mxu0 %v1061
    %1609 = vmatpush1.bf16.msra.mxu0 %v1060
    %1610 = vmatprep.subr.bf16.mxu0 %v1065
    %1611 = vmatpush1.bf16.msra.mxu0 %v1064
    %1612 = vmatprep.subr.bf16.mxu0 %v1069
    %1613 = vmatpush1.bf16.msra.mxu0 %v1068
    %1614 = vmatprep.subr.bf16.mxu0 %v1073
    %1615 = vmatpush1.bf16.msra.mxu0 %v1072
    %1616 = vmatprep.subr.bf16.mxu0 %v1077
    %1617 = vmatpush1.bf16.msra.mxu0 %v1076
    %1618 = vmatprep.subr.bf16.mxu0 %v1081
    %1619 = vmatpush1.bf16.msra.mxu0 %v1080
    %1620 = vmatprep.subr.bf16.mxu0 %v1085
    %1621 = vmatpush1.bf16.msra.mxu0 %v1084
    %1622 = vmatprep.mubr.bf16.mxu0 %v425
    %1623 = vmatmul.mubr.bf16.gmra.mrb[0].mxu0 %v421
    %v1624 = vpop.f32.mrb[0].mxu0
    %v1625 = vadd.f32 %v276, %v1624
    %v1626 = vpop.f32.mrb[0].mxu0
    %v1627 = vadd.f32 %v280, %v1626
    %v1628 = vpop.f32.mrb[0].mxu0
    %v1629 = vadd.f32 %v276, %v1628
    %v1630 = vpop.f32.mrb[0].mxu0
    %v1631 = vadd.f32 %v280, %v1630
    %1632 = vdwg.mxu0
    %1633 = vmatprep.subr.bf16.mxu0 %v1089
    %1634 = vmatpush1.bf16.msra.mxu0 %v1088
    %1635 = vmatprep.subr.bf16.mxu0 %v1093
    %1636 = vmatpush1.bf16.msra.mxu0 %v1092
    %1637 = vmatprep.subr.bf16.mxu0 %v1097
    %1638 = vmatpush1.bf16.msra.mxu0 %v1096
    %1639 = vmatprep.subr.bf16.mxu0 %v1101
    %1640 = vmatpush1.bf16.msra.mxu0 %v1100
    %1641 = vmatprep.subr.bf16.mxu0 %v1105
    %1642 = vmatpush1.bf16.msra.mxu0 %v1104
    %1643 = vmatprep.subr.bf16.mxu0 %v1109
    %1644 = vmatpush1.bf16.msra.mxu0 %v1108
    %1645 = vmatprep.subr.bf16.mxu0 %v1113
    %1646 = vmatpush1.bf16.msra.mxu0 %v1112
    %1647 = vmatprep.subr.bf16.mxu0 %v1117
    %1648 = vmatpush1.bf16.msra.mxu0 %v1116
    %1649 = vmatprep.subr.bf16.mxu0 %v1121
    %1650 = vmatpush1.bf16.msra.mxu0 %v1120
    %1651 = vmatprep.subr.bf16.mxu0 %v1125
    %1652 = vmatpush1.bf16.msra.mxu0 %v1124
    %1653 = vmatprep.subr.bf16.mxu0 %v1129
    %1654 = vmatpush1.bf16.msra.mxu0 %v1128
    %1655 = vmatprep.subr.bf16.mxu0 %v1133
    %1656 = vmatpush1.bf16.msra.mxu0 %v1132
    %1657 = vmatprep.subr.bf16.mxu0 %v1137
    %1658 = vmatpush1.bf16.msra.mxu0 %v1136
    %1659 = vmatprep.subr.bf16.mxu0 %v1141
    %1660 = vmatpush1.bf16.msra.mxu0 %v1140
    %1661 = vmatprep.subr.bf16.mxu0 %v1145
    %1662 = vmatpush1.bf16.msra.mxu0 %v1144
    %1663 = vmatprep.subr.bf16.mxu0 %v1149
    %1664 = vmatpush1.bf16.msra.mxu0 %v1148
    %1665 = vmatprep.mubr.bf16.mxu0 %v426
    %1666 = vmatmul.mubr.bf16.gmra.mrb[0].mxu0 %v422
    %v1667 = vpop.f32.mrb[0].mxu0
    %v1668 = vadd.f32 %v1625, %v1667
    %v1669 = vpop.f32.mrb[0].mxu0
    %v1670 = vadd.f32 %v1627, %v1669
    %v1671 = vpop.f32.mrb[0].mxu0
    %v1672 = vadd.f32 %v1629, %v1671
    %v1673 = vpop.f32.mrb[0].mxu0
    %v1674 = vadd.f32 %v1631, %v1673
    %1675 = vdwg.mxu0
    %1676 = vmatprep.subr.bf16.mxu0 %v1153
    %1677 = vmatpush1.bf16.msra.mxu0 %v1152
    %1678 = vmatprep.subr.bf16.mxu0 %v1157
    %1679 = vmatpush1.bf16.msra.mxu0 %v1156
    %1680 = vmatprep.subr.bf16.mxu0 %v1161
    %1681 = vmatpush1.bf16.msra.mxu0 %v1160
    %1682 = vmatprep.subr.bf16.mxu0 %v1165
    %1683 = vmatpush1.bf16.msra.mxu0 %v1164
    %1684 = vmatprep.subr.bf16.mxu0 %v1169
    %1685 = vmatpush1.bf16.msra.mxu0 %v1168
    %1686 = vmatprep.subr.bf16.mxu0 %v1173
    %1687 = vmatpush1.bf16.msra.mxu0 %v1172
    %1688 = vmatprep.subr.bf16.mxu0 %v1177
    %1689 = vmatpush1.bf16.msra.mxu0 %v1176
    %1690 = vmatprep.subr.bf16.mxu0 %v1181
    %1691 = vmatpush1.bf16.msra.mxu0 %v1180
    %1692 = vmatprep.subr.bf16.mxu0 %v1185
    %1693 = vmatpush1.bf16.msra.mxu0 %v1184
    %1694 = vmatprep.subr.bf16.mxu0 %v1189
    %1695 = vmatpush1.bf16.msra.mxu0 %v1188
    %1696 = vmatprep.subr.bf16.mxu0 %v1193
    %1697 = vmatpush1.bf16.msra.mxu0 %v1192
    %1698 = vmatprep.subr.bf16.mxu0 %v1197
    %1699 = vmatpush1.bf16.msra.mxu0 %v1196
    %1700 = vmatprep.subr.bf16.mxu0 %v1201
    %1701 = vmatpush1.bf16.msra.mxu0 %v1200
    %1702 = vmatprep.subr.bf16.mxu0 %v1205
    %1703 = vmatpush1.bf16.msra.mxu0 %v1204
    %1704 = vmatprep.subr.bf16.mxu0 %v1209
    %1705 = vmatpush1.bf16.msra.mxu0 %v1208
    %1706 = vmatprep.subr.bf16.mxu0 %v1213
    %1707 = vmatpush1.bf16.msra.mxu0 %v1212
    %1708 = vmatprep.mubr.bf16.mxu0 %v427
    %1709 = vmatmul.mubr.bf16.gmra.mrb[0].mxu0 %v423
    %v1710 = vpop.f32.mrb[0].mxu0
    %v1711 = vadd.f32 %v1668, %v1710
    %v1712 = vpop.f32.mrb[0].mxu0
    %v1713 = vadd.f32 %v1670, %v1712
    %v1714 = vpop.f32.mrb[0].mxu0
    %v1715 = vadd.f32 %v1672, %v1714
    %v1716 = vpop.f32.mrb[0].mxu0
    %v1717 = vadd.f32 %v1674, %v1716
    %1718 = vdwg.mxu0
    %1719 = vmatprep.subr.bf16.mxu0 %v1217
    %1720 = vmatpush1.bf16.msra.mxu0 %v1216
    %1721 = vmatprep.subr.bf16.mxu0 0
    %1722 = vmatpush1.bf16.msra.mxu0 0
    %1723 = vmatprep.subr.bf16.mxu0 0
    %1724 = vmatpush1.bf16.msra.mxu0 0
    %1725 = vmatprep.subr.bf16.mxu0 0
    %1726 = vmatpush1.bf16.msra.mxu0 0
    %1727 = vmatprep.subr.bf16.mxu0 0
    %1728 = vmatpush1.bf16.msra.mxu0 0
    %1729 = vmatprep.subr.bf16.mxu0 0
    %1730 = vmatpush1.bf16.msra.mxu0 0
    %1731 = vmatprep.subr.bf16.mxu0 0
    %1732 = vmatpush1.bf16.msra.mxu0 0
    %1733 = vmatprep.subr.bf16.mxu0 0
    %1734 = vmatpush1.bf16.msra.mxu0 0
    %1735 = vmatprep.subr.bf16.mxu0 0
    %1736 = vmatpush1.bf16.msra.mxu0 0
    %1737 = vmatprep.subr.bf16.mxu0 0
    %1738 = vmatpush1.bf16.msra.mxu0 0
    %1739 = vmatprep.subr.bf16.mxu0 0
    %1740 = vmatpush1.bf16.msra.mxu0 0
    %1741 = vmatprep.subr.bf16.mxu0 0
    %1742 = vmatpush1.bf16.msra.mxu0 0
    %1743 = vmatprep.subr.bf16.mxu0 0
    %1744 = vmatpush1.bf16.msra.mxu0 0
    %1745 = vmatprep.subr.bf16.mxu0 0
    %1746 = vmatpush1.bf16.msra.mxu0 0
    %1747 = vmatprep.subr.bf16.mxu0 0
    %1748 = vmatpush1.bf16.msra.mxu0 0
    %1749 = vmatprep.subr.bf16.mxu0 0
    %1750 = vmatpush1.bf16.msra.mxu0 0
    %1751 = vmatprep.mubr.bf16.mxu0 0
    %1752 = vmatmul.mubr.bf16.gmra.mrb[0].mxu0 %v1416
    %v1753 = vpop.f32.mrb[0].mxu0
    %v1754 = vadd.f32 %v1711, %v1753
    %v1755 = vpop.f32.mrb[0].mxu0
    %v1756 = vadd.f32 %v1713, %v1755
    %v1757 = vpop.f32.mrb[0].mxu0
    %v1758 = vadd.f32 %v1715, %v1757
    %v1759 = vpop.f32.mrb[0].mxu0
    %v1760 = vadd.f32 %v1717, %v1759
    %1761 = vdwg.mxu0
    %v1762 = vmax.f32 %v1582, 0.0
    %v1763 = vmax.f32 %v1584, 0.0
    %v1764 = vmax.f32 %v1754, 0.0
    %v1765 = vmax.f32 %v1756, 0.0
    %v1766 = vmax.f32 %v1586, 0.0
    %v1767 = vmax.f32 %v1588, 0.0
    %v1768 = vmax.f32 %v1758, 0.0
    %v1769 = vmax.f32 %v1760, 0.0
    %v1770 = vpack.c.bf16 %v1766, %v1762
    %v1771 = vpack.c.bf16 %v1767, %v1763
    %v1772 = vpack.c.bf16 %v1768, %v1764
    %v1773 = vpack.c.bf16 %v1769, %v1765
    %v1774 = vld [vmem:[%s6] sm:$0xff]
    %v1775 = vld [vmem:[%s6 + $0x8] sm:$0xff]
    %v1776 = vld [vmem:[%s6 + $0x10] sm:$0xff]
    %v1777 = vld [vmem:[%s6 + $0x18] sm:$0xff]
    %v1778 = vld [vmem:[%s6 + $0x20] sm:$0xff]
    %v1779 = vld [vmem:[%s6 + $0x28] sm:$0xff]
    %v1780 = vld [vmem:[%s6 + $0x30] sm:$0xff]
    %v1781 = vld [vmem:[%s6 + $0x38] sm:$0xff]
    %v1782 = vld [vmem:[%s6 + $0x40] sm:$0xff]
    %v1783 = vld [vmem:[%s6 + $0x48] sm:$0xff]
    %v1784 = vld [vmem:[%s6 + $0x50] sm:$0xff]
    %v1785 = vld [vmem:[%s6 + $0x58] sm:$0xff]
    %v1786 = vld [vmem:[%s6 + $0x60] sm:$0xff]
    %v1787 = vld [vmem:[%s6 + $0x68] sm:$0xff]
    %v1788 = vld [vmem:[%s6 + $0x70] sm:$0xff]
    %v1789 = vld [vmem:[%s6 + $0x78] sm:$0xff]
    %v1790 = vld [vmem:[%s6 + $0x80] sm:$0xff]
    %v1791 = vld [vmem:[%s6 + $0x88] sm:$0xff]
    %v1792 = vld [vmem:[%s6 + $0x90] sm:$0xff]
    %v1793 = vld [vmem:[%s6 + $0x98] sm:$0xff]
    %v1794 = vld [vmem:[%s6 + $0xa0] sm:$0xff]
    %v1795 = vld [vmem:[%s6 + $0xa8] sm:$0xff]
    %v1796 = vld [vmem:[%s6 + $0xb0] sm:$0xff]
    %v1797 = vld [vmem:[%s6 + $0xb8] sm:$0xff]
    %v1798 = vld [vmem:[%s6 + $0xc0] sm:$0xff]
    %v1799 = vld [vmem:[%s6 + $0xc8] sm:$0xff]
    %v1800 = vld [vmem:[%s6 + $0xd0] sm:$0xff]
    %v1801 = vld [vmem:[%s6 + $0xd8] sm:$0xff]
    %v1802 = vld [vmem:[%s6 + $0xe0] sm:$0xff]
    %v1803 = vld [vmem:[%s6 + $0xe8] sm:$0xff]
    %v1804 = vld [vmem:[%s6 + $0xf0] sm:$0xff]
    %v1805 = vld [vmem:[%s6 + $0xf8] sm:$0xff]
    %v1806 = vld [vmem:[%s6 + $0x100] sm:$0xff]
    %v1807 = vld [vmem:[%s6 + $0x108] sm:$0xff]
    %v1808 = vld [vmem:[%s6 + $0x110] sm:$0xff]
    %v1809 = vld [vmem:[%s6 + $0x118] sm:$0xff]
    %v1810 = vld [vmem:[%s6 + $0x120] sm:$0xff]
    %v1811 = vld [vmem:[%s6 + $0x128] sm:$0xff]
    %v1812 = vld [vmem:[%s6 + $0x130] sm:$0xff]
    %v1813 = vld [vmem:[%s6 + $0x138] sm:$0xff]
    %v1814 = vld [vmem:[%s6 + $0x140] sm:$0xff]
    %v1815 = vld [vmem:[%s6 + $0x148] sm:$0xff]
    %v1816 = vld [vmem:[%s6 + $0x150] sm:$0xff]
    %v1817 = vld [vmem:[%s6 + $0x158] sm:$0xff]
    %v1818 = vld [vmem:[%s6 + $0x160] sm:$0xff]
    %v1819 = vld [vmem:[%s6 + $0x168] sm:$0xff]
    %v1820 = vld [vmem:[%s6 + $0x170] sm:$0xff]
    %v1821 = vld [vmem:[%s6 + $0x178] sm:$0xff]
    %v1822 = vld [vmem:[%s6 + $0x180] sm:$0xff]
    %v1823 = vld [vmem:[%s6 + $0x188] sm:$0xff]
    %v1824 = vld [vmem:[%s6 + $0x190] sm:$0xff]
    %v1825 = vld [vmem:[%s6 + $0x198] sm:$0xff]
    %v1826 = vld [vmem:[%s6 + $0x1a0] sm:$0xff]
    %v1827 = vld [vmem:[%s6 + $0x1a8] sm:$0xff]
    %v1828 = vld [vmem:[%s6 + $0x1b0] sm:$0xff]
    %v1829 = vld [vmem:[%s6 + $0x1b8] sm:$0xff]
    %v1830 = vld [vmem:[%s6 + $0x1c0] sm:$0xff]
    %v1831 = vld [vmem:[%s6 + $0x1c8] sm:$0xff]
    %v1832 = vld [vmem:[%s6 + $0x1d0] sm:$0xff]
    %v1833 = vld [vmem:[%s6 + $0x1d8] sm:$0xff]
    %v1834 = vld [vmem:[%s6 + $0x1e0] sm:$0xff]
    %v1835 = vld [vmem:[%s6 + $0x1e8] sm:$0xff]
    %v1836 = vld [vmem:[%s6 + $0x1f0] sm:$0xff]
    %v1837 = vld [vmem:[%s6 + $0x1f8] sm:$0xff]
    %v1838 = vld [vmem:[%s7] sm:$0x3]
    %v1840 = vlaneseq
    %v1841 = vshrl.u32 %v1840, 7
    %v1842 = vsub.s32 0, %v1841
    %v1843 = vrot.slane %v1838, %v1842
    %v1844 = vlaneseq
    %v1845 = vshrl.u32 %v1844, 7
    %v1846 = vsub.s32 1, %v1845
    %v1847 = vrot.slane %v1838, %v1846
    %v1914 = vunpack.c.l.b16 %v1774
    %v1915 = vunpack.c.h.b16 %v1774
    %v1916 = vunpack.c.l.b16 %v1775
    %v1917 = vunpack.c.h.b16 %v1775
    %v1918 = vunpack.c.l.b16 %v1776
    %v1919 = vunpack.c.h.b16 %v1776
    %v1920 = vunpack.c.l.b16 %v1777
    %v1921 = vunpack.c.h.b16 %v1777
    %v1922 = vunpack.c.l.b16 %v1778
    %v1923 = vunpack.c.h.b16 %v1778
    %v1924 = vunpack.c.l.b16 %v1779
    %v1925 = vunpack.c.h.b16 %v1779
    %v1926 = vunpack.c.l.b16 %v1780
    %v1927 = vunpack.c.h.b16 %v1780
    %v1928 = vunpack.c.l.b16 %v1781
    %v1929 = vunpack.c.h.b16 %v1781
    %v1930 = vunpack.c.l.b16 %v1782
    %v1931 = vunpack.c.h.b16 %v1782
    %v1932 = vunpack.c.l.b16 %v1783
    %v1933 = vunpack.c.h.b16 %v1783
    %v1934 = vunpack.c.l.b16 %v1784
    %v1935 = vunpack.c.h.b16 %v1784
    %v1936 = vunpack.c.l.b16 %v1785
    %v1937 = vunpack.c.h.b16 %v1785
    %v1938 = vunpack.c.l.b16 %v1786
    %v1939 = vunpack.c.h.b16 %v1786
    %v1940 = vunpack.c.l.b16 %v1787
    %v1941 = vunpack.c.h.b16 %v1787
    %v1942 = vunpack.c.l.b16 %v1788
    %v1943 = vunpack.c.h.b16 %v1788
    %v1944 = vunpack.c.l.b16 %v1789
    %v1945 = vunpack.c.h.b16 %v1789
    %v1946 = vunpack.c.l.b16 %v1790
    %v1947 = vunpack.c.h.b16 %v1790
    %v1948 = vunpack.c.l.b16 %v1791
    %v1949 = vunpack.c.h.b16 %v1791
    %v1950 = vunpack.c.l.b16 %v1792
    %v1951 = vunpack.c.h.b16 %v1792
    %v1952 = vunpack.c.l.b16 %v1793
    %v1953 = vunpack.c.h.b16 %v1793
    %v1954 = vunpack.c.l.b16 %v1794
    %v1955 = vunpack.c.h.b16 %v1794
    %v1956 = vunpack.c.l.b16 %v1795
    %v1957 = vunpack.c.h.b16 %v1795
    %v1958 = vunpack.c.l.b16 %v1796
    %v1959 = vunpack.c.h.b16 %v1796
    %v1960 = vunpack.c.l.b16 %v1797
    %v1961 = vunpack.c.h.b16 %v1797
    %v1962 = vunpack.c.l.b16 %v1798
    %v1963 = vunpack.c.h.b16 %v1798
    %v1964 = vunpack.c.l.b16 %v1799
    %v1965 = vunpack.c.h.b16 %v1799
    %v1966 = vunpack.c.l.b16 %v1800
    %v1967 = vunpack.c.h.b16 %v1800
    %v1968 = vunpack.c.l.b16 %v1801
    %v1969 = vunpack.c.h.b16 %v1801
    %v1970 = vunpack.c.l.b16 %v1802
    %v1971 = vunpack.c.h.b16 %v1802
    %v1972 = vunpack.c.l.b16 %v1803
    %v1973 = vunpack.c.h.b16 %v1803
    %v1974 = vunpack.c.l.b16 %v1804
    %v1975 = vunpack.c.h.b16 %v1804
    %v1976 = vunpack.c.l.b16 %v1805
    %v1977 = vunpack.c.h.b16 %v1805
    %v1978 = vunpack.c.l.b16 %v1806
    %v1979 = vunpack.c.h.b16 %v1806
    %v1980 = vunpack.c.l.b16 %v1807
    %v1981 = vunpack.c.h.b16 %v1807
    %v1982 = vunpack.c.l.b16 %v1808
    %v1983 = vunpack.c.h.b16 %v1808
    %v1984 = vunpack.c.l.b16 %v1809
    %v1985 = vunpack.c.h.b16 %v1809
    %v1986 = vunpack.c.l.b16 %v1810
    %v1987 = vunpack.c.h.b16 %v1810
    %v1988 = vunpack.c.l.b16 %v1811
    %v1989 = vunpack.c.h.b16 %v1811
    %v1990 = vunpack.c.l.b16 %v1812
    %v1991 = vunpack.c.h.b16 %v1812
    %v1992 = vunpack.c.l.b16 %v1813
    %v1993 = vunpack.c.h.b16 %v1813
    %v1994 = vunpack.c.l.b16 %v1814
    %v1995 = vunpack.c.h.b16 %v1814
    %v1996 = vunpack.c.l.b16 %v1815
    %v1997 = vunpack.c.h.b16 %v1815
    %v1998 = vunpack.c.l.b16 %v1816
    %v1999 = vunpack.c.h.b16 %v1816
    %v2000 = vunpack.c.l.b16 %v1817
    %v2001 = vunpack.c.h.b16 %v1817
    %v2002 = vunpack.c.l.b16 %v1818
    %v2003 = vunpack.c.h.b16 %v1818
    %v2004 = vunpack.c.l.b16 %v1819
    %v2005 = vunpack.c.h.b16 %v1819
    %v2006 = vunpack.c.l.b16 %v1820
    %v2007 = vunpack.c.h.b16 %v1820
    %v2008 = vunpack.c.l.b16 %v1821
    %v2009 = vunpack.c.h.b16 %v1821
    %v2010 = vunpack.c.l.b16 %v1822
    %v2011 = vunpack.c.h.b16 %v1822
    %v2012 = vunpack.c.l.b16 %v1823
    %v2013 = vunpack.c.h.b16 %v1823
    %v2014 = vunpack.c.l.b16 %v1824
    %v2015 = vunpack.c.h.b16 %v1824
    %v2016 = vunpack.c.l.b16 %v1825
    %v2017 = vunpack.c.h.b16 %v1825
    %v2018 = vunpack.c.l.b16 %v1826
    %v2019 = vunpack.c.h.b16 %v1826
    %v2020 = vunpack.c.l.b16 %v1827
    %v2021 = vunpack.c.h.b16 %v1827
    %v2022 = vunpack.c.l.b16 %v1828
    %v2023 = vunpack.c.h.b16 %v1828
    %v2024 = vunpack.c.l.b16 %v1829
    %v2025 = vunpack.c.h.b16 %v1829
    %v2026 = vunpack.c.l.b16 %v1830
    %v2027 = vunpack.c.h.b16 %v1830
    %v2028 = vunpack.c.l.b16 %v1831
    %v2029 = vunpack.c.h.b16 %v1831
    %v2030 = vunpack.c.l.b16 %v1832
    %v2031 = vunpack.c.h.b16 %v1832
    %v2032 = vunpack.c.l.b16 %v1833
    %v2033 = vunpack.c.h.b16 %v1833
    %v2034 = vunpack.c.l.b16 %v1834
    %v2035 = vunpack.c.h.b16 %v1834
    %v2036 = vunpack.c.l.b16 %v1835
    %v2037 = vunpack.c.h.b16 %v1835
    %v2038 = vunpack.c.l.b16 %v1836
    %v2039 = vunpack.c.h.b16 %v1836
    %v2040 = vunpack.c.l.b16 %v1837
    %v2041 = vunpack.c.h.b16 %v1837
    %v2042 = vpack.c.b16 %v1916, %v1914
    %v2043 = vpack.c.b16 %v1917, %v1915
    %v2044 = vpack.c.b16 %v1920, %v1918
    %v2045 = vpack.c.b16 %v1921, %v1919
    %v2046 = vpack.c.b16 %v1924, %v1922
    %v2047 = vpack.c.b16 %v1925, %v1923
    %v2048 = vpack.c.b16 %v1928, %v1926
    %v2049 = vpack.c.b16 %v1929, %v1927
    %v2050 = vpack.c.b16 %v1932, %v1930
    %v2051 = vpack.c.b16 %v1933, %v1931
    %v2052 = vpack.c.b16 %v1936, %v1934
    %v2053 = vpack.c.b16 %v1937, %v1935
    %v2054 = vpack.c.b16 %v1940, %v1938
    %v2055 = vpack.c.b16 %v1941, %v1939
    %v2056 = vpack.c.b16 %v1944, %v1942
    %v2057 = vpack.c.b16 %v1945, %v1943
    %v2058 = vpack.c.b16 %v1948, %v1946
    %v2059 = vpack.c.b16 %v1949, %v1947
    %v2060 = vpack.c.b16 %v1952, %v1950
    %v2061 = vpack.c.b16 %v1953, %v1951
    %v2062 = vpack.c.b16 %v1956, %v1954
    %v2063 = vpack.c.b16 %v1957, %v1955
    %v2064 = vpack.c.b16 %v1960, %v1958
    %v2065 = vpack.c.b16 %v1961, %v1959
    %v2066 = vpack.c.b16 %v1964, %v1962
    %v2067 = vpack.c.b16 %v1965, %v1963
    %v2068 = vpack.c.b16 %v1968, %v1966
    %v2069 = vpack.c.b16 %v1969, %v1967
    %v2070 = vpack.c.b16 %v1972, %v1970
    %v2071 = vpack.c.b16 %v1973, %v1971
    %v2072 = vpack.c.b16 %v1976, %v1974
    %v2073 = vpack.c.b16 %v1977, %v1975
    %v2074 = vpack.c.b16 %v1980, %v1978
    %v2075 = vpack.c.b16 %v1981, %v1979
    %v2076 = vpack.c.b16 %v1984, %v1982
    %v2077 = vpack.c.b16 %v1985, %v1983
    %v2078 = vpack.c.b16 %v1988, %v1986
    %v2079 = vpack.c.b16 %v1989, %v1987
    %v2080 = vpack.c.b16 %v1992, %v1990
    %v2081 = vpack.c.b16 %v1993, %v1991
    %v2082 = vpack.c.b16 %v1996, %v1994
    %v2083 = vpack.c.b16 %v1997, %v1995
    %v2084 = vpack.c.b16 %v2000, %v1998
    %v2085 = vpack.c.b16 %v2001, %v1999
    %v2086 = vpack.c.b16 %v2004, %v2002
    %v2087 = vpack.c.b16 %v2005, %v2003
    %v2088 = vpack.c.b16 %v2008, %v2006
    %v2089 = vpack.c.b16 %v2009, %v2007
    %v2090 = vpack.c.b16 %v2012, %v2010
    %v2091 = vpack.c.b16 %v2013, %v2011
    %v2092 = vpack.c.b16 %v2016, %v2014
    %v2093 = vpack.c.b16 %v2017, %v2015
    %v2094 = vpack.c.b16 %v2020, %v2018
    %v2095 = vpack.c.b16 %v2021, %v2019
    %v2096 = vpack.c.b16 %v2024, %v2022
    %v2097 = vpack.c.b16 %v2025, %v2023
    %v2098 = vpack.c.b16 %v2028, %v2026
    %v2099 = vpack.c.b16 %v2029, %v2027
    %v2100 = vpack.c.b16 %v2032, %v2030
    %v2101 = vpack.c.b16 %v2033, %v2031
    %v2102 = vpack.c.b16 %v2036, %v2034
    %v2103 = vpack.c.b16 %v2037, %v2035
    %v2104 = vpack.c.b16 %v2040, %v2038
    %v2105 = vpack.c.b16 %v2041, %v2039
    %2170 = vmatprep.subr.bf16.mxu0 %v2043
    %2171 = vmatpush1.bf16.msra.mxu0 %v2042
    %2172 = vmatprep.subr.bf16.mxu0 %v2045
    %2173 = vmatpush1.bf16.msra.mxu0 %v2044
    %2174 = vmatprep.subr.bf16.mxu0 %v2047
    %2175 = vmatpush1.bf16.msra.mxu0 %v2046
    %2176 = vmatprep.subr.bf16.mxu0 %v2049
    %2177 = vmatpush1.bf16.msra.mxu0 %v2048
    %2178 = vmatprep.subr.bf16.mxu0 %v2051
    %2179 = vmatpush1.bf16.msra.mxu0 %v2050
    %2180 = vmatprep.subr.bf16.mxu0 %v2053
    %2181 = vmatpush1.bf16.msra.mxu0 %v2052
    %2182 = vmatprep.subr.bf16.mxu0 %v2055
    %2183 = vmatpush1.bf16.msra.mxu0 %v2054
    %2184 = vmatprep.subr.bf16.mxu0 %v2057
    %2185 = vmatpush1.bf16.msra.mxu0 %v2056
    %2186 = vmatprep.subr.bf16.mxu0 %v2059
    %2187 = vmatpush1.bf16.msra.mxu0 %v2058
    %2188 = vmatprep.subr.bf16.mxu0 %v2061
    %2189 = vmatpush1.bf16.msra.mxu0 %v2060
    %2190 = vmatprep.subr.bf16.mxu0 %v2063
    %2191 = vmatpush1.bf16.msra.mxu0 %v2062
    %2192 = vmatprep.subr.bf16.mxu0 %v2065
    %2193 = vmatpush1.bf16.msra.mxu0 %v2064
    %2194 = vmatprep.subr.bf16.mxu0 %v2067
    %2195 = vmatpush1.bf16.msra.mxu0 %v2066
    %2196 = vmatprep.subr.bf16.mxu0 %v2069
    %2197 = vmatpush1.bf16.msra.mxu0 %v2068
    %2198 = vmatprep.subr.bf16.mxu0 %v2071
    %2199 = vmatpush1.bf16.msra.mxu0 %v2070
    %2200 = vmatprep.subr.bf16.mxu0 %v2073
    %2201 = vmatpush1.bf16.msra.mxu0 %v2072
    %2202 = vmatprep.mubr.bf16.mxu0 %v1771
    %2203 = vmatmul.mubr.bf16.gmra.mrb[0].mxu0 %v1770
    %v2204 = vpop.f32.mrb[0].mxu0
    %v2205 = vadd.f32 %v1843, %v2204
    %v2206 = vpop.f32.mrb[0].mxu0
    %v2207 = vadd.f32 %v1847, %v2206
    %v2208 = vpop.f32.mrb[0].mxu0
    %v2209 = vadd.f32 %v1843, %v2208
    %v2210 = vpop.f32.mrb[0].mxu0
    %v2211 = vadd.f32 %v1847, %v2210
    %2212 = vdwg.mxu0
    %2213 = vmatprep.subr.bf16.mxu0 %v2075
    %2214 = vmatpush1.bf16.msra.mxu0 %v2074
    %2215 = vmatprep.subr.bf16.mxu0 %v2077
    %2216 = vmatpush1.bf16.msra.mxu0 %v2076
    %2217 = vmatprep.subr.bf16.mxu0 %v2079
    %2218 = vmatpush1.bf16.msra.mxu0 %v2078
    %2219 = vmatprep.subr.bf16.mxu0 %v2081
    %2220 = vmatpush1.bf16.msra.mxu0 %v2080
    %2221 = vmatprep.subr.bf16.mxu0 %v2083
    %2222 = vmatpush1.bf16.msra.mxu0 %v2082
    %2223 = vmatprep.subr.bf16.mxu0 %v2085
    %2224 = vmatpush1.bf16.msra.mxu0 %v2084
    %2225 = vmatprep.subr.bf16.mxu0 %v2087
    %2226 = vmatpush1.bf16.msra.mxu0 %v2086
    %2227 = vmatprep.subr.bf16.mxu0 %v2089
    %2228 = vmatpush1.bf16.msra.mxu0 %v2088
    %2229 = vmatprep.subr.bf16.mxu0 %v2091
    %2230 = vmatpush1.bf16.msra.mxu0 %v2090
    %2231 = vmatprep.subr.bf16.mxu0 %v2093
    %2232 = vmatpush1.bf16.msra.mxu0 %v2092
    %2233 = vmatprep.subr.bf16.mxu0 %v2095
    %2234 = vmatpush1.bf16.msra.mxu0 %v2094
    %2235 = vmatprep.subr.bf16.mxu0 %v2097
    %2236 = vmatpush1.bf16.msra.mxu0 %v2096
    %2237 = vmatprep.subr.bf16.mxu0 %v2099
    %2238 = vmatpush1.bf16.msra.mxu0 %v2098
    %2239 = vmatprep.subr.bf16.mxu0 %v2101
    %2240 = vmatpush1.bf16.msra.mxu0 %v2100
    %2241 = vmatprep.subr.bf16.mxu0 %v2103
    %2242 = vmatpush1.bf16.msra.mxu0 %v2102
    %2243 = vmatprep.subr.bf16.mxu0 %v2105
    %2244 = vmatpush1.bf16.msra.mxu0 %v2104
    %2245 = vmatprep.mubr.bf16.mxu0 %v1773
    %2246 = vmatmul.mubr.bf16.gmra.mrb[0].mxu0 %v1772
    %v2247 = vpop.f32.mrb[0].mxu0
    %v2248 = vadd.f32 %v2205, %v2247
    %v2249 = vpop.f32.mrb[0].mxu0
    %v2250 = vadd.f32 %v2207, %v2249
    %v2251 = vpop.f32.mrb[0].mxu0
    %v2252 = vadd.f32 %v2209, %v2251
    %v2253 = vpop.f32.mrb[0].mxu0
    %v2254 = vadd.f32 %v2211, %v2253
    %2255 = vdwg.mxu0
    %v2256 = vmax.f32 %v2248, 0.0
    %v2257 = vmax.f32 %v2250, 0.0
    %v2258 = vmax.f32 %v2252, 0.0
    %v2259 = vmax.f32 %v2254, 0.0
    %v2260 = vpack.c.bf16 %v2258, %v2256
    %v2261 = vpack.c.bf16 %v2259, %v2257
    %v2262 = vld [vmem:[%s8] sm:$0xf]
    %v2263 = vld [vmem:[%s8 + $0x4] sm:$0xf]
    %v2264 = vld [vmem:[%s8 + $0x8] sm:$0xf]
    %v2265 = vld [vmem:[%s8 + $0xc] sm:$0xf]
    %v2266 = vld [vmem:[%s8 + $0x10] sm:$0xf]
    %v2267 = vld [vmem:[%s8 + $0x14] sm:$0xf]
    %v2268 = vld [vmem:[%s8 + $0x18] sm:$0xf]
    %v2269 = vld [vmem:[%s8 + $0x1c] sm:$0xf]
    %v2270 = vld [vmem:[%s8 + $0x20] sm:$0xf]
    %v2271 = vld [vmem:[%s8 + $0x24] sm:$0xf]
    %v2272 = vld [vmem:[%s8 + $0x28] sm:$0xf]
    %v2273 = vld [vmem:[%s8 + $0x2c] sm:$0xf]
    %v2274 = vld [vmem:[%s8 + $0x30] sm:$0xf]
    %v2275 = vld [vmem:[%s8 + $0x34] sm:$0xf]
    %v2276 = vld [vmem:[%s8 + $0x38] sm:$0xf]
    %v2277 = vld [vmem:[%s8 + $0x3c] sm:$0xf]
    %v2278 = vld [vmem:[%s8 + $0x40] sm:$0xf]
    %v2279 = vld [vmem:[%s8 + $0x44] sm:$0xf]
    %v2280 = vld [vmem:[%s8 + $0x48] sm:$0xf]
    %v2281 = vld [vmem:[%s8 + $0x4c] sm:$0xf]
    %v2282 = vld [vmem:[%s8 + $0x50] sm:$0xf]
    %v2283 = vld [vmem:[%s8 + $0x54] sm:$0xf]
    %v2284 = vld [vmem:[%s8 + $0x58] sm:$0xf]
    %v2285 = vld [vmem:[%s8 + $0x5c] sm:$0xf]
    %v2286 = vld [vmem:[%s8 + $0x60] sm:$0xf]
    %v2287 = vld [vmem:[%s8 + $0x64] sm:$0xf]
    %v2288 = vld [vmem:[%s8 + $0x68] sm:$0xf]
    %v2289 = vld [vmem:[%s8 + $0x6c] sm:$0xf]
    %v2290 = vld [vmem:[%s8 + $0x70] sm:$0xf]
    %v2291 = vld [vmem:[%s8 + $0x74] sm:$0xf]
    %v2292 = vld [vmem:[%s8 + $0x78] sm:$0xf]
    %v2293 = vld [vmem:[%s8 + $0x7c] sm:$0xf]
    %v2294 = vld [vmem:[%s9] sm:$0x1]
    %v2296 = vlaneseq
    %v2297 = vshrl.u32 %v2296, 7
    %v2298 = vsub.s32 0, %v2297
    %v2299 = vrot.slane %v2294, %v2298
    %v2333 = vunpack.c.l.b16 %v2262
    %v2334 = vunpack.c.l.b16 %v2263
    %v2335 = vunpack.c.l.b16 %v2264
    %v2336 = vunpack.c.l.b16 %v2265
    %v2337 = vunpack.c.l.b16 %v2266
    %v2338 = vunpack.c.l.b16 %v2267
    %v2339 = vunpack.c.l.b16 %v2268
    %v2340 = vunpack.c.l.b16 %v2269
    %v2341 = vunpack.c.l.b16 %v2270
    %v2342 = vunpack.c.l.b16 %v2271
    %v2343 = vunpack.c.l.b16 %v2272
    %v2344 = vunpack.c.l.b16 %v2273
    %v2345 = vunpack.c.l.b16 %v2274
    %v2346 = vunpack.c.l.b16 %v2275
    %v2347 = vunpack.c.l.b16 %v2276
    %v2348 = vunpack.c.l.b16 %v2277
    %v2349 = vunpack.c.l.b16 %v2278
    %v2350 = vunpack.c.l.b16 %v2279
    %v2351 = vunpack.c.l.b16 %v2280
    %v2352 = vunpack.c.l.b16 %v2281
    %v2353 = vunpack.c.l.b16 %v2282
    %v2354 = vunpack.c.l.b16 %v2283
    %v2355 = vunpack.c.l.b16 %v2284
    %v2356 = vunpack.c.l.b16 %v2285
    %v2357 = vunpack.c.l.b16 %v2286
    %v2358 = vunpack.c.l.b16 %v2287
    %v2359 = vunpack.c.l.b16 %v2288
    %v2360 = vunpack.c.l.b16 %v2289
    %v2361 = vunpack.c.l.b16 %v2290
    %v2362 = vunpack.c.l.b16 %v2291
    %v2363 = vunpack.c.l.b16 %v2292
    %v2364 = vunpack.c.l.b16 %v2293
    %v2365 = vpack.c.b16 %v2334, %v2333
    %v2366 = vpack.c.b16 %v2336, %v2335
    %v2367 = vpack.c.b16 %v2338, %v2337
    %v2368 = vpack.c.b16 %v2340, %v2339
    %v2369 = vpack.c.b16 %v2342, %v2341
    %v2370 = vpack.c.b16 %v2344, %v2343
    %v2371 = vpack.c.b16 %v2346, %v2345
    %v2372 = vpack.c.b16 %v2348, %v2347
    %v2373 = vpack.c.b16 %v2350, %v2349
    %v2374 = vpack.c.b16 %v2352, %v2351
    %v2375 = vpack.c.b16 %v2354, %v2353
    %v2376 = vpack.c.b16 %v2356, %v2355
    %v2377 = vpack.c.b16 %v2358, %v2357
    %v2378 = vpack.c.b16 %v2360, %v2359
    %v2379 = vpack.c.b16 %v2362, %v2361
    %v2380 = vpack.c.b16 %v2364, %v2363
    %2397 = vmatprep.subr.bf16.mxu0 0
    %2398 = vmatpush1.bf16.msra.mxu0 %v2365
    %2399 = vmatprep.subr.bf16.mxu0 0
    %2400 = vmatpush1.bf16.msra.mxu0 %v2366
    %2401 = vmatprep.subr.bf16.mxu0 0
    %2402 = vmatpush1.bf16.msra.mxu0 %v2367
    %2403 = vmatprep.subr.bf16.mxu0 0
    %2404 = vmatpush1.bf16.msra.mxu0 %v2368
    %2405 = vmatprep.subr.bf16.mxu0 0
    %2406 = vmatpush1.bf16.msra.mxu0 %v2369
    %2407 = vmatprep.subr.bf16.mxu0 0
    %2408 = vmatpush1.bf16.msra.mxu0 %v2370
    %2409 = vmatprep.subr.bf16.mxu0 0
    %2410 = vmatpush1.bf16.msra.mxu0 %v2371
    %2411 = vmatprep.subr.bf16.mxu0 0
    %2412 = vmatpush1.bf16.msra.mxu0 %v2372
    %2413 = vmatprep.subr.bf16.mxu0 0
    %2414 = vmatpush1.bf16.msra.mxu0 %v2373
    %2415 = vmatprep.subr.bf16.mxu0 0
    %2416 = vmatpush1.bf16.msra.mxu0 %v2374
    %2417 = vmatprep.subr.bf16.mxu0 0
    %2418 = vmatpush1.bf16.msra.mxu0 %v2375
    %2419 = vmatprep.subr.bf16.mxu0 0
    %2420 = vmatpush1.bf16.msra.mxu0 %v2376
    %2421 = vmatprep.subr.bf16.mxu0 0
    %2422 = vmatpush1.bf16.msra.mxu0 %v2377
    %2423 = vmatprep.subr.bf16.mxu0 0
    %2424 = vmatpush1.bf16.msra.mxu0 %v2378
    %2425 = vmatprep.subr.bf16.mxu0 0
    %2426 = vmatpush1.bf16.msra.mxu0 %v2379
    %2427 = vmatprep.subr.bf16.mxu0 0
    %2428 = vmatpush1.bf16.msra.mxu0 %v2380
    %2429 = vmatprep.mubr.bf16.mxu0 %v2261
    %2430 = vmatmul.mubr.bf16.gmra.mrb[0].mxu0 %v2260
    %v2431 = vpop.f32.mrb[0].mxu0
    %v2432 = vadd.f32 %v2299, %v2431
    %v2433 = vpop.f32.mrb[0].mxu0
    %v2434 = vpop.f32.mrb[0].mxu0
    %v2435 = vadd.f32 %v2299, %v2434
    %v2436 = vpop.f32.mrb[0].mxu0
    %2437 = vdwg.mxu0
    %v2438 = vmax.f32 %v2432, 0.0
    %v2439 = vmax.f32 %v2435, 0.0
    %v2440 = vld [vmem:[%s3] sm:$0xf]
    %v2441 = vld [vmem:[%s3 + $0x4] sm:$0xf]
    %v2442 = vld [vmem:[%s3 + $0x8] sm:$0xf]
    %v2443 = vld [vmem:[%s3 + $0xc] sm:$0xf]
    %s2444 = scalar_lea.vmem %s3, 16
    %v2445 = vld [vmem:[%s2444] sm:$0xf]
    %v2446 = vld [vmem:[%s2444 + $0x4] sm:$0xf]
    %v2447 = vld [vmem:[%s2444 + $0x8] sm:$0xf]
    %v2448 = vld [vmem:[%s2444 + $0xc] sm:$0xf]
    %s2449 = scalar_lea.vmem %s3, 32
    %v2450 = vld [vmem:[%s2449] sm:$0xf]
    %v2451 = vld [vmem:[%s2449 + $0x4] sm:$0xf]
    %v2452 = vld [vmem:[%s2449 + $0x8] sm:$0xf]
    %v2453 = vld [vmem:[%s2449 + $0xc] sm:$0xf]
    %s2454 = scalar_lea.vmem %s3, 48
    %v2455 = vld [vmem:[%s2454] sm:$0xf]
    %v2456 = vld [vmem:[%s2454 + $0x4] sm:$0xf]
    %v2457 = vld [vmem:[%s2454 + $0x8] sm:$0xf]
    %v2458 = vld [vmem:[%s2454 + $0xc] sm:$0xf]
    %s2459 = scalar_lea.vmem %s3, 64
    %v2460 = vld [vmem:[%s2459] sm:$0xf]
    %v2461 = vld [vmem:[%s2459 + $0x4] sm:$0xf]
    %v2462 = vld [vmem:[%s2459 + $0x8] sm:$0xf]
    %v2463 = vld [vmem:[%s2459 + $0xc] sm:$0xf]
    %v2464 = vpack.c.bf16 %v2439, %v2438
    %v2469 = vunpack.c.l.b16 %v2445
    %v2470 = vunpack.c.l.b16 %v2446
    %v2471 = vunpack.c.l.b16 %v2447
    %v2472 = vunpack.c.l.b16 %v2448
    %v2473 = vpack.c.b16 %v2470, %v2469
    %v2474 = vpack.c.b16 %v2472, %v2471
    %vm2477 = vcmask 261120
    %v2479 = vsel %vm2477, %v2464, 0
    %2481 = vmatprep.subr.bf16.mxu0 0
    %2482 = vmatpush1.bf16.msra.mxu0 %v2473
    %2483 = vmatprep.subr.bf16.mxu0 0
    %2484 = vmatpush1.bf16.msra.mxu0 %v2474
    %2485 = vmatprep.subr.bf16.mxu0 0
    %2486 = vmatpush1.bf16.msra.mxu0 0
    %2487 = vmatprep.subr.bf16.mxu0 0
    %2488 = vmatpush1.bf16.msra.mxu0 0
    %2489 = vmatprep.subr.bf16.mxu0 0
    %2490 = vmatpush1.bf16.msra.mxu0 0
    %2491 = vmatprep.subr.bf16.mxu0 0
    %2492 = vmatpush1.bf16.msra.mxu0 0
    %2493 = vmatprep.subr.bf16.mxu0 0
    %2494 = vmatpush1.bf16.msra.mxu0 0
    %2495 = vmatprep.subr.bf16.mxu0 0
    %2496 = vmatpush1.bf16.msra.mxu0 0
    %2497 = vmatprep.subr.bf16.mxu0 0
    %2498 = vmatpush1.bf16.msra.mxu0 0
    %2499 = vmatprep.subr.bf16.mxu0 0
    %2500 = vmatpush1.bf16.msra.mxu0 0
    %2501 = vmatprep.subr.bf16.mxu0 0
    %2502 = vmatpush1.bf16.msra.mxu0 0
    %2503 = vmatprep.subr.bf16.mxu0 0
    %2504 = vmatpush1.bf16.msra.mxu0 0
    %2505 = vmatprep.subr.bf16.mxu0 0
    %2506 = vmatpush1.bf16.msra.mxu0 0
    %2507 = vmatprep.subr.bf16.mxu0 0
    %2508 = vmatpush1.bf16.msra.mxu0 0
    %2509 = vmatprep.subr.bf16.mxu0 0
    %2510 = vmatpush1.bf16.msra.mxu0 0
    %2511 = vmatprep.subr.bf16.mxu0 0
    %2512 = vmatpush1.bf16.msra.mxu0 0
    %2513 = vmatprep.mubr.bf16.mxu0 0
    %2514 = vmatmul.mubr.bf16.gmra.mrb[0].mxu0 %v2479
    %v2515 = vpop.f32.mrb[0].mxu0
    %v2516 = vadd.f32 0.0, %v2515
    %v2517 = vpop.f32.mrb[0].mxu0
    %v2518 = vpop.f32.mrb[0].mxu0
    %v2519 = vadd.f32 0.0, %v2518
    %v2520 = vpop.f32.mrb[0].mxu0
    %2521 = vdwg.mxu0
    %v2526 = vunpack.c.l.b16 %v2450
    %v2527 = vunpack.c.l.b16 %v2451
    %v2528 = vunpack.c.l.b16 %v2452
    %v2529 = vunpack.c.l.b16 %v2453
    %v2530 = vpack.c.b16 %v2527, %v2526
    %v2531 = vpack.c.b16 %v2529, %v2528
    %2534 = vmatprep.subr.bf16.mxu0 0
    %2535 = vmatpush1.bf16.msra.mxu0 %v2530
    %2536 = vmatprep.subr.bf16.mxu0 0
    %2537 = vmatpush1.bf16.msra.mxu0 %v2531
    %2538 = vmatprep.subr.bf16.mxu0 0
    %2539 = vmatpush1.bf16.msra.mxu0 0
    %2540 = vmatprep.subr.bf16.mxu0 0
    %2541 = vmatpush1.bf16.msra.mxu0 0
    %2542 = vmatprep.subr.bf16.mxu0 0
    %2543 = vmatpush1.bf16.msra.mxu0 0
    %2544 = vmatprep.subr.bf16.mxu0 0
    %2545 = vmatpush1.bf16.msra.mxu0 0
    %2546 = vmatprep.subr.bf16.mxu0 0
    %2547 = vmatpush1.bf16.msra.mxu0 0
    %2548 = vmatprep.subr.bf16.mxu0 0
    %2549 = vmatpush1.bf16.msra.mxu0 0
    %2550 = vmatprep.subr.bf16.mxu0 0
    %2551 = vmatpush1.bf16.msra.mxu0 0
    %2552 = vmatprep.subr.bf16.mxu0 0
    %2553 = vmatpush1.bf16.msra.mxu0 0
    %2554 = vmatprep.subr.bf16.mxu0 0
    %2555 = vmatpush1.bf16.msra.mxu0 0
    %2556 = vmatprep.subr.bf16.mxu0 0
    %2557 = vmatpush1.bf16.msra.mxu0 0
    %2558 = vmatprep.subr.bf16.mxu0 0
    %2559 = vmatpush1.bf16.msra.mxu0 0
    %2560 = vmatprep.subr.bf16.mxu0 0
    %2561 = vmatpush1.bf16.msra.mxu0 0
    %2562 = vmatprep.subr.bf16.mxu0 0
    %2563 = vmatpush1.bf16.msra.mxu0 0
    %2564 = vmatprep.subr.bf16.mxu0 0
    %2565 = vmatpush1.bf16.msra.mxu0 0
    %2566 = vmatprep.mubr.bf16.mxu0 0
    %2567 = vmatmul.mubr.bf16.gmra.mrb[0].mxu0 %v2479
    %v2568 = vpop.f32.mrb[0].mxu0
    %v2569 = vadd.f32 0.0, %v2568
    %v2570 = vpop.f32.mrb[0].mxu0
    %v2571 = vpop.f32.mrb[0].mxu0
    %v2572 = vadd.f32 0.0, %v2571
    %v2573 = vpop.f32.mrb[0].mxu0
    %2574 = vdwg.mxu0
    %v2575 = vmax.f32 %v2516, %v2569
    %v2576 = vmax.f32 %v2519, %v2572
    %v2581 = vunpack.c.l.b16 %v2455
    %v2582 = vunpack.c.l.b16 %v2456
    %v2583 = vunpack.c.l.b16 %v2457
    %v2584 = vunpack.c.l.b16 %v2458
    %v2585 = vpack.c.b16 %v2582, %v2581
    %v2586 = vpack.c.b16 %v2584, %v2583
    %2589 = vmatprep.subr.bf16.mxu0 0
    %2590 = vmatpush1.bf16.msra.mxu0 %v2585
    %2591 = vmatprep.subr.bf16.mxu0 0
    %2592 = vmatpush1.bf16.msra.mxu0 %v2586
    %2593 = vmatprep.subr.bf16.mxu0 0
    %2594 = vmatpush1.bf16.msra.mxu0 0
    %2595 = vmatprep.subr.bf16.mxu0 0
    %2596 = vmatpush1.bf16.msra.mxu0 0
    %2597 = vmatprep.subr.bf16.mxu0 0
    %2598 = vmatpush1.bf16.msra.mxu0 0
    %2599 = vmatprep.subr.bf16.mxu0 0
    %2600 = vmatpush1.bf16.msra.mxu0 0
    %2601 = vmatprep.subr.bf16.mxu0 0
    %2602 = vmatpush1.bf16.msra.mxu0 0
    %2603 = vmatprep.subr.bf16.mxu0 0
    %2604 = vmatpush1.bf16.msra.mxu0 0
    %2605 = vmatprep.subr.bf16.mxu0 0
    %2606 = vmatpush1.bf16.msra.mxu0 0
    %2607 = vmatprep.subr.bf16.mxu0 0
    %2608 = vmatpush1.bf16.msra.mxu0 0
    %2609 = vmatprep.subr.bf16.mxu0 0
    %2610 = vmatpush1.bf16.msra.mxu0 0
    %2611 = vmatprep.subr.bf16.mxu0 0
    %2612 = vmatpush1.bf16.msra.mxu0 0
    %2613 = vmatprep.subr.bf16.mxu0 0
    %2614 = vmatpush1.bf16.msra.mxu0 0
    %2615 = vmatprep.subr.bf16.mxu0 0
    %2616 = vmatpush1.bf16.msra.mxu0 0
    %2617 = vmatprep.subr.bf16.mxu0 0
    %2618 = vmatpush1.bf16.msra.mxu0 0
    %2619 = vmatprep.subr.bf16.mxu0 0
    %2620 = vmatpush1.bf16.msra.mxu0 0
    %2621 = vmatprep.mubr.bf16.mxu0 0
    %2622 = vmatmul.mubr.bf16.gmra.mrb[0].mxu0 %v2479
    %v2623 = vpop.f32.mrb[0].mxu0
    %v2624 = vadd.f32 0.0, %v2623
    %v2625 = vpop.f32.mrb[0].mxu0
    %v2626 = vpop.f32.mrb[0].mxu0
    %v2627 = vadd.f32 0.0, %v2626
    %v2628 = vpop.f32.mrb[0].mxu0
    %2629 = vdwg.mxu0
    %v2630 = vmax.f32 %v2575, %v2624
    %v2631 = vmax.f32 %v2576, %v2627
    %v2636 = vunpack.c.l.b16 %v2460
    %v2637 = vunpack.c.l.b16 %v2461
    %v2638 = vunpack.c.l.b16 %v2462
    %v2639 = vunpack.c.l.b16 %v2463
    %v2640 = vpack.c.b16 %v2637, %v2636
    %v2641 = vpack.c.b16 %v2639, %v2638
    %2644 = vmatprep.subr.bf16.mxu0 0
    %2645 = vmatpush1.bf16.msra.mxu0 %v2640
    %2646 = vmatprep.subr.bf16.mxu0 0
    %2647 = vmatpush1.bf16.msra.mxu0 %v2641
    %2648 = vmatprep.subr.bf16.mxu0 0
    %2649 = vmatpush1.bf16.msra.mxu0 0
    %2650 = vmatprep.subr.bf16.mxu0 0
    %2651 = vmatpush1.bf16.msra.mxu0 0
    %2652 = vmatprep.subr.bf16.mxu0 0
    %2653 = vmatpush1.bf16.msra.mxu0 0
    %2654 = vmatprep.subr.bf16.mxu0 0
    %2655 = vmatpush1.bf16.msra.mxu0 0
    %2656 = vmatprep.subr.bf16.mxu0 0
    %2657 = vmatpush1.bf16.msra.mxu0 0
    %2658 = vmatprep.subr.bf16.mxu0 0
    %2659 = vmatpush1.bf16.msra.mxu0 0
    %2660 = vmatprep.subr.bf16.mxu0 0
    %2661 = vmatpush1.bf16.msra.mxu0 0
    %2662 = vmatprep.subr.bf16.mxu0 0
    %2663 = vmatpush1.bf16.msra.mxu0 0
    %2664 = vmatprep.subr.bf16.mxu0 0
    %2665 = vmatpush1.bf16.msra.mxu0 0
    %2666 = vmatprep.subr.bf16.mxu0 0
    %2667 = vmatpush1.bf16.msra.mxu0 0
    %2668 = vmatprep.subr.bf16.mxu0 0
    %2669 = vmatpush1.bf16.msra.mxu0 0
    %2670 = vmatprep.subr.bf16.mxu0 0
    %2671 = vmatpush1.bf16.msra.mxu0 0
    %2672 = vmatprep.subr.bf16.mxu0 0
    %2673 = vmatpush1.bf16.msra.mxu0 0
    %2674 = vmatprep.subr.bf16.mxu0 0
    %2675 = vmatpush1.bf16.msra.mxu0 0
    %2676 = vmatprep.mubr.bf16.mxu0 0
    %2677 = vmatmul.mubr.bf16.gmra.mrb[0].mxu0 %v2479
    %v2678 = vpop.f32.mrb[0].mxu0
    %v2679 = vadd.f32 0.0, %v2678
    %v2680 = vpop.f32.mrb[0].mxu0
    %v2681 = vpop.f32.mrb[0].mxu0
    %v2682 = vadd.f32 0.0, %v2681
    %v2683 = vpop.f32.mrb[0].mxu0
    %2684 = vdwg.mxu0
    %v2685 = vmax.f32 %v2630, %v2679
    %v2686 = vmax.f32 %v2631, %v2682
    %v2687 = vsub.f32 %v2438, %v2685
    %v2688 = vsub.f32 %v2439, %v2686
    %v2689 = vmul.f32 %v2687, 1.442695
    %v2690 = vpow.pop %v2689
    %v2691 = vmul.f32 %v2688, 1.442695
    %v2692 = vpow.pop %v2691
    %v2693 = vpack.c.bf16 %v2692, %v2690
    %v2698 = vunpack.c.l.b16 %v2440
    %v2699 = vunpack.c.l.b16 %v2441
    %v2700 = vunpack.c.l.b16 %v2442
    %v2701 = vunpack.c.l.b16 %v2443
    %v2702 = vpack.c.b16 %v2699, %v2698
    %v2703 = vpack.c.b16 %v2701, %v2700
    %v2707 = vsel %vm2477, %v2693, 0
    %2709 = vmatprep.subr.bf16.mxu0 0
    %2710 = vmatpush1.bf16.msra.mxu0 %v2702
    %2711 = vmatprep.subr.bf16.mxu0 0
    %2712 = vmatpush1.bf16.msra.mxu0 %v2703
    %2713 = vmatprep.subr.bf16.mxu0 0
    %2714 = vmatpush1.bf16.msra.mxu0 0
    %2715 = vmatprep.subr.bf16.mxu0 0
    %2716 = vmatpush1.bf16.msra.mxu0 0
    %2717 = vmatprep.subr.bf16.mxu0 0
    %2718 = vmatpush1.bf16.msra.mxu0 0
    %2719 = vmatprep.subr.bf16.mxu0 0
    %2720 = vmatpush1.bf16.msra.mxu0 0
    %2721 = vmatprep.subr.bf16.mxu0 0
    %2722 = vmatpush1.bf16.msra.mxu0 0
    %2723 = vmatprep.subr.bf16.mxu0 0
    %2724 = vmatpush1.bf16.msra.mxu0 0
    %2725 = vmatprep.subr.bf16.mxu0 0
    %2726 = vmatpush1.bf16.msra.mxu0 0
    %2727 = vmatprep.subr.bf16.mxu0 0
    %2728 = vmatpush1.bf16.msra.mxu0 0
    %2729 = vmatprep.subr.bf16.mxu0 0
    %2730 = vmatpush1.bf16.msra.mxu0 0
    %2731 = vmatprep.subr.bf16.mxu0 0
    %2732 = vmatpush1.bf16.msra.mxu0 0
    %2733 = vmatprep.subr.bf16.mxu0 0
    %2734 = vmatpush1.bf16.msra.mxu0 0
    %2735 = vmatprep.subr.bf16.mxu0 0
    %2736 = vmatpush1.bf16.msra.mxu0 0
    %2737 = vmatprep.subr.bf16.mxu0 0
    %2738 = vmatpush1.bf16.msra.mxu0 0
    %2739 = vmatprep.subr.bf16.mxu0 0
    %2740 = vmatpush1.bf16.msra.mxu0 0
    %2741 = vmatprep.mubr.bf16.mxu0 0
    %2742 = vmatmul.mubr.bf16.gmra.mrb[0].mxu0 %v2707
    %v2743 = vpop.f32.mrb[0].mxu0
    %v2744 = vadd.f32 0.0, %v2743
    %v2745 = vpop.f32.mrb[0].mxu0
    %v2746 = vpop.f32.mrb[0].mxu0
    %v2747 = vadd.f32 0.0, %v2746
    %v2748 = vpop.f32.mrb[0].mxu0
    %2749 = vdwg.mxu0
    %v2750 = vrcp.pop %v2744
    %v2751 = vrcp.pop %v2747
    %v2752 = vmul.f32 %v2690, %v2750
    %v2753 = vmul.f32 %v2692, %v2751
    %2754 = vst.msk [vmem:[#allocation5] sm:$0xff] %vm2477, %v2752
    %2755 = vst.msk [vmem:[#allocation5 + $0x8] sm:$0xff] %vm2477, %v2753
    %v2756 = vadd.f32 %v2752, 1e-20
    %v2757 = vadd.f32 %v2753, 1e-20
    %v2758 = vlog2.pop %v2756
    %v2759 = vmul.f32 %v2758, 0.6931472
    %v2760 = vlog2.pop %v2757
    %v2761 = vmul.f32 %v2760, 0.6931472
    %v2762 = vld [vmem:[%s2] sm:$0xff]
    %v2763 = vld [vmem:[%s2 + $0x8] sm:$0xff]
    %v2764 = vadd.f32 %v2762, 1e-20
    %v2765 = vadd.f32 %v2763, 1e-20
    %v2766 = vlog2.pop %v2764
    %v2767 = vmul.f32 %v2766, 0.6931472
    %v2768 = vlog2.pop %v2765
    %v2769 = vmul.f32 %v2768, 0.6931472
    %v2770 = vsub.f32 0.0, %v2767
    %v2771 = vsub.f32 0.0, %v2769
    %v2772 = vadd.f32 %v2770, 1e-20
    %v2773 = vadd.f32 %v2771, 1e-20
    %v2774 = vlog2.pop %v2772
    %v2775 = vmul.f32 %v2774, 0.6931472
    %v2776 = vlog2.pop %v2773
    %v2777 = vmul.f32 %v2776, 0.6931472
    %v2778 = vsub.f32 0.0, %v2775
    %v2779 = vsub.f32 0.0, %v2777
    %s2780 = sld [smem:[#allocation2]]
    %v2781 = vstv %s2780
    %v2782 = vrcp.pop %v2781
    %s2783 = vtos %v2782
    %v2784 = vadd.f32 %v2759, %v2778
    %v2785 = vadd.f32 %v2761, %v2779
    %v2786 = vstv %s2783
    %v2787 = vmul.f32 %v2784, %v2786
    %v2788 = vmul.f32 %v2785, %v2786
    %v2789 = vpack.c.bf16 %v2788, %v2787
    %v2791 = vsel %vm2477, %v2789, 0
    %2793 = vmatprep.subr.bf16.mxu0 0
    %2794 = vmatpush1.bf16.msra.mxu0 %v2473
    %2795 = vmatprep.subr.bf16.mxu0 0
    %2796 = vmatpush1.bf16.msra.mxu0 %v2474
    %2797 = vmatprep.subr.bf16.mxu0 0
    %2798 = vmatpush1.bf16.msra.mxu0 0
    %2799 = vmatprep.subr.bf16.mxu0 0
    %2800 = vmatpush1.bf16.msra.mxu0 0
    %2801 = vmatprep.subr.bf16.mxu0 0
    %2802 = vmatpush1.bf16.msra.mxu0 0
    %2803 = vmatprep.subr.bf16.mxu0 0
    %2804 = vmatpush1.bf16.msra.mxu0 0
    %2805 = vmatprep.subr.bf16.mxu0 0
    %2806 = vmatpush1.bf16.msra.mxu0 0
    %2807 = vmatprep.subr.bf16.mxu0 0
    %2808 = vmatpush1.bf16.msra.mxu0 0
    %2809 = vmatprep.subr.bf16.mxu0 0
    %2810 = vmatpush1.bf16.msra.mxu0 0
    %2811 = vmatprep.subr.bf16.mxu0 0
    %2812 = vmatpush1.bf16.msra.mxu0 0
    %2813 = vmatprep.subr.bf16.mxu0 0
    %2814 = vmatpush1.bf16.msra.mxu0 0
    %2815 = vmatprep.subr.bf16.mxu0 0
    %2816 = vmatpush1.bf16.msra.mxu0 0
    %2817 = vmatprep.subr.bf16.mxu0 0
    %2818 = vmatpush1.bf16.msra.mxu0 0
    %2819 = vmatprep.subr.bf16.mxu0 0
    %2820 = vmatpush1.bf16.msra.mxu0 0
    %2821 = vmatprep.subr.bf16.mxu0 0
    %2822 = vmatpush1.bf16.msra.mxu0 0
    %2823 = vmatprep.subr.bf16.mxu0 0
    %2824 = vmatpush1.bf16.msra.mxu0 0
    %2825 = vmatprep.mubr.bf16.mxu0 0
    %2826 = vmatmul.mubr.bf16.gmra.mrb[0].mxu0 %v2791
    %v2827 = vpop.f32.mrb[0].mxu0
    %v2828 = vadd.f32 0.0, %v2827
    %v2829 = vpop.f32.mrb[0].mxu0
    %v2830 = vpop.f32.mrb[0].mxu0
    %v2831 = vadd.f32 0.0, %v2830
    %v2832 = vpop.f32.mrb[0].mxu0
    %2833 = vdwg.mxu0
    %2834 = vmatprep.subr.bf16.mxu0 0
    %2835 = vmatpush1.bf16.msra.mxu0 %v2530
    %2836 = vmatprep.subr.bf16.mxu0 0
    %2837 = vmatpush1.bf16.msra.mxu0 %v2531
    %2838 = vmatprep.subr.bf16.mxu0 0
    %2839 = vmatpush1.bf16.msra.mxu0 0
    %2840 = vmatprep.subr.bf16.mxu0 0
    %2841 = vmatpush1.bf16.msra.mxu0 0
    %2842 = vmatprep.subr.bf16.mxu0 0
    %2843 = vmatpush1.bf16.msra.mxu0 0
    %2844 = vmatprep.subr.bf16.mxu0 0
    %2845 = vmatpush1.bf16.msra.mxu0 0
    %2846 = vmatprep.subr.bf16.mxu0 0
    %2847 = vmatpush1.bf16.msra.mxu0 0
    %2848 = vmatprep.subr.bf16.mxu0 0
    %2849 = vmatpush1.bf16.msra.mxu0 0
    %2850 = vmatprep.subr.bf16.mxu0 0
    %2851 = vmatpush1.bf16.msra.mxu0 0
    %2852 = vmatprep.subr.bf16.mxu0 0
    %2853 = vmatpush1.bf16.msra.mxu0 0
    %2854 = vmatprep.subr.bf16.mxu0 0
    %2855 = vmatpush1.bf16.msra.mxu0 0
    %2856 = vmatprep.subr.bf16.mxu0 0
    %2857 = vmatpush1.bf16.msra.mxu0 0
    %2858 = vmatprep.subr.bf16.mxu0 0
    %2859 = vmatpush1.bf16.msra.mxu0 0
    %2860 = vmatprep.subr.bf16.mxu0 0
    %2861 = vmatpush1.bf16.msra.mxu0 0
    %2862 = vmatprep.subr.bf16.mxu0 0
    %2863 = vmatpush1.bf16.msra.mxu0 0
    %2864 = vmatprep.subr.bf16.mxu0 0
    %2865 = vmatpush1.bf16.msra.mxu0 0
    %2866 = vmatprep.mubr.bf16.mxu0 0
    %2867 = vmatmul.mubr.bf16.gmra.mrb[0].mxu0 %v2791
    %v2868 = vpop.f32.mrb[0].mxu0
    %v2869 = vadd.f32 0.0, %v2868
    %v2870 = vpop.f32.mrb[0].mxu0
    %v2871 = vpop.f32.mrb[0].mxu0
    %v2872 = vadd.f32 0.0, %v2871
    %v2873 = vpop.f32.mrb[0].mxu0
    %2874 = vdwg.mxu0
    %v2875 = vmax.f32 %v2828, %v2869
    %v2876 = vmax.f32 %v2831, %v2872
    %2877 = vmatprep.subr.bf16.mxu0 0
    %2878 = vmatpush1.bf16.msra.mxu0 %v2585
    %2879 = vmatprep.subr.bf16.mxu0 0
    %2880 = vmatpush1.bf16.msra.mxu0 %v2586
    %2881 = vmatprep.subr.bf16.mxu0 0
    %2882 = vmatpush1.bf16.msra.mxu0 0
    %2883 = vmatprep.subr.bf16.mxu0 0
    %2884 = vmatpush1.bf16.msra.mxu0 0
    %2885 = vmatprep.subr.bf16.mxu0 0
    %2886 = vmatpush1.bf16.msra.mxu0 0
    %2887 = vmatprep.subr.bf16.mxu0 0
    %2888 = vmatpush1.bf16.msra.mxu0 0
    %2889 = vmatprep.subr.bf16.mxu0 0
    %2890 = vmatpush1.bf16.msra.mxu0 0
    %2891 = vmatprep.subr.bf16.mxu0 0
    %2892 = vmatpush1.bf16.msra.mxu0 0
    %2893 = vmatprep.subr.bf16.mxu0 0
    %2894 = vmatpush1.bf16.msra.mxu0 0
    %2895 = vmatprep.subr.bf16.mxu0 0
    %2896 = vmatpush1.bf16.msra.mxu0 0
    %2897 = vmatprep.subr.bf16.mxu0 0
    %2898 = vmatpush1.bf16.msra.mxu0 0
    %2899 = vmatprep.subr.bf16.mxu0 0
    %2900 = vmatpush1.bf16.msra.mxu0 0
    %2901 = vmatprep.subr.bf16.mxu0 0
    %2902 = vmatpush1.bf16.msra.mxu0 0
    %2903 = vmatprep.subr.bf16.mxu0 0
    %2904 = vmatpush1.bf16.msra.mxu0 0
    %2905 = vmatprep.subr.bf16.mxu0 0
    %2906 = vmatpush1.bf16.msra.mxu0 0
    %2907 = vmatprep.subr.bf16.mxu0 0
    %2908 = vmatpush1.bf16.msra.mxu0 0
    %2909 = vmatprep.mubr.bf16.mxu0 0
    %2910 = vmatmul.mubr.bf16.gmra.mrb[0].mxu0 %v2791
    %v2911 = vpop.f32.mrb[0].mxu0
    %v2912 = vadd.f32 0.0, %v2911
    %v2913 = vpop.f32.mrb[0].mxu0
    %v2914 = vpop.f32.mrb[0].mxu0
    %v2915 = vadd.f32 0.0, %v2914
    %v2916 = vpop.f32.mrb[0].mxu0
    %2917 = vdwg.mxu0
    %v2918 = vmax.f32 %v2875, %v2912
    %v2919 = vmax.f32 %v2876, %v2915
    %2920 = vmatprep.subr.bf16.mxu0 0
    %2921 = vmatpush1.bf16.msra.mxu0 %v2640
    %2922 = vmatprep.subr.bf16.mxu0 0
    %2923 = vmatpush1.bf16.msra.mxu0 %v2641
    %2924 = vmatprep.subr.bf16.mxu0 0
    %2925 = vmatpush1.bf16.msra.mxu0 0
    %2926 = vmatprep.subr.bf16.mxu0 0
    %2927 = vmatpush1.bf16.msra.mxu0 0
    %2928 = vmatprep.subr.bf16.mxu0 0
    %2929 = vmatpush1.bf16.msra.mxu0 0
    %2930 = vmatprep.subr.bf16.mxu0 0
    %2931 = vmatpush1.bf16.msra.mxu0 0
    %2932 = vmatprep.subr.bf16.mxu0 0
    %2933 = vmatpush1.bf16.msra.mxu0 0
    %2934 = vmatprep.subr.bf16.mxu0 0
    %2935 = vmatpush1.bf16.msra.mxu0 0
    %2936 = vmatprep.subr.bf16.mxu0 0
    %2937 = vmatpush1.bf16.msra.mxu0 0
    %2938 = vmatprep.subr.bf16.mxu0 0
    %2939 = vmatpush1.bf16.msra.mxu0 0
    %2940 = vmatprep.subr.bf16.mxu0 0
    %2941 = vmatpush1.bf16.msra.mxu0 0
    %2942 = vmatprep.subr.bf16.mxu0 0
    %2943 = vmatpush1.bf16.msra.mxu0 0
    %2944 = vmatprep.subr.bf16.mxu0 0
    %2945 = vmatpush1.bf16.msra.mxu0 0
    %2946 = vmatprep.subr.bf16.mxu0 0
    %2947 = vmatpush1.bf16.msra.mxu0 0
    %2948 = vmatprep.subr.bf16.mxu0 0
    %2949 = vmatpush1.bf16.msra.mxu0 0
    %2950 = vmatprep.subr.bf16.mxu0 0
    %2951 = vmatpush1.bf16.msra.mxu0 0
    %2952 = vmatprep.mubr.bf16.mxu0 0
    %2953 = vmatmul.mubr.bf16.gmra.mrb[0].mxu0 %v2791
    %v2954 = vpop.f32.mrb[0].mxu0
    %v2955 = vadd.f32 0.0, %v2954
    %v2956 = vpop.f32.mrb[0].mxu0
    %v2957 = vpop.f32.mrb[0].mxu0
    %v2958 = vadd.f32 0.0, %v2957
    %v2959 = vpop.f32.mrb[0].mxu0
    %2960 = vdwg.mxu0
    %v2961 = vmax.f32 %v2918, %v2955
    %v2962 = vmax.f32 %v2919, %v2958
    %v2963 = vsub.f32 %v2787, %v2961
    %v2964 = vsub.f32 %v2788, %v2962
    %v2965 = vmul.f32 %v2963, 1.442695
    %v2966 = vpow.pop %v2965
    %v2967 = vmul.f32 %v2964, 1.442695
    %v2968 = vpow.pop %v2967
    %v2969 = vpack.c.bf16 %v2968, %v2966
    %v2971 = vsel %vm2477, %v2969, 0
    %2973 = vmatprep.subr.bf16.mxu0 0
    %2974 = vmatpush1.bf16.msra.mxu0 %v2702
    %2975 = vmatprep.subr.bf16.mxu0 0
    %2976 = vmatpush1.bf16.msra.mxu0 %v2703
    %2977 = vmatprep.subr.bf16.mxu0 0
    %2978 = vmatpush1.bf16.msra.mxu0 0
    %2979 = vmatprep.subr.bf16.mxu0 0
    %2980 = vmatpush1.bf16.msra.mxu0 0
    %2981 = vmatprep.subr.bf16.mxu0 0
    %2982 = vmatpush1.bf16.msra.mxu0 0
    %2983 = vmatprep.subr.bf16.mxu0 0
    %2984 = vmatpush1.bf16.msra.mxu0 0
    %2985 = vmatprep.subr.bf16.mxu0 0
    %2986 = vmatpush1.bf16.msra.mxu0 0
    %2987 = vmatprep.subr.bf16.mxu0 0
    %2988 = vmatpush1.bf16.msra.mxu0 0
    %2989 = vmatprep.subr.bf16.mxu0 0
    %2990 = vmatpush1.bf16.msra.mxu0 0
    %2991 = vmatprep.subr.bf16.mxu0 0
    %2992 = vmatpush1.bf16.msra.mxu0 0
    %2993 = vmatprep.subr.bf16.mxu0 0
    %2994 = vmatpush1.bf16.msra.mxu0 0
    %2995 = vmatprep.subr.bf16.mxu0 0
    %2996 = vmatpush1.bf16.msra.mxu0 0
    %2997 = vmatprep.subr.bf16.mxu0 0
    %2998 = vmatpush1.bf16.msra.mxu0 0
    %2999 = vmatprep.subr.bf16.mxu0 0
    %3000 = vmatpush1.bf16.msra.mxu0 0
    %3001 = vmatprep.subr.bf16.mxu0 0
    %3002 = vmatpush1.bf16.msra.mxu0 0
    %3003 = vmatprep.subr.bf16.mxu0 0
    %3004 = vmatpush1.bf16.msra.mxu0 0
    %3005 = vmatprep.mubr.bf16.mxu0 0
    %3006 = vmatmul.mubr.bf16.gmra.mrb[0].mxu0 %v2971
    %v3007 = vpop.f32.mrb[0].mxu0
    %v3008 = vadd.f32 0.0, %v3007
    %v3009 = vpop.f32.mrb[0].mxu0
    %v3010 = vpop.f32.mrb[0].mxu0
    %v3011 = vadd.f32 0.0, %v3010
    %v3012 = vpop.f32.mrb[0].mxu0
    %3013 = vdwg.mxu0
    %v3014 = vrcp.pop %v3008
    %v3015 = vrcp.pop %v3011
    %v3016 = vmul.f32 %v2966, %v3014
    %v3017 = vmul.f32 %v2968, %v3015
    %v3018 = vpack.c.bf16 %v3017, %v3016
    %v3019 = vld [vmem:[%s10] sm:$0xff]
    %v3020 = vld [vmem:[%s10 + $0x8] sm:$0xff]
    %v3021 = vld [vmem:[%s10 + $0x10] sm:$0xff]
    %v3022 = vld [vmem:[%s10 + $0x18] sm:$0xff]
    %v3023 = vld [vmem:[%s11] sm:$0x3]
    %v3025 = vlaneseq
    %v3026 = vshrl.u32 %v3025, 7
    %v3027 = vsub.s32 0, %v3026
    %v3028 = vrot.slane %v3023, %v3027
    %v3029 = vlaneseq
    %v3030 = vshrl.u32 %v3029, 7
    %v3031 = vsub.s32 1, %v3030
    %v3032 = vrot.slane %v3023, %v3031
    %v3039 = vunpack.c.l.b16 %v3019
    %v3040 = vunpack.c.h.b16 %v3019
    %v3041 = vunpack.c.l.b16 %v3020
    %v3042 = vunpack.c.h.b16 %v3020
    %v3043 = vunpack.c.l.b16 %v3021
    %v3044 = vunpack.c.h.b16 %v3021
    %v3045 = vunpack.c.l.b16 %v3022
    %v3046 = vunpack.c.h.b16 %v3022
    %v3047 = vpack.c.b16 %v3041, %v3039
    %v3048 = vpack.c.b16 %v3042, %v3040
    %v3049 = vpack.c.b16 %v3045, %v3043
    %v3050 = vpack.c.b16 %v3046, %v3044
    %v3056 = vsel %vm2477, %v3018, 0
    %3058 = vmatprep.subr.bf16.mxu0 %v3048
    %3059 = vmatpush1.bf16.msra.mxu0 %v3047
    %3060 = vmatprep.subr.bf16.mxu0 %v3050
    %3061 = vmatpush1.bf16.msra.mxu0 %v3049
    %3062 = vmatprep.subr.bf16.mxu0 0
    %3063 = vmatpush1.bf16.msra.mxu0 0
    %3064 = vmatprep.subr.bf16.mxu0 0
    %3065 = vmatpush1.bf16.msra.mxu0 0
    %3066 = vmatprep.subr.bf16.mxu0 0
    %3067 = vmatpush1.bf16.msra.mxu0 0
    %3068 = vmatprep.subr.bf16.mxu0 0
    %3069 = vmatpush1.bf16.msra.mxu0 0
    %3070 = vmatprep.subr.bf16.mxu0 0
    %3071 = vmatpush1.bf16.msra.mxu0 0
    %3072 = vmatprep.subr.bf16.mxu0 0
    %3073 = vmatpush1.bf16.msra.mxu0 0
    %3074 = vmatprep.subr.bf16.mxu0 0
    %3075 = vmatpush1.bf16.msra.mxu0 0
    %3076 = vmatprep.subr.bf16.mxu0 0
    %3077 = vmatpush1.bf16.msra.mxu0 0
    %3078 = vmatprep.subr.bf16.mxu0 0
    %3079 = vmatpush1.bf16.msra.mxu0 0
    %3080 = vmatprep.subr.bf16.mxu0 0
    %3081 = vmatpush1.bf16.msra.mxu0 0
    %3082 = vmatprep.subr.bf16.mxu0 0
    %3083 = vmatpush1.bf16.msra.mxu0 0
    %3084 = vmatprep.subr.bf16.mxu0 0
    %3085 = vmatpush1.bf16.msra.mxu0 0
    %3086 = vmatprep.subr.bf16.mxu0 0
    %3087 = vmatpush1.bf16.msra.mxu0 0
    %3088 = vmatprep.subr.bf16.mxu0 0
    %3089 = vmatpush1.bf16.msra.mxu0 0
    %3090 = vmatprep.mubr.bf16.mxu0 0
    %3091 = vmatmul.mubr.bf16.gmra.mrb[0].mxu0 %v3056
    %v3092 = vpop.f32.mrb[0].mxu0
    %v3093 = vadd.f32 %v3028, %v3092
    %v3094 = vpop.f32.mrb[0].mxu0
    %v3095 = vadd.f32 %v3032, %v3094
    %v3096 = vpop.f32.mrb[0].mxu0
    %v3097 = vadd.f32 %v3028, %v3096
    %v3098 = vpop.f32.mrb[0].mxu0
    %v3099 = vadd.f32 %v3032, %v3098
    %3100 = vdwg.mxu0
    %v3101 = vmax.f32 %v3093, 0.0
    %v3102 = vmax.f32 %v3095, 0.0
    %v3103 = vmax.f32 %v3097, 0.0
    %v3104 = vmax.f32 %v3099, 0.0
    %v3105 = vpack.c.bf16 %v3103, %v3101
    %v3106 = vpack.c.bf16 %v3104, %v3102
    %v3107 = vld [vmem:[%s12] sm:$0xff]
    %v3108 = vld [vmem:[%s12 + $0x8] sm:$0xff]
    %v3109 = vld [vmem:[%s12 + $0x10] sm:$0xff]
    %v3110 = vld [vmem:[%s12 + $0x18] sm:$0xff]
    %v3111 = vld [vmem:[%s12 + $0x20] sm:$0xff]
    %v3112 = vld [vmem:[%s12 + $0x28] sm:$0xff]
    %v3113 = vld [vmem:[%s12 + $0x30] sm:$0xff]
    %v3114 = vld [vmem:[%s12 + $0x38] sm:$0xff]
    %v3115 = vld [vmem:[%s12 + $0x40] sm:$0xff]
    %v3116 = vld [vmem:[%s12 + $0x48] sm:$0xff]
    %v3117 = vld [vmem:[%s12 + $0x50] sm:$0xff]
    %v3118 = vld [vmem:[%s12 + $0x58] sm:$0xff]
    %v3119 = vld [vmem:[%s12 + $0x60] sm:$0xff]
    %v3120 = vld [vmem:[%s12 + $0x68] sm:$0xff]
    %v3121 = vld [vmem:[%s12 + $0x70] sm:$0xff]
    %v3122 = vld [vmem:[%s12 + $0x78] sm:$0xff]
    %v3123 = vld [vmem:[%s12 + $0x80] sm:$0xff]
    %v3124 = vld [vmem:[%s12 + $0x88] sm:$0xff]
    %v3125 = vld [vmem:[%s12 + $0x90] sm:$0xff]
    %v3126 = vld [vmem:[%s12 + $0x98] sm:$0xff]
    %v3127 = vld [vmem:[%s12 + $0xa0] sm:$0xff]
    %v3128 = vld [vmem:[%s12 + $0xa8] sm:$0xff]
    %v3129 = vld [vmem:[%s12 + $0xb0] sm:$0xff]
    %v3130 = vld [vmem:[%s12 + $0xb8] sm:$0xff]
    %v3131 = vld [vmem:[%s12 + $0xc0] sm:$0xff]
    %v3132 = vld [vmem:[%s12 + $0xc8] sm:$0xff]
    %v3133 = vld [vmem:[%s12 + $0xd0] sm:$0xff]
    %v3134 = vld [vmem:[%s12 + $0xd8] sm:$0xff]
    %v3135 = vld [vmem:[%s12 + $0xe0] sm:$0xff]
    %v3136 = vld [vmem:[%s12 + $0xe8] sm:$0xff]
    %v3137 = vld [vmem:[%s12 + $0xf0] sm:$0xff]
    %v3138 = vld [vmem:[%s12 + $0xf8] sm:$0xff]
    %v3139 = vld [vmem:[%s12 + $0x100] sm:$0xff]
    %v3140 = vld [vmem:[%s12 + $0x108] sm:$0xff]
    %v3141 = vld [vmem:[%s12 + $0x110] sm:$0xff]
    %v3142 = vld [vmem:[%s12 + $0x118] sm:$0xff]
    %v3143 = vld [vmem:[%s12 + $0x120] sm:$0xff]
    %v3144 = vld [vmem:[%s12 + $0x128] sm:$0xff]
    %v3145 = vld [vmem:[%s12 + $0x130] sm:$0xff]
    %v3146 = vld [vmem:[%s12 + $0x138] sm:$0xff]
    %v3147 = vld [vmem:[%s12 + $0x140] sm:$0xff]
    %v3148 = vld [vmem:[%s12 + $0x148] sm:$0xff]
    %v3149 = vld [vmem:[%s12 + $0x150] sm:$0xff]
    %v3150 = vld [vmem:[%s12 + $0x158] sm:$0xff]
    %v3151 = vld [vmem:[%s12 + $0x160] sm:$0xff]
    %v3152 = vld [vmem:[%s12 + $0x168] sm:$0xff]
    %v3153 = vld [vmem:[%s12 + $0x170] sm:$0xff]
    %v3154 = vld [vmem:[%s12 + $0x178] sm:$0xff]
    %v3155 = vld [vmem:[%s12 + $0x180] sm:$0xff]
    %v3156 = vld [vmem:[%s12 + $0x188] sm:$0xff]
    %v3157 = vld [vmem:[%s12 + $0x190] sm:$0xff]
    %v3158 = vld [vmem:[%s12 + $0x198] sm:$0xff]
    %v3159 = vld [vmem:[%s12 + $0x1a0] sm:$0xff]
    %v3160 = vld [vmem:[%s12 + $0x1a8] sm:$0xff]
    %v3161 = vld [vmem:[%s12 + $0x1b0] sm:$0xff]
    %v3162 = vld [vmem:[%s12 + $0x1b8] sm:$0xff]
    %v3163 = vld [vmem:[%s12 + $0x1c0] sm:$0xff]
    %v3164 = vld [vmem:[%s12 + $0x1c8] sm:$0xff]
    %v3165 = vld [vmem:[%s12 + $0x1d0] sm:$0xff]
    %v3166 = vld [vmem:[%s12 + $0x1d8] sm:$0xff]
    %v3167 = vld [vmem:[%s12 + $0x1e0] sm:$0xff]
    %v3168 = vld [vmem:[%s12 + $0x1e8] sm:$0xff]
    %v3169 = vld [vmem:[%s12 + $0x1f0] sm:$0xff]
    %v3170 = vld [vmem:[%s12 + $0x1f8] sm:$0xff]
    %v3171 = vld [vmem:[%s13] sm:$0xf]
    %v3173 = vlaneseq
    %v3174 = vshrl.u32 %v3173, 7
    %v3175 = vsub.s32 0, %v3174
    %v3176 = vrot.slane %v3171, %v3175
    %v3177 = vlaneseq
    %v3178 = vshrl.u32 %v3177, 7
    %v3179 = vsub.s32 1, %v3178
    %v3180 = vrot.slane %v3171, %v3179
    %v3181 = vlaneseq
    %v3182 = vshrl.u32 %v3181, 7
    %v3183 = vsub.s32 2, %v3182
    %v3184 = vrot.slane %v3171, %v3183
    %v3185 = vlaneseq
    %v3186 = vshrl.u32 %v3185, 7
    %v3187 = vsub.s32 3, %v3186
    %v3188 = vrot.slane %v3171, %v3187
    %v3257 = vunpack.c.l.b16 %v3107
    %v3258 = vunpack.c.h.b16 %v3107
    %v3259 = vunpack.c.l.b16 %v3108
    %v3260 = vunpack.c.h.b16 %v3108
    %v3261 = vunpack.c.l.b16 %v3109
    %v3262 = vunpack.c.h.b16 %v3109
    %v3263 = vunpack.c.l.b16 %v3110
    %v3264 = vunpack.c.h.b16 %v3110
    %v3265 = vunpack.c.l.b16 %v3111
    %v3266 = vunpack.c.h.b16 %v3111
    %v3267 = vunpack.c.l.b16 %v3112
    %v3268 = vunpack.c.h.b16 %v3112
    %v3269 = vunpack.c.l.b16 %v3113
    %v3270 = vunpack.c.h.b16 %v3113
    %v3271 = vunpack.c.l.b16 %v3114
    %v3272 = vunpack.c.h.b16 %v3114
    %v3273 = vunpack.c.l.b16 %v3115
    %v3274 = vunpack.c.h.b16 %v3115
    %v3275 = vunpack.c.l.b16 %v3116
    %v3276 = vunpack.c.h.b16 %v3116
    %v3277 = vunpack.c.l.b16 %v3117
    %v3278 = vunpack.c.h.b16 %v3117
    %v3279 = vunpack.c.l.b16 %v3118
    %v3280 = vunpack.c.h.b16 %v3118
    %v3281 = vunpack.c.l.b16 %v3119
    %v3282 = vunpack.c.h.b16 %v3119
    %v3283 = vunpack.c.l.b16 %v3120
    %v3284 = vunpack.c.h.b16 %v3120
    %v3285 = vunpack.c.l.b16 %v3121
    %v3286 = vunpack.c.h.b16 %v3121
    %v3287 = vunpack.c.l.b16 %v3122
    %v3288 = vunpack.c.h.b16 %v3122
    %v3289 = vunpack.c.l.b16 %v3123
    %v3290 = vunpack.c.h.b16 %v3123
    %v3291 = vunpack.c.l.b16 %v3124
    %v3292 = vunpack.c.h.b16 %v3124
    %v3293 = vunpack.c.l.b16 %v3125
    %v3294 = vunpack.c.h.b16 %v3125
    %v3295 = vunpack.c.l.b16 %v3126
    %v3296 = vunpack.c.h.b16 %v3126
    %v3297 = vunpack.c.l.b16 %v3127
    %v3298 = vunpack.c.h.b16 %v3127
    %v3299 = vunpack.c.l.b16 %v3128
    %v3300 = vunpack.c.h.b16 %v3128
    %v3301 = vunpack.c.l.b16 %v3129
    %v3302 = vunpack.c.h.b16 %v3129
    %v3303 = vunpack.c.l.b16 %v3130
    %v3304 = vunpack.c.h.b16 %v3130
    %v3305 = vunpack.c.l.b16 %v3131
    %v3306 = vunpack.c.h.b16 %v3131
    %v3307 = vunpack.c.l.b16 %v3132
    %v3308 = vunpack.c.h.b16 %v3132
    %v3309 = vunpack.c.l.b16 %v3133
    %v3310 = vunpack.c.h.b16 %v3133
    %v3311 = vunpack.c.l.b16 %v3134
    %v3312 = vunpack.c.h.b16 %v3134
    %v3313 = vunpack.c.l.b16 %v3135
    %v3314 = vunpack.c.h.b16 %v3135
    %v3315 = vunpack.c.l.b16 %v3136
    %v3316 = vunpack.c.h.b16 %v3136
    %v3317 = vunpack.c.l.b16 %v3137
    %v3318 = vunpack.c.h.b16 %v3137
    %v3319 = vunpack.c.l.b16 %v3138
    %v3320 = vunpack.c.h.b16 %v3138
    %v3321 = vunpack.c.l.b16 %v3139
    %v3322 = vunpack.c.h.b16 %v3139
    %v3323 = vunpack.c.l.b16 %v3140
    %v3324 = vunpack.c.h.b16 %v3140
    %v3325 = vunpack.c.l.b16 %v3141
    %v3326 = vunpack.c.h.b16 %v3141
    %v3327 = vunpack.c.l.b16 %v3142
    %v3328 = vunpack.c.h.b16 %v3142
    %v3329 = vunpack.c.l.b16 %v3143
    %v3330 = vunpack.c.h.b16 %v3143
    %v3331 = vunpack.c.l.b16 %v3144
    %v3332 = vunpack.c.h.b16 %v3144
    %v3333 = vunpack.c.l.b16 %v3145
    %v3334 = vunpack.c.h.b16 %v3145
    %v3335 = vunpack.c.l.b16 %v3146
    %v3336 = vunpack.c.h.b16 %v3146
    %v3337 = vunpack.c.l.b16 %v3147
    %v3338 = vunpack.c.h.b16 %v3147
    %v3339 = vunpack.c.l.b16 %v3148
    %v3340 = vunpack.c.h.b16 %v3148
    %v3341 = vunpack.c.l.b16 %v3149
    %v3342 = vunpack.c.h.b16 %v3149
    %v3343 = vunpack.c.l.b16 %v3150
    %v3344 = vunpack.c.h.b16 %v3150
    %v3345 = vunpack.c.l.b16 %v3151
    %v3346 = vunpack.c.h.b16 %v3151
    %v3347 = vunpack.c.l.b16 %v3152
    %v3348 = vunpack.c.h.b16 %v3152
    %v3349 = vunpack.c.l.b16 %v3153
    %v3350 = vunpack.c.h.b16 %v3153
    %v3351 = vunpack.c.l.b16 %v3154
    %v3352 = vunpack.c.h.b16 %v3154
    %v3353 = vunpack.c.l.b16 %v3155
    %v3354 = vunpack.c.h.b16 %v3155
    %v3355 = vunpack.c.l.b16 %v3156
    %v3356 = vunpack.c.h.b16 %v3156
    %v3357 = vunpack.c.l.b16 %v3157
    %v3358 = vunpack.c.h.b16 %v3157
    %v3359 = vunpack.c.l.b16 %v3158
    %v3360 = vunpack.c.h.b16 %v3158
    %v3361 = vunpack.c.l.b16 %v3159
    %v3362 = vunpack.c.h.b16 %v3159
    %v3363 = vunpack.c.l.b16 %v3160
    %v3364 = vunpack.c.h.b16 %v3160
    %v3365 = vunpack.c.l.b16 %v3161
    %v3366 = vunpack.c.h.b16 %v3161
    %v3367 = vunpack.c.l.b16 %v3162
    %v3368 = vunpack.c.h.b16 %v3162
    %v3369 = vunpack.c.l.b16 %v3163
    %v3370 = vunpack.c.h.b16 %v3163
    %v3371 = vunpack.c.l.b16 %v3164
    %v3372 = vunpack.c.h.b16 %v3164
    %v3373 = vunpack.c.l.b16 %v3165
    %v3374 = vunpack.c.h.b16 %v3165
    %v3375 = vunpack.c.l.b16 %v3166
    %v3376 = vunpack.c.h.b16 %v3166
    %v3377 = vunpack.c.l.b16 %v3167
    %v3378 = vunpack.c.h.b16 %v3167
    %v3379 = vunpack.c.l.b16 %v3168
    %v3380 = vunpack.c.h.b16 %v3168
    %v3381 = vunpack.c.l.b16 %v3169
    %v3382 = vunpack.c.h.b16 %v3169
    %v3383 = vunpack.c.l.b16 %v3170
    %v3384 = vunpack.c.h.b16 %v3170
    %v3385 = vpack.c.b16 %v3261, %v3257
    %v3386 = vpack.c.b16 %v3262, %v3258
    %v3387 = vpack.c.b16 %v3263, %v3259
    %v3388 = vpack.c.b16 %v3264, %v3260
    %v3389 = vpack.c.b16 %v3269, %v3265
    %v3390 = vpack.c.b16 %v3270, %v3266
    %v3391 = vpack.c.b16 %v3271, %v3267
    %v3392 = vpack.c.b16 %v3272, %v3268
    %v3393 = vpack.c.b16 %v3277, %v3273
    %v3394 = vpack.c.b16 %v3278, %v3274
    %v3395 = vpack.c.b16 %v3279, %v3275
    %v3396 = vpack.c.b16 %v3280, %v3276
    %v3397 = vpack.c.b16 %v3285, %v3281
    %v3398 = vpack.c.b16 %v3286, %v3282
    %v3399 = vpack.c.b16 %v3287, %v3283
    %v3400 = vpack.c.b16 %v3288, %v3284
    %v3401 = vpack.c.b16 %v3293, %v3289
    %v3402 = vpack.c.b16 %v3294, %v3290
    %v3403 = vpack.c.b16 %v3295, %v3291
    %v3404 = vpack.c.b16 %v3296, %v3292
    %v3405 = vpack.c.b16 %v3301, %v3297
    %v3406 = vpack.c.b16 %v3302, %v3298
    %v3407 = vpack.c.b16 %v3303, %v3299
    %v3408 = vpack.c.b16 %v3304, %v3300
    %v3409 = vpack.c.b16 %v3309, %v3305
    %v3410 = vpack.c.b16 %v3310, %v3306
    %v3411 = vpack.c.b16 %v3311, %v3307
    %v3412 = vpack.c.b16 %v3312, %v3308
    %v3413 = vpack.c.b16 %v3317, %v3313
    %v3414 = vpack.c.b16 %v3318, %v3314
    %v3415 = vpack.c.b16 %v3319, %v3315
    %v3416 = vpack.c.b16 %v3320, %v3316
    %v3417 = vpack.c.b16 %v3325, %v3321
    %v3418 = vpack.c.b16 %v3326, %v3322
    %v3419 = vpack.c.b16 %v3327, %v3323
    %v3420 = vpack.c.b16 %v3328, %v3324
    %v3421 = vpack.c.b16 %v3333, %v3329
    %v3422 = vpack.c.b16 %v3334, %v3330
    %v3423 = vpack.c.b16 %v3335, %v3331
    %v3424 = vpack.c.b16 %v3336, %v3332
    %v3425 = vpack.c.b16 %v3341, %v3337
    %v3426 = vpack.c.b16 %v3342, %v3338
    %v3427 = vpack.c.b16 %v3343, %v3339
    %v3428 = vpack.c.b16 %v3344, %v3340
    %v3429 = vpack.c.b16 %v3349, %v3345
    %v3430 = vpack.c.b16 %v3350, %v3346
    %v3431 = vpack.c.b16 %v3351, %v3347
    %v3432 = vpack.c.b16 %v3352, %v3348
    %v3433 = vpack.c.b16 %v3357, %v3353
    %v3434 = vpack.c.b16 %v3358, %v3354
    %v3435 = vpack.c.b16 %v3359, %v3355
    %v3436 = vpack.c.b16 %v3360, %v3356
    %v3437 = vpack.c.b16 %v3365, %v3361
    %v3438 = vpack.c.b16 %v3366, %v3362
    %v3439 = vpack.c.b16 %v3367, %v3363
    %v3440 = vpack.c.b16 %v3368, %v3364
    %v3441 = vpack.c.b16 %v3373, %v3369
    %v3442 = vpack.c.b16 %v3374, %v3370
    %v3443 = vpack.c.b16 %v3375, %v3371
    %v3444 = vpack.c.b16 %v3376, %v3372
    %v3445 = vpack.c.b16 %v3381, %v3377
    %v3446 = vpack.c.b16 %v3382, %v3378
    %v3447 = vpack.c.b16 %v3383, %v3379
    %v3448 = vpack.c.b16 %v3384, %v3380
    %3513 = vmatprep.subr.bf16.mxu0 %v3386
    %3514 = vmatpush1.bf16.msra.mxu0 %v3385
    %3515 = vmatprep.subr.bf16.mxu0 %v3390
    %3516 = vmatpush1.bf16.msra.mxu0 %v3389
    %3517 = vmatprep.subr.bf16.mxu0 %v3394
    %3518 = vmatpush1.bf16.msra.mxu0 %v3393
    %3519 = vmatprep.subr.bf16.mxu0 %v3398
    %3520 = vmatpush1.bf16.msra.mxu0 %v3397
    %3521 = vmatprep.subr.bf16.mxu0 %v3402
    %3522 = vmatpush1.bf16.msra.mxu0 %v3401
    %3523 = vmatprep.subr.bf16.mxu0 %v3406
    %3524 = vmatpush1.bf16.msra.mxu0 %v3405
    %3525 = vmatprep.subr.bf16.mxu0 %v3410
    %3526 = vmatpush1.bf16.msra.mxu0 %v3409
    %3527 = vmatprep.subr.bf16.mxu0 %v3414
    %3528 = vmatpush1.bf16.msra.mxu0 %v3413
    %3529 = vmatprep.subr.bf16.mxu0 %v3418
    %3530 = vmatpush1.bf16.msra.mxu0 %v3417
    %3531 = vmatprep.subr.bf16.mxu0 %v3422
    %3532 = vmatpush1.bf16.msra.mxu0 %v3421
    %3533 = vmatprep.subr.bf16.mxu0 %v3426
    %3534 = vmatpush1.bf16.msra.mxu0 %v3425
    %3535 = vmatprep.subr.bf16.mxu0 %v3430
    %3536 = vmatpush1.bf16.msra.mxu0 %v3429
    %3537 = vmatprep.subr.bf16.mxu0 %v3434
    %3538 = vmatpush1.bf16.msra.mxu0 %v3433
    %3539 = vmatprep.subr.bf16.mxu0 %v3438
    %3540 = vmatpush1.bf16.msra.mxu0 %v3437
    %3541 = vmatprep.subr.bf16.mxu0 %v3442
    %3542 = vmatpush1.bf16.msra.mxu0 %v3441
    %3543 = vmatprep.subr.bf16.mxu0 %v3446
    %3544 = vmatpush1.bf16.msra.mxu0 %v3445
    %3545 = vmatprep.mubr.bf16.mxu0 %v3106
    %3546 = vmatmul.mubr.bf16.gmra.mrb[0].mxu0 %v3105
    %v3547 = vpop.f32.mrb[0].mxu0
    %v3548 = vadd.f32 %v3176, %v3547
    %v3549 = vpop.f32.mrb[0].mxu0
    %v3550 = vadd.f32 %v3180, %v3549
    %v3551 = vpop.f32.mrb[0].mxu0
    %v3552 = vadd.f32 %v3176, %v3551
    %v3553 = vpop.f32.mrb[0].mxu0
    %v3554 = vadd.f32 %v3180, %v3553
    %3555 = vdwg.mxu0
    %3556 = vmatprep.subr.bf16.mxu0 %v3388
    %3557 = vmatpush1.bf16.msra.mxu0 %v3387
    %3558 = vmatprep.subr.bf16.mxu0 %v3392
    %3559 = vmatpush1.bf16.msra.mxu0 %v3391
    %3560 = vmatprep.subr.bf16.mxu0 %v3396
    %3561 = vmatpush1.bf16.msra.mxu0 %v3395
    %3562 = vmatprep.subr.bf16.mxu0 %v3400
    %3563 = vmatpush1.bf16.msra.mxu0 %v3399
    %3564 = vmatprep.subr.bf16.mxu0 %v3404
    %3565 = vmatpush1.bf16.msra.mxu0 %v3403
    %3566 = vmatprep.subr.bf16.mxu0 %v3408
    %3567 = vmatpush1.bf16.msra.mxu0 %v3407
    %3568 = vmatprep.subr.bf16.mxu0 %v3412
    %3569 = vmatpush1.bf16.msra.mxu0 %v3411
    %3570 = vmatprep.subr.bf16.mxu0 %v3416
    %3571 = vmatpush1.bf16.msra.mxu0 %v3415
    %3572 = vmatprep.subr.bf16.mxu0 %v3420
    %3573 = vmatpush1.bf16.msra.mxu0 %v3419
    %3574 = vmatprep.subr.bf16.mxu0 %v3424
    %3575 = vmatpush1.bf16.msra.mxu0 %v3423
    %3576 = vmatprep.subr.bf16.mxu0 %v3428
    %3577 = vmatpush1.bf16.msra.mxu0 %v3427
    %3578 = vmatprep.subr.bf16.mxu0 %v3432
    %3579 = vmatpush1.bf16.msra.mxu0 %v3431
    %3580 = vmatprep.subr.bf16.mxu0 %v3436
    %3581 = vmatpush1.bf16.msra.mxu0 %v3435
    %3582 = vmatprep.subr.bf16.mxu0 %v3440
    %3583 = vmatpush1.bf16.msra.mxu0 %v3439
    %3584 = vmatprep.subr.bf16.mxu0 %v3444
    %3585 = vmatpush1.bf16.msra.mxu0 %v3443
    %3586 = vmatprep.subr.bf16.mxu0 %v3448
    %3587 = vmatpush1.bf16.msra.mxu0 %v3447
    %3588 = vmatprep.mubr.bf16.mxu0 %v3106
    %3589 = vmatmul.mubr.bf16.gmra.mrb[0].mxu0 %v3105
    %v3590 = vpop.f32.mrb[0].mxu0
    %v3591 = vadd.f32 %v3184, %v3590
    %v3592 = vpop.f32.mrb[0].mxu0
    %v3593 = vadd.f32 %v3188, %v3592
    %v3594 = vpop.f32.mrb[0].mxu0
    %v3595 = vadd.f32 %v3184, %v3594
    %v3596 = vpop.f32.mrb[0].mxu0
    %v3597 = vadd.f32 %v3188, %v3596
    %3598 = vdwg.mxu0
    %v3599 = vmax.f32 %v3548, 0.0
    %v3600 = vmax.f32 %v3550, 0.0
    %v3601 = vmax.f32 %v3591, 0.0
    %v3602 = vmax.f32 %v3593, 0.0
    %v3603 = vmax.f32 %v3552, 0.0
    %v3604 = vmax.f32 %v3554, 0.0
    %v3605 = vmax.f32 %v3595, 0.0
    %v3606 = vmax.f32 %v3597, 0.0
    %v3607 = vpack.c.bf16 %v3603, %v3599
    %v3608 = vpack.c.bf16 %v3604, %v3600
    %v3609 = vpack.c.bf16 %v3605, %v3601
    %v3610 = vpack.c.bf16 %v3606, %v3602
    %v3611 = vld [vmem:[%s14] sm:$0xff]
    %v3612 = vld [vmem:[%s14 + $0x8] sm:$0xff]
    %v3613 = vld [vmem:[%s14 + $0x10] sm:$0xff]
    %v3614 = vld [vmem:[%s14 + $0x18] sm:$0xf]
    %v3615 = vld [vmem:[%s14 + $0x1c] sm:$0xff]
    %v3616 = vld [vmem:[%s14 + $0x24] sm:$0xff]
    %v3617 = vld [vmem:[%s14 + $0x2c] sm:$0xff]
    %v3618 = vld [vmem:[%s14 + $0x34] sm:$0xf]
    %v3619 = vld [vmem:[%s14 + $0x38] sm:$0xff]
    %v3620 = vld [vmem:[%s14 + $0x40] sm:$0xff]
    %v3621 = vld [vmem:[%s14 + $0x48] sm:$0xff]
    %v3622 = vld [vmem:[%s14 + $0x50] sm:$0xf]
    %v3623 = vld [vmem:[%s14 + $0x54] sm:$0xff]
    %v3624 = vld [vmem:[%s14 + $0x5c] sm:$0xff]
    %v3625 = vld [vmem:[%s14 + $0x64] sm:$0xff]
    %v3626 = vld [vmem:[%s14 + $0x6c] sm:$0xf]
    %v3627 = vld [vmem:[%s14 + $0x70] sm:$0xff]
    %v3628 = vld [vmem:[%s14 + $0x78] sm:$0xff]
    %v3629 = vld [vmem:[%s14 + $0x80] sm:$0xff]
    %v3630 = vld [vmem:[%s14 + $0x88] sm:$0xf]
    %v3631 = vld [vmem:[%s14 + $0x8c] sm:$0xff]
    %v3632 = vld [vmem:[%s14 + $0x94] sm:$0xff]
    %v3633 = vld [vmem:[%s14 + $0x9c] sm:$0xff]
    %v3634 = vld [vmem:[%s14 + $0xa4] sm:$0xf]
    %v3635 = vld [vmem:[%s14 + $0xa8] sm:$0xff]
    %v3636 = vld [vmem:[%s14 + $0xb0] sm:$0xff]
    %v3637 = vld [vmem:[%s14 + $0xb8] sm:$0xff]
    %v3638 = vld [vmem:[%s14 + $0xc0] sm:$0xf]
    %v3639 = vld [vmem:[%s14 + $0xc4] sm:$0xff]
    %v3640 = vld [vmem:[%s14 + $0xcc] sm:$0xff]
    %v3641 = vld [vmem:[%s14 + $0xd4] sm:$0xff]
    %v3642 = vld [vmem:[%s14 + $0xdc] sm:$0xf]
    %v3643 = vld [vmem:[%s14 + $0xe0] sm:$0xff]
    %v3644 = vld [vmem:[%s14 + $0xe8] sm:$0xff]
    %v3645 = vld [vmem:[%s14 + $0xf0] sm:$0xff]
    %v3646 = vld [vmem:[%s14 + $0xf8] sm:$0xf]
    %v3647 = vld [vmem:[%s14 + $0xfc] sm:$0xff]
    %v3648 = vld [vmem:[%s14 + $0x104] sm:$0xff]
    %v3649 = vld [vmem:[%s14 + $0x10c] sm:$0xff]
    %v3650 = vld [vmem:[%s14 + $0x114] sm:$0xf]
    %v3651 = vld [vmem:[%s14 + $0x118] sm:$0xff]
    %v3652 = vld [vmem:[%s14 + $0x120] sm:$0xff]
    %v3653 = vld [vmem:[%s14 + $0x128] sm:$0xff]
    %v3654 = vld [vmem:[%s14 + $0x130] sm:$0xf]
    %v3655 = vld [vmem:[%s14 + $0x134] sm:$0xff]
    %v3656 = vld [vmem:[%s14 + $0x13c] sm:$0xff]
    %v3657 = vld [vmem:[%s14 + $0x144] sm:$0xff]
    %v3658 = vld [vmem:[%s14 + $0x14c] sm:$0xf]
    %v3659 = vld [vmem:[%s14 + $0x150] sm:$0xff]
    %v3660 = vld [vmem:[%s14 + $0x158] sm:$0xff]
    %v3661 = vld [vmem:[%s14 + $0x160] sm:$0xff]
    %v3662 = vld [vmem:[%s14 + $0x168] sm:$0xf]
    %v3663 = vld [vmem:[%s14 + $0x16c] sm:$0xff]
    %v3664 = vld [vmem:[%s14 + $0x174] sm:$0xff]
    %v3665 = vld [vmem:[%s14 + $0x17c] sm:$0xff]
    %v3666 = vld [vmem:[%s14 + $0x184] sm:$0xf]
    %v3667 = vld [vmem:[%s14 + $0x188] sm:$0xff]
    %v3668 = vld [vmem:[%s14 + $0x190] sm:$0xff]
    %v3669 = vld [vmem:[%s14 + $0x198] sm:$0xff]
    %v3670 = vld [vmem:[%s14 + $0x1a0] sm:$0xf]
    %v3671 = vld [vmem:[%s14 + $0x1a4] sm:$0xff]
    %v3672 = vld [vmem:[%s14 + $0x1ac] sm:$0xff]
    %v3673 = vld [vmem:[%s14 + $0x1b4] sm:$0xff]
    %v3674 = vld [vmem:[%s14 + $0x1bc] sm:$0xf]
    %v3675 = vld [vmem:[%s14 + $0x1c0] sm:$0xff]
    %v3676 = vld [vmem:[%s14 + $0x1c8] sm:$0xff]
    %v3677 = vld [vmem:[%s14 + $0x1d0] sm:$0xff]
    %v3678 = vld [vmem:[%s14 + $0x1d8] sm:$0xf]
    %v3679 = vld [vmem:[%s14 + $0x1dc] sm:$0xff]
    %v3680 = vld [vmem:[%s14 + $0x1e4] sm:$0xff]
    %v3681 = vld [vmem:[%s14 + $0x1ec] sm:$0xff]
    %v3682 = vld [vmem:[%s14 + $0x1f4] sm:$0xf]
    %v3683 = vld [vmem:[%s14 + $0x1f8] sm:$0xff]
    %v3684 = vld [vmem:[%s14 + $0x200] sm:$0xff]
    %v3685 = vld [vmem:[%s14 + $0x208] sm:$0xff]
    %v3686 = vld [vmem:[%s14 + $0x210] sm:$0xf]
    %v3687 = vld [vmem:[%s14 + $0x214] sm:$0xff]
    %v3688 = vld [vmem:[%s14 + $0x21c] sm:$0xff]
    %v3689 = vld [vmem:[%s14 + $0x224] sm:$0xff]
    %v3690 = vld [vmem:[%s14 + $0x22c] sm:$0xf]
    %v3691 = vld [vmem:[%s14 + $0x230] sm:$0xff]
    %v3692 = vld [vmem:[%s14 + $0x238] sm:$0xff]
    %v3693 = vld [vmem:[%s14 + $0x240] sm:$0xff]
    %v3694 = vld [vmem:[%s14 + $0x248] sm:$0xf]
    %v3695 = vld [vmem:[%s14 + $0x24c] sm:$0xff]
    %v3696 = vld [vmem:[%s14 + $0x254] sm:$0xff]
    %v3697 = vld [vmem:[%s14 + $0x25c] sm:$0xff]
    %v3698 = vld [vmem:[%s14 + $0x264] sm:$0xf]
    %v3699 = vld [vmem:[%s14 + $0x268] sm:$0xff]
    %v3700 = vld [vmem:[%s14 + $0x270] sm:$0xff]
    %v3701 = vld [vmem:[%s14 + $0x278] sm:$0xff]
    %v3702 = vld [vmem:[%s14 + $0x280] sm:$0xf]
    %v3703 = vld [vmem:[%s14 + $0x284] sm:$0xff]
    %v3704 = vld [vmem:[%s14 + $0x28c] sm:$0xff]
    %v3705 = vld [vmem:[%s14 + $0x294] sm:$0xff]
    %v3706 = vld [vmem:[%s14 + $0x29c] sm:$0xf]
    %v3707 = vld [vmem:[%s14 + $0x2a0] sm:$0xff]
    %v3708 = vld [vmem:[%s14 + $0x2a8] sm:$0xff]
    %v3709 = vld [vmem:[%s14 + $0x2b0] sm:$0xff]
    %v3710 = vld [vmem:[%s14 + $0x2b8] sm:$0xf]
    %v3711 = vld [vmem:[%s14 + $0x2bc] sm:$0xff]
    %v3712 = vld [vmem:[%s14 + $0x2c4] sm:$0xff]
    %v3713 = vld [vmem:[%s14 + $0x2cc] sm:$0xff]
    %v3714 = vld [vmem:[%s14 + $0x2d4] sm:$0xf]
    %v3715 = vld [vmem:[%s14 + $0x2d8] sm:$0xff]
    %v3716 = vld [vmem:[%s14 + $0x2e0] sm:$0xff]
    %v3717 = vld [vmem:[%s14 + $0x2e8] sm:$0xff]
    %v3718 = vld [vmem:[%s14 + $0x2f0] sm:$0xf]
    %v3719 = vld [vmem:[%s14 + $0x2f4] sm:$0xff]
    %v3720 = vld [vmem:[%s14 + $0x2fc] sm:$0xff]
    %v3721 = vld [vmem:[%s14 + $0x304] sm:$0xff]
    %v3722 = vld [vmem:[%s14 + $0x30c] sm:$0xf]
    %v3723 = vld [vmem:[%s14 + $0x310] sm:$0xff]
    %v3724 = vld [vmem:[%s14 + $0x318] sm:$0xff]
    %v3725 = vld [vmem:[%s14 + $0x320] sm:$0xff]
    %v3726 = vld [vmem:[%s14 + $0x328] sm:$0xf]
    %v3727 = vld [vmem:[%s14 + $0x32c] sm:$0xff]
    %v3728 = vld [vmem:[%s14 + $0x334] sm:$0xff]
    %v3729 = vld [vmem:[%s14 + $0x33c] sm:$0xff]
    %v3730 = vld [vmem:[%s14 + $0x344] sm:$0xf]
    %v3731 = vld [vmem:[%s14 + $0x348] sm:$0xff]
    %v3732 = vld [vmem:[%s14 + $0x350] sm:$0xff]
    %v3733 = vld [vmem:[%s14 + $0x358] sm:$0xff]
    %v3734 = vld [vmem:[%s14 + $0x360] sm:$0xf]
    %v3735 = vld [vmem:[%s14 + $0x364] sm:$0xff]
    %v3736 = vld [vmem:[%s14 + $0x36c] sm:$0xff]
    %v3737 = vld [vmem:[%s14 + $0x374] sm:$0xff]
    %v3738 = vld [vmem:[%s14 + $0x37c] sm:$0xf]
    %v3739 = vld [vmem:[%s14 + $0x380] sm:$0xff]
    %v3740 = vld [vmem:[%s14 + $0x388] sm:$0xff]
    %v3741 = vld [vmem:[%s14 + $0x390] sm:$0xff]
    %v3742 = vld [vmem:[%s14 + $0x398] sm:$0xf]
    %v3743 = vld [vmem:[%s14 + $0x39c] sm:$0xff]
    %v3744 = vld [vmem:[%s14 + $0x3a4] sm:$0xff]
    %v3745 = vld [vmem:[%s14 + $0x3ac] sm:$0xff]
    %v3746 = vld [vmem:[%s14 + $0x3b4] sm:$0xf]
    %v3747 = vld [vmem:[%s14 + $0x3b8] sm:$0xff]
    %v3748 = vld [vmem:[%s14 + $0x3c0] sm:$0xff]
    %v3749 = vld [vmem:[%s14 + $0x3c8] sm:$0xff]
    %v3750 = vld [vmem:[%s14 + $0x3d0] sm:$0xf]
    %v3751 = vld [vmem:[%s14 + $0x3d4] sm:$0xff]
    %v3752 = vld [vmem:[%s14 + $0x3dc] sm:$0xff]
    %v3753 = vld [vmem:[%s14 + $0x3e4] sm:$0xff]
    %v3754 = vld [vmem:[%s14 + $0x3ec] sm:$0xf]
    %v3755 = vld [vmem:[%s14 + $0x3f0] sm:$0xff]
    %v3756 = vld [vmem:[%s14 + $0x3f8] sm:$0xff]
    %v3757 = vld [vmem:[%s14 + $0x400] sm:$0xff]
    %v3758 = vld [vmem:[%s14 + $0x408] sm:$0xf]
    %v3759 = vld [vmem:[%s14 + $0x40c] sm:$0xff]
    %v3760 = vld [vmem:[%s14 + $0x414] sm:$0xff]
    %v3761 = vld [vmem:[%s14 + $0x41c] sm:$0xff]
    %v3762 = vld [vmem:[%s14 + $0x424] sm:$0xf]
    %v3763 = vld [vmem:[%s14 + $0x428] sm:$0xff]
    %v3764 = vld [vmem:[%s14 + $0x430] sm:$0xff]
    %v3765 = vld [vmem:[%s14 + $0x438] sm:$0xff]
    %v3766 = vld [vmem:[%s14 + $0x440] sm:$0xf]
    %v3767 = vld [vmem:[%s14 + $0x444] sm:$0xff]
    %v3768 = vld [vmem:[%s14 + $0x44c] sm:$0xff]
    %v3769 = vld [vmem:[%s14 + $0x454] sm:$0xff]
    %v3770 = vld [vmem:[%s14 + $0x45c] sm:$0xf]
    %v3771 = vld [vmem:[%s14 + $0x460] sm:$0xff]
    %v3772 = vld [vmem:[%s14 + $0x468] sm:$0xff]
    %v3773 = vld [vmem:[%s14 + $0x470] sm:$0xff]
    %v3774 = vld [vmem:[%s14 + $0x478] sm:$0xf]
    %v3775 = vld [vmem:[%s14 + $0x47c] sm:$0xff]
    %v3776 = vld [vmem:[%s14 + $0x484] sm:$0xff]
    %v3777 = vld [vmem:[%s14 + $0x48c] sm:$0xff]
    %v3778 = vld [vmem:[%s14 + $0x494] sm:$0xf]
    %v3779 = vld [vmem:[%s14 + $0x498] sm:$0xff]
    %v3780 = vld [vmem:[%s14 + $0x4a0] sm:$0xff]
    %v3781 = vld [vmem:[%s14 + $0x4a8] sm:$0xff]
    %v3782 = vld [vmem:[%s14 + $0x4b0] sm:$0xf]
    %v3783 = vld [vmem:[%s14 + $0x4b4] sm:$0xff]
    %v3784 = vld [vmem:[%s14 + $0x4bc] sm:$0xff]
    %v3785 = vld [vmem:[%s14 + $0x4c4] sm:$0xff]
    %v3786 = vld [vmem:[%s14 + $0x4cc] sm:$0xf]
    %v3787 = vld [vmem:[%s14 + $0x4d0] sm:$0xff]
    %v3788 = vld [vmem:[%s14 + $0x4d8] sm:$0xff]
    %v3789 = vld [vmem:[%s14 + $0x4e0] sm:$0xff]
    %v3790 = vld [vmem:[%s14 + $0x4e8] sm:$0xf]
    %v3791 = vld [vmem:[%s14 + $0x4ec] sm:$0xff]
    %v3792 = vld [vmem:[%s14 + $0x4f4] sm:$0xff]
    %v3793 = vld [vmem:[%s14 + $0x4fc] sm:$0xff]
    %v3794 = vld [vmem:[%s14 + $0x504] sm:$0xf]
    %v3795 = vld [vmem:[%s14 + $0x508] sm:$0xff]
    %v3796 = vld [vmem:[%s14 + $0x510] sm:$0xff]
    %v3797 = vld [vmem:[%s14 + $0x518] sm:$0xff]
    %v3798 = vld [vmem:[%s14 + $0x520] sm:$0xf]
    %v3799 = vld [vmem:[%s14 + $0x524] sm:$0xff]
    %v3800 = vld [vmem:[%s14 + $0x52c] sm:$0xff]
    %v3801 = vld [vmem:[%s14 + $0x534] sm:$0xff]
    %v3802 = vld [vmem:[%s14 + $0x53c] sm:$0xf]
    %v3803 = vld [vmem:[%s14 + $0x540] sm:$0xff]
    %v3804 = vld [vmem:[%s14 + $0x548] sm:$0xff]
    %v3805 = vld [vmem:[%s14 + $0x550] sm:$0xff]
    %v3806 = vld [vmem:[%s14 + $0x558] sm:$0xf]
    %v3807 = vld [vmem:[%s14 + $0x55c] sm:$0xff]
    %v3808 = vld [vmem:[%s14 + $0x564] sm:$0xff]
    %v3809 = vld [vmem:[%s14 + $0x56c] sm:$0xff]
    %v3810 = vld [vmem:[%s14 + $0x574] sm:$0xf]
    %v3811 = vld [vmem:[%s14 + $0x578] sm:$0xff]
    %v3812 = vld [vmem:[%s14 + $0x580] sm:$0xff]
    %v3813 = vld [vmem:[%s14 + $0x588] sm:$0xff]
    %v3814 = vld [vmem:[%s14 + $0x590] sm:$0xf]
    %v3815 = vld [vmem:[%s14 + $0x594] sm:$0xff]
    %v3816 = vld [vmem:[%s14 + $0x59c] sm:$0xff]
    %v3817 = vld [vmem:[%s14 + $0x5a4] sm:$0xff]
    %v3818 = vld [vmem:[%s14 + $0x5ac] sm:$0xf]
    %v3819 = vld [vmem:[%s14 + $0x5b0] sm:$0xff]
    %v3820 = vld [vmem:[%s14 + $0x5b8] sm:$0xff]
    %v3821 = vld [vmem:[%s14 + $0x5c0] sm:$0xff]
    %v3822 = vld [vmem:[%s14 + $0x5c8] sm:$0xf]
    %v3823 = vld [vmem:[%s14 + $0x5cc] sm:$0xff]
    %v3824 = vld [vmem:[%s14 + $0x5d4] sm:$0xff]
    %v3825 = vld [vmem:[%s14 + $0x5dc] sm:$0xff]
    %v3826 = vld [vmem:[%s14 + $0x5e4] sm:$0xf]
    %v3827 = vld [vmem:[%s14 + $0x5e8] sm:$0xff]
    %v3828 = vld [vmem:[%s14 + $0x5f0] sm:$0xff]
    %v3829 = vld [vmem:[%s14 + $0x5f8] sm:$0xff]
    %v3830 = vld [vmem:[%s14 + $0x600] sm:$0xf]
    %v3831 = vld [vmem:[%s14 + $0x604] sm:$0xff]
    %v3832 = vld [vmem:[%s14 + $0x60c] sm:$0xff]
    %v3833 = vld [vmem:[%s14 + $0x614] sm:$0xff]
    %v3834 = vld [vmem:[%s14 + $0x61c] sm:$0xf]
    %v3835 = vld [vmem:[%s14 + $0x620] sm:$0xff]
    %v3836 = vld [vmem:[%s14 + $0x628] sm:$0xff]
    %v3837 = vld [vmem:[%s14 + $0x630] sm:$0xff]
    %v3838 = vld [vmem:[%s14 + $0x638] sm:$0xf]
    %v3839 = vld [vmem:[%s14 + $0x63c] sm:$0xff]
    %v3840 = vld [vmem:[%s14 + $0x644] sm:$0xff]
    %v3841 = vld [vmem:[%s14 + $0x64c] sm:$0xff]
    %v3842 = vld [vmem:[%s14 + $0x654] sm:$0xf]
    %v3843 = vld [vmem:[%s14 + $0x658] sm:$0xff]
    %v3844 = vld [vmem:[%s14 + $0x660] sm:$0xff]
    %v3845 = vld [vmem:[%s14 + $0x668] sm:$0xff]
    %v3846 = vld [vmem:[%s14 + $0x670] sm:$0xf]
    %v3847 = vld [vmem:[%s14 + $0x674] sm:$0xff]
    %v3848 = vld [vmem:[%s14 + $0x67c] sm:$0xff]
    %v3849 = vld [vmem:[%s14 + $0x684] sm:$0xff]
    %v3850 = vld [vmem:[%s14 + $0x68c] sm:$0xf]
    %v3851 = vld [vmem:[%s14 + $0x690] sm:$0xff]
    %v3852 = vld [vmem:[%s14 + $0x698] sm:$0xff]
    %v3853 = vld [vmem:[%s14 + $0x6a0] sm:$0xff]
    %v3854 = vld [vmem:[%s14 + $0x6a8] sm:$0xf]
    %v3855 = vld [vmem:[%s14 + $0x6ac] sm:$0xff]
    %v3856 = vld [vmem:[%s14 + $0x6b4] sm:$0xff]
    %v3857 = vld [vmem:[%s14 + $0x6bc] sm:$0xff]
    %v3858 = vld [vmem:[%s14 + $0x6c4] sm:$0xf]
    %v3859 = vld [vmem:[%s14 + $0x6c8] sm:$0xff]
    %v3860 = vld [vmem:[%s14 + $0x6d0] sm:$0xff]
    %v3861 = vld [vmem:[%s14 + $0x6d8] sm:$0xff]
    %v3862 = vld [vmem:[%s14 + $0x6e0] sm:$0xf]
    %v3863 = vld [vmem:[%s14 + $0x6e4] sm:$0xff]
    %v3864 = vld [vmem:[%s14 + $0x6ec] sm:$0xff]
    %v3865 = vld [vmem:[%s14 + $0x6f4] sm:$0xff]
    %v3866 = vld [vmem:[%s14 + $0x6fc] sm:$0xf]
    %v3867 = vld [vmem:[%s15] sm:$0x7f]
    %v3869 = vlaneseq
    %v3870 = vshrl.u32 %v3869, 7
    %v3871 = vsub.s32 0, %v3870
    %v3872 = vrot.slane %v3867, %v3871
    %v3873 = vlaneseq
    %v3874 = vshrl.u32 %v3873, 7
    %v3875 = vsub.s32 1, %v3874
    %v3876 = vrot.slane %v3867, %v3875
    %v3877 = vlaneseq
    %v3878 = vshrl.u32 %v3877, 7
    %v3879 = vsub.s32 2, %v3878
    %v3880 = vrot.slane %v3867, %v3879
    %v3881 = vlaneseq
    %v3882 = vshrl.u32 %v3881, 7
    %v3883 = vsub.s32 3, %v3882
    %v3884 = vrot.slane %v3867, %v3883
    %v3885 = vlaneseq
    %v3886 = vshrl.u32 %v3885, 7
    %v3887 = vsub.s32 4, %v3886
    %v3888 = vrot.slane %v3867, %v3887
    %v3889 = vlaneseq
    %v3890 = vshrl.u32 %v3889, 7
    %v3891 = vsub.s32 5, %v3890
    %v3892 = vrot.slane %v3867, %v3891
    %v3893 = vlaneseq
    %v3894 = vshrl.u32 %v3893, 7
    %v3895 = vsub.s32 6, %v3894
    %v3896 = vrot.slane %v3867, %v3895
    %v4160 = vunpack.c.l.b16 %v3611
    %v4161 = vunpack.c.h.b16 %v3611
    %v4162 = vunpack.c.l.b16 %v3612
    %v4163 = vunpack.c.h.b16 %v3612
    %v4164 = vunpack.c.l.b16 %v3613
    %v4165 = vunpack.c.h.b16 %v3613
    %v4166 = vunpack.c.l.b16 %v3614
    %v4167 = vunpack.c.l.b16 %v3615
    %v4168 = vunpack.c.h.b16 %v3615
    %v4169 = vunpack.c.l.b16 %v3616
    %v4170 = vunpack.c.h.b16 %v3616
    %v4171 = vunpack.c.l.b16 %v3617
    %v4172 = vunpack.c.h.b16 %v3617
    %v4173 = vunpack.c.l.b16 %v3618
    %v4174 = vunpack.c.l.b16 %v3619
    %v4175 = vunpack.c.h.b16 %v3619
    %v4176 = vunpack.c.l.b16 %v3620
    %v4177 = vunpack.c.h.b16 %v3620
    %v4178 = vunpack.c.l.b16 %v3621
    %v4179 = vunpack.c.h.b16 %v3621
    %v4180 = vunpack.c.l.b16 %v3622
    %v4181 = vunpack.c.l.b16 %v3623
    %v4182 = vunpack.c.h.b16 %v3623
    %v4183 = vunpack.c.l.b16 %v3624
    %v4184 = vunpack.c.h.b16 %v3624
    %v4185 = vunpack.c.l.b16 %v3625
    %v4186 = vunpack.c.h.b16 %v3625
    %v4187 = vunpack.c.l.b16 %v3626
    %v4188 = vunpack.c.l.b16 %v3627
    %v4189 = vunpack.c.h.b16 %v3627
    %v4190 = vunpack.c.l.b16 %v3628
    %v4191 = vunpack.c.h.b16 %v3628
    %v4192 = vunpack.c.l.b16 %v3629
    %v4193 = vunpack.c.h.b16 %v3629
    %v4194 = vunpack.c.l.b16 %v3630
    %v4195 = vunpack.c.l.b16 %v3631
    %v4196 = vunpack.c.h.b16 %v3631
    %v4197 = vunpack.c.l.b16 %v3632
    %v4198 = vunpack.c.h.b16 %v3632
    %v4199 = vunpack.c.l.b16 %v3633
    %v4200 = vunpack.c.h.b16 %v3633
    %v4201 = vunpack.c.l.b16 %v3634
    %v4202 = vunpack.c.l.b16 %v3635
    %v4203 = vunpack.c.h.b16 %v3635
    %v4204 = vunpack.c.l.b16 %v3636
    %v4205 = vunpack.c.h.b16 %v3636
    %v4206 = vunpack.c.l.b16 %v3637
    %v4207 = vunpack.c.h.b16 %v3637
    %v4208 = vunpack.c.l.b16 %v3638
    %v4209 = vunpack.c.l.b16 %v3639
    %v4210 = vunpack.c.h.b16 %v3639
    %v4211 = vunpack.c.l.b16 %v3640
    %v4212 = vunpack.c.h.b16 %v3640
    %v4213 = vunpack.c.l.b16 %v3641
    %v4214 = vunpack.c.h.b16 %v3641
    %v4215 = vunpack.c.l.b16 %v3642
    %v4216 = vunpack.c.l.b16 %v3643
    %v4217 = vunpack.c.h.b16 %v3643
    %v4218 = vunpack.c.l.b16 %v3644
    %v4219 = vunpack.c.h.b16 %v3644
    %v4220 = vunpack.c.l.b16 %v3645
    %v4221 = vunpack.c.h.b16 %v3645
    %v4222 = vunpack.c.l.b16 %v3646
    %v4223 = vunpack.c.l.b16 %v3647
    %v4224 = vunpack.c.h.b16 %v3647
    %v4225 = vunpack.c.l.b16 %v3648
    %v4226 = vunpack.c.h.b16 %v3648
    %v4227 = vunpack.c.l.b16 %v3649
    %v4228 = vunpack.c.h.b16 %v3649
    %v4229 = vunpack.c.l.b16 %v3650
    %v4230 = vunpack.c.l.b16 %v3651
    %v4231 = vunpack.c.h.b16 %v3651
    %v4232 = vunpack.c.l.b16 %v3652
    %v4233 = vunpack.c.h.b16 %v3652
    %v4234 = vunpack.c.l.b16 %v3653
    %v4235 = vunpack.c.h.b16 %v3653
    %v4236 = vunpack.c.l.b16 %v3654
    %v4237 = vunpack.c.l.b16 %v3655
    %v4238 = vunpack.c.h.b16 %v3655
    %v4239 = vunpack.c.l.b16 %v3656
    %v4240 = vunpack.c.h.b16 %v3656
    %v4241 = vunpack.c.l.b16 %v3657
    %v4242 = vunpack.c.h.b16 %v3657
    %v4243 = vunpack.c.l.b16 %v3658
    %v4244 = vunpack.c.l.b16 %v3659
    %v4245 = vunpack.c.h.b16 %v3659
    %v4246 = vunpack.c.l.b16 %v3660
    %v4247 = vunpack.c.h.b16 %v3660
    %v4248 = vunpack.c.l.b16 %v3661
    %v4249 = vunpack.c.h.b16 %v3661
    %v4250 = vunpack.c.l.b16 %v3662
    %v4251 = vunpack.c.l.b16 %v3663
    %v4252 = vunpack.c.h.b16 %v3663
    %v4253 = vunpack.c.l.b16 %v3664
    %v4254 = vunpack.c.h.b16 %v3664
    %v4255 = vunpack.c.l.b16 %v3665
    %v4256 = vunpack.c.h.b16 %v3665
    %v4257 = vunpack.c.l.b16 %v3666
    %v4258 = vunpack.c.l.b16 %v3667
    %v4259 = vunpack.c.h.b16 %v3667
    %v4260 = vunpack.c.l.b16 %v3668
    %v4261 = vunpack.c.h.b16 %v3668
    %v4262 = vunpack.c.l.b16 %v3669
    %v4263 = vunpack.c.h.b16 %v3669
    %v4264 = vunpack.c.l.b16 %v3670
    %v4265 = vunpack.c.l.b16 %v3671
    %v4266 = vunpack.c.h.b16 %v3671
    %v4267 = vunpack.c.l.b16 %v3672
    %v4268 = vunpack.c.h.b16 %v3672
    %v4269 = vunpack.c.l.b16 %v3673
    %v4270 = vunpack.c.h.b16 %v3673
    %v4271 = vunpack.c.l.b16 %v3674
    %v4272 = vunpack.c.l.b16 %v3675
    %v4273 = vunpack.c.h.b16 %v3675
    %v4274 = vunpack.c.l.b16 %v3676
    %v4275 = vunpack.c.h.b16 %v3676
    %v4276 = vunpack.c.l.b16 %v3677
    %v4277 = vunpack.c.h.b16 %v3677
    %v4278 = vunpack.c.l.b16 %v3678
    %v4279 = vunpack.c.l.b16 %v3679
    %v4280 = vunpack.c.h.b16 %v3679
    %v4281 = vunpack.c.l.b16 %v3680
    %v4282 = vunpack.c.h.b16 %v3680
    %v4283 = vunpack.c.l.b16 %v3681
    %v4284 = vunpack.c.h.b16 %v3681
    %v4285 = vunpack.c.l.b16 %v3682
    %v4286 = vunpack.c.l.b16 %v3683
    %v4287 = vunpack.c.h.b16 %v3683
    %v4288 = vunpack.c.l.b16 %v3684
    %v4289 = vunpack.c.h.b16 %v3684
    %v4290 = vunpack.c.l.b16 %v3685
    %v4291 = vunpack.c.h.b16 %v3685
    %v4292 = vunpack.c.l.b16 %v3686
    %v4293 = vunpack.c.l.b16 %v3687
    %v4294 = vunpack.c.h.b16 %v3687
    %v4295 = vunpack.c.l.b16 %v3688
    %v4296 = vunpack.c.h.b16 %v3688
    %v4297 = vunpack.c.l.b16 %v3689
    %v4298 = vunpack.c.h.b16 %v3689
    %v4299 = vunpack.c.l.b16 %v3690
    %v4300 = vunpack.c.l.b16 %v3691
    %v4301 = vunpack.c.h.b16 %v3691
    %v4302 = vunpack.c.l.b16 %v3692
    %v4303 = vunpack.c.h.b16 %v3692
    %v4304 = vunpack.c.l.b16 %v3693
    %v4305 = vunpack.c.h.b16 %v3693
    %v4306 = vunpack.c.l.b16 %v3694
    %v4307 = vunpack.c.l.b16 %v3695
    %v4308 = vunpack.c.h.b16 %v3695
    %v4309 = vunpack.c.l.b16 %v3696
    %v4310 = vunpack.c.h.b16 %v3696
    %v4311 = vunpack.c.l.b16 %v3697
    %v4312 = vunpack.c.h.b16 %v3697
    %v4313 = vunpack.c.l.b16 %v3698
    %v4314 = vunpack.c.l.b16 %v3699
    %v4315 = vunpack.c.h.b16 %v3699
    %v4316 = vunpack.c.l.b16 %v3700
    %v4317 = vunpack.c.h.b16 %v3700
    %v4318 = vunpack.c.l.b16 %v3701
    %v4319 = vunpack.c.h.b16 %v3701
    %v4320 = vunpack.c.l.b16 %v3702
    %v4321 = vunpack.c.l.b16 %v3703
    %v4322 = vunpack.c.h.b16 %v3703
    %v4323 = vunpack.c.l.b16 %v3704
    %v4324 = vunpack.c.h.b16 %v3704
    %v4325 = vunpack.c.l.b16 %v3705
    %v4326 = vunpack.c.h.b16 %v3705
    %v4327 = vunpack.c.l.b16 %v3706
    %v4328 = vunpack.c.l.b16 %v3707
    %v4329 = vunpack.c.h.b16 %v3707
    %v4330 = vunpack.c.l.b16 %v3708
    %v4331 = vunpack.c.h.b16 %v3708
    %v4332 = vunpack.c.l.b16 %v3709
    %v4333 = vunpack.c.h.b16 %v3709
    %v4334 = vunpack.c.l.b16 %v3710
    %v4335 = vunpack.c.l.b16 %v3711
    %v4336 = vunpack.c.h.b16 %v3711
    %v4337 = vunpack.c.l.b16 %v3712
    %v4338 = vunpack.c.h.b16 %v3712
    %v4339 = vunpack.c.l.b16 %v3713
    %v4340 = vunpack.c.h.b16 %v3713
    %v4341 = vunpack.c.l.b16 %v3714
    %v4342 = vunpack.c.l.b16 %v3715
    %v4343 = vunpack.c.h.b16 %v3715
    %v4344 = vunpack.c.l.b16 %v3716
    %v4345 = vunpack.c.h.b16 %v3716
    %v4346 = vunpack.c.l.b16 %v3717
    %v4347 = vunpack.c.h.b16 %v3717
    %v4348 = vunpack.c.l.b16 %v3718
    %v4349 = vunpack.c.l.b16 %v3719
    %v4350 = vunpack.c.h.b16 %v3719
    %v4351 = vunpack.c.l.b16 %v3720
    %v4352 = vunpack.c.h.b16 %v3720
    %v4353 = vunpack.c.l.b16 %v3721
    %v4354 = vunpack.c.h.b16 %v3721
    %v4355 = vunpack.c.l.b16 %v3722
    %v4356 = vunpack.c.l.b16 %v3723
    %v4357 = vunpack.c.h.b16 %v3723
    %v4358 = vunpack.c.l.b16 %v3724
    %v4359 = vunpack.c.h.b16 %v3724
    %v4360 = vunpack.c.l.b16 %v3725
    %v4361 = vunpack.c.h.b16 %v3725
    %v4362 = vunpack.c.l.b16 %v3726
    %v4363 = vunpack.c.l.b16 %v3727
    %v4364 = vunpack.c.h.b16 %v3727
    %v4365 = vunpack.c.l.b16 %v3728
    %v4366 = vunpack.c.h.b16 %v3728
    %v4367 = vunpack.c.l.b16 %v3729
    %v4368 = vunpack.c.h.b16 %v3729
    %v4369 = vunpack.c.l.b16 %v3730
    %v4370 = vunpack.c.l.b16 %v3731
    %v4371 = vunpack.c.h.b16 %v3731
    %v4372 = vunpack.c.l.b16 %v3732
    %v4373 = vunpack.c.h.b16 %v3732
    %v4374 = vunpack.c.l.b16 %v3733
    %v4375 = vunpack.c.h.b16 %v3733
    %v4376 = vunpack.c.l.b16 %v3734
    %v4377 = vunpack.c.l.b16 %v3735
    %v4378 = vunpack.c.h.b16 %v3735
    %v4379 = vunpack.c.l.b16 %v3736
    %v4380 = vunpack.c.h.b16 %v3736
    %v4381 = vunpack.c.l.b16 %v3737
    %v4382 = vunpack.c.h.b16 %v3737
    %v4383 = vunpack.c.l.b16 %v3738
    %v4384 = vunpack.c.l.b16 %v3739
    %v4385 = vunpack.c.h.b16 %v3739
    %v4386 = vunpack.c.l.b16 %v3740
    %v4387 = vunpack.c.h.b16 %v3740
    %v4388 = vunpack.c.l.b16 %v3741
    %v4389 = vunpack.c.h.b16 %v3741
    %v4390 = vunpack.c.l.b16 %v3742
    %v4391 = vunpack.c.l.b16 %v3743
    %v4392 = vunpack.c.h.b16 %v3743
    %v4393 = vunpack.c.l.b16 %v3744
    %v4394 = vunpack.c.h.b16 %v3744
    %v4395 = vunpack.c.l.b16 %v3745
    %v4396 = vunpack.c.h.b16 %v3745
    %v4397 = vunpack.c.l.b16 %v3746
    %v4398 = vunpack.c.l.b16 %v3747
    %v4399 = vunpack.c.h.b16 %v3747
    %v4400 = vunpack.c.l.b16 %v3748
    %v4401 = vunpack.c.h.b16 %v3748
    %v4402 = vunpack.c.l.b16 %v3749
    %v4403 = vunpack.c.h.b16 %v3749
    %v4404 = vunpack.c.l.b16 %v3750
    %v4405 = vunpack.c.l.b16 %v3751
    %v4406 = vunpack.c.h.b16 %v3751
    %v4407 = vunpack.c.l.b16 %v3752
    %v4408 = vunpack.c.h.b16 %v3752
    %v4409 = vunpack.c.l.b16 %v3753
    %v4410 = vunpack.c.h.b16 %v3753
    %v4411 = vunpack.c.l.b16 %v3754
    %v4412 = vunpack.c.l.b16 %v3755
    %v4413 = vunpack.c.h.b16 %v3755
    %v4414 = vunpack.c.l.b16 %v3756
    %v4415 = vunpack.c.h.b16 %v3756
    %v4416 = vunpack.c.l.b16 %v3757
    %v4417 = vunpack.c.h.b16 %v3757
    %v4418 = vunpack.c.l.b16 %v3758
    %v4419 = vunpack.c.l.b16 %v3759
    %v4420 = vunpack.c.h.b16 %v3759
    %v4421 = vunpack.c.l.b16 %v3760
    %v4422 = vunpack.c.h.b16 %v3760
    %v4423 = vunpack.c.l.b16 %v3761
    %v4424 = vunpack.c.h.b16 %v3761
    %v4425 = vunpack.c.l.b16 %v3762
    %v4426 = vunpack.c.l.b16 %v3763
    %v4427 = vunpack.c.h.b16 %v3763
    %v4428 = vunpack.c.l.b16 %v3764
    %v4429 = vunpack.c.h.b16 %v3764
    %v4430 = vunpack.c.l.b16 %v3765
    %v4431 = vunpack.c.h.b16 %v3765
    %v4432 = vunpack.c.l.b16 %v3766
    %v4433 = vunpack.c.l.b16 %v3767
    %v4434 = vunpack.c.h.b16 %v3767
    %v4435 = vunpack.c.l.b16 %v3768
    %v4436 = vunpack.c.h.b16 %v3768
    %v4437 = vunpack.c.l.b16 %v3769
    %v4438 = vunpack.c.h.b16 %v3769
    %v4439 = vunpack.c.l.b16 %v3770
    %v4440 = vunpack.c.l.b16 %v3771
    %v4441 = vunpack.c.h.b16 %v3771
    %v4442 = vunpack.c.l.b16 %v3772
    %v4443 = vunpack.c.h.b16 %v3772
    %v4444 = vunpack.c.l.b16 %v3773
    %v4445 = vunpack.c.h.b16 %v3773
    %v4446 = vunpack.c.l.b16 %v3774
    %v4447 = vunpack.c.l.b16 %v3775
    %v4448 = vunpack.c.h.b16 %v3775
    %v4449 = vunpack.c.l.b16 %v3776
    %v4450 = vunpack.c.h.b16 %v3776
    %v4451 = vunpack.c.l.b16 %v3777
    %v4452 = vunpack.c.h.b16 %v3777
    %v4453 = vunpack.c.l.b16 %v3778
    %v4454 = vunpack.c.l.b16 %v3779
    %v4455 = vunpack.c.h.b16 %v3779
    %v4456 = vunpack.c.l.b16 %v3780
    %v4457 = vunpack.c.h.b16 %v3780
    %v4458 = vunpack.c.l.b16 %v3781
    %v4459 = vunpack.c.h.b16 %v3781
    %v4460 = vunpack.c.l.b16 %v3782
    %v4461 = vunpack.c.l.b16 %v3783
    %v4462 = vunpack.c.h.b16 %v3783
    %v4463 = vunpack.c.l.b16 %v3784
    %v4464 = vunpack.c.h.b16 %v3784
    %v4465 = vunpack.c.l.b16 %v3785
    %v4466 = vunpack.c.h.b16 %v3785
    %v4467 = vunpack.c.l.b16 %v3786
    %v4468 = vunpack.c.l.b16 %v3787
    %v4469 = vunpack.c.h.b16 %v3787
    %v4470 = vunpack.c.l.b16 %v3788
    %v4471 = vunpack.c.h.b16 %v3788
    %v4472 = vunpack.c.l.b16 %v3789
    %v4473 = vunpack.c.h.b16 %v3789
    %v4474 = vunpack.c.l.b16 %v3790
    %v4475 = vunpack.c.l.b16 %v3791
    %v4476 = vunpack.c.h.b16 %v3791
    %v4477 = vunpack.c.l.b16 %v3792
    %v4478 = vunpack.c.h.b16 %v3792
    %v4479 = vunpack.c.l.b16 %v3793
    %v4480 = vunpack.c.h.b16 %v3793
    %v4481 = vunpack.c.l.b16 %v3794
    %v4482 = vunpack.c.l.b16 %v3795
    %v4483 = vunpack.c.h.b16 %v3795
    %v4484 = vunpack.c.l.b16 %v3796
    %v4485 = vunpack.c.h.b16 %v3796
    %v4486 = vunpack.c.l.b16 %v3797
    %v4487 = vunpack.c.h.b16 %v3797
    %v4488 = vunpack.c.l.b16 %v3798
    %v4489 = vunpack.c.l.b16 %v3799
    %v4490 = vunpack.c.h.b16 %v3799
    %v4491 = vunpack.c.l.b16 %v3800
    %v4492 = vunpack.c.h.b16 %v3800
    %v4493 = vunpack.c.l.b16 %v3801
    %v4494 = vunpack.c.h.b16 %v3801
    %v4495 = vunpack.c.l.b16 %v3802
    %v4496 = vunpack.c.l.b16 %v3803
    %v4497 = vunpack.c.h.b16 %v3803
    %v4498 = vunpack.c.l.b16 %v3804
    %v4499 = vunpack.c.h.b16 %v3804
    %v4500 = vunpack.c.l.b16 %v3805
    %v4501 = vunpack.c.h.b16 %v3805
    %v4502 = vunpack.c.l.b16 %v3806
    %v4503 = vunpack.c.l.b16 %v3807
    %v4504 = vunpack.c.h.b16 %v3807
    %v4505 = vunpack.c.l.b16 %v3808
    %v4506 = vunpack.c.h.b16 %v3808
    %v4507 = vunpack.c.l.b16 %v3809
    %v4508 = vunpack.c.h.b16 %v3809
    %v4509 = vunpack.c.l.b16 %v3810
    %v4510 = vunpack.c.l.b16 %v3811
    %v4511 = vunpack.c.h.b16 %v3811
    %v4512 = vunpack.c.l.b16 %v3812
    %v4513 = vunpack.c.h.b16 %v3812
    %v4514 = vunpack.c.l.b16 %v3813
    %v4515 = vunpack.c.h.b16 %v3813
    %v4516 = vunpack.c.l.b16 %v3814
    %v4517 = vunpack.c.l.b16 %v3815
    %v4518 = vunpack.c.h.b16 %v3815
    %v4519 = vunpack.c.l.b16 %v3816
    %v4520 = vunpack.c.h.b16 %v3816
    %v4521 = vunpack.c.l.b16 %v3817
    %v4522 = vunpack.c.h.b16 %v3817
    %v4523 = vunpack.c.l.b16 %v3818
    %v4524 = vunpack.c.l.b16 %v3819
    %v4525 = vunpack.c.h.b16 %v3819
    %v4526 = vunpack.c.l.b16 %v3820
    %v4527 = vunpack.c.h.b16 %v3820
    %v4528 = vunpack.c.l.b16 %v3821
    %v4529 = vunpack.c.h.b16 %v3821
    %v4530 = vunpack.c.l.b16 %v3822
    %v4531 = vunpack.c.l.b16 %v3823
    %v4532 = vunpack.c.h.b16 %v3823
    %v4533 = vunpack.c.l.b16 %v3824
    %v4534 = vunpack.c.h.b16 %v3824
    %v4535 = vunpack.c.l.b16 %v3825
    %v4536 = vunpack.c.h.b16 %v3825
    %v4537 = vunpack.c.l.b16 %v3826
    %v4538 = vunpack.c.l.b16 %v3827
    %v4539 = vunpack.c.h.b16 %v3827
    %v4540 = vunpack.c.l.b16 %v3828
    %v4541 = vunpack.c.h.b16 %v3828
    %v4542 = vunpack.c.l.b16 %v3829
    %v4543 = vunpack.c.h.b16 %v3829
    %v4544 = vunpack.c.l.b16 %v3830
    %v4545 = vunpack.c.l.b16 %v3831
    %v4546 = vunpack.c.h.b16 %v3831
    %v4547 = vunpack.c.l.b16 %v3832
    %v4548 = vunpack.c.h.b16 %v3832
    %v4549 = vunpack.c.l.b16 %v3833
    %v4550 = vunpack.c.h.b16 %v3833
    %v4551 = vunpack.c.l.b16 %v3834
    %v4552 = vunpack.c.l.b16 %v3835
    %v4553 = vunpack.c.h.b16 %v3835
    %v4554 = vunpack.c.l.b16 %v3836
    %v4555 = vunpack.c.h.b16 %v3836
    %v4556 = vunpack.c.l.b16 %v3837
    %v4557 = vunpack.c.h.b16 %v3837
    %v4558 = vunpack.c.l.b16 %v3838
    %v4559 = vunpack.c.l.b16 %v3839
    %v4560 = vunpack.c.h.b16 %v3839
    %v4561 = vunpack.c.l.b16 %v3840
    %v4562 = vunpack.c.h.b16 %v3840
    %v4563 = vunpack.c.l.b16 %v3841
    %v4564 = vunpack.c.h.b16 %v3841
    %v4565 = vunpack.c.l.b16 %v3842
    %v4566 = vunpack.c.l.b16 %v3843
    %v4567 = vunpack.c.h.b16 %v3843
    %v4568 = vunpack.c.l.b16 %v3844
    %v4569 = vunpack.c.h.b16 %v3844
    %v4570 = vunpack.c.l.b16 %v3845
    %v4571 = vunpack.c.h.b16 %v3845
    %v4572 = vunpack.c.l.b16 %v3846
    %v4573 = vunpack.c.l.b16 %v3847
    %v4574 = vunpack.c.h.b16 %v3847
    %v4575 = vunpack.c.l.b16 %v3848
    %v4576 = vunpack.c.h.b16 %v3848
    %v4577 = vunpack.c.l.b16 %v3849
    %v4578 = vunpack.c.h.b16 %v3849
    %v4579 = vunpack.c.l.b16 %v3850
    %v4580 = vunpack.c.l.b16 %v3851
    %v4581 = vunpack.c.h.b16 %v3851
    %v4582 = vunpack.c.l.b16 %v3852
    %v4583 = vunpack.c.h.b16 %v3852
    %v4584 = vunpack.c.l.b16 %v3853
    %v4585 = vunpack.c.h.b16 %v3853
    %v4586 = vunpack.c.l.b16 %v3854
    %v4587 = vunpack.c.l.b16 %v3855
    %v4588 = vunpack.c.h.b16 %v3855
    %v4589 = vunpack.c.l.b16 %v3856
    %v4590 = vunpack.c.h.b16 %v3856
    %v4591 = vunpack.c.l.b16 %v3857
    %v4592 = vunpack.c.h.b16 %v3857
    %v4593 = vunpack.c.l.b16 %v3858
    %v4594 = vunpack.c.l.b16 %v3859
    %v4595 = vunpack.c.h.b16 %v3859
    %v4596 = vunpack.c.l.b16 %v3860
    %v4597 = vunpack.c.h.b16 %v3860
    %v4598 = vunpack.c.l.b16 %v3861
    %v4599 = vunpack.c.h.b16 %v3861
    %v4600 = vunpack.c.l.b16 %v3862
    %v4601 = vunpack.c.l.b16 %v3863
    %v4602 = vunpack.c.h.b16 %v3863
    %v4603 = vunpack.c.l.b16 %v3864
    %v4604 = vunpack.c.h.b16 %v3864
    %v4605 = vunpack.c.l.b16 %v3865
    %v4606 = vunpack.c.h.b16 %v3865
    %v4607 = vunpack.c.l.b16 %v3866
    %v4608 = vpack.c.b16 %v4167, %v4160
    %v4609 = vpack.c.b16 %v4168, %v4161
    %v4610 = vpack.c.b16 %v4169, %v4162
    %v4611 = vpack.c.b16 %v4170, %v4163
    %v4612 = vpack.c.b16 %v4171, %v4164
    %v4613 = vpack.c.b16 %v4172, %v4165
    %v4614 = vpack.c.b16 %v4173, %v4166
    %v4615 = vpack.c.b16 %v4181, %v4174
    %v4616 = vpack.c.b16 %v4182, %v4175
    %v4617 = vpack.c.b16 %v4183, %v4176
    %v4618 = vpack.c.b16 %v4184, %v4177
    %v4619 = vpack.c.b16 %v4185, %v4178
    %v4620 = vpack.c.b16 %v4186, %v4179
    %v4621 = vpack.c.b16 %v4187, %v4180
    %v4622 = vpack.c.b16 %v4195, %v4188
    %v4623 = vpack.c.b16 %v4196, %v4189
    %v4624 = vpack.c.b16 %v4197, %v4190
    %v4625 = vpack.c.b16 %v4198, %v4191
    %v4626 = vpack.c.b16 %v4199, %v4192
    %v4627 = vpack.c.b16 %v4200, %v4193
    %v4628 = vpack.c.b16 %v4201, %v4194
    %v4629 = vpack.c.b16 %v4209, %v4202
    %v4630 = vpack.c.b16 %v4210, %v4203
    %v4631 = vpack.c.b16 %v4211, %v4204
    %v4632 = vpack.c.b16 %v4212, %v4205
    %v4633 = vpack.c.b16 %v4213, %v4206
    %v4634 = vpack.c.b16 %v4214, %v4207
    %v4635 = vpack.c.b16 %v4215, %v4208
    %v4636 = vpack.c.b16 %v4223, %v4216
    %v4637 = vpack.c.b16 %v4224, %v4217
    %v4638 = vpack.c.b16 %v4225, %v4218
    %v4639 = vpack.c.b16 %v4226, %v4219
    %v4640 = vpack.c.b16 %v4227, %v4220
    %v4641 = vpack.c.b16 %v4228, %v4221
    %v4642 = vpack.c.b16 %v4229, %v4222
    %v4643 = vpack.c.b16 %v4237, %v4230
    %v4644 = vpack.c.b16 %v4238, %v4231
    %v4645 = vpack.c.b16 %v4239, %v4232
    %v4646 = vpack.c.b16 %v4240, %v4233
    %v4647 = vpack.c.b16 %v4241, %v4234
    %v4648 = vpack.c.b16 %v4242, %v4235
    %v4649 = vpack.c.b16 %v4243, %v4236
    %v4650 = vpack.c.b16 %v4251, %v4244
    %v4651 = vpack.c.b16 %v4252, %v4245
    %v4652 = vpack.c.b16 %v4253, %v4246
    %v4653 = vpack.c.b16 %v4254, %v4247
    %v4654 = vpack.c.b16 %v4255, %v4248
    %v4655 = vpack.c.b16 %v4256, %v4249
    %v4656 = vpack.c.b16 %v4257, %v4250
    %v4657 = vpack.c.b16 %v4265, %v4258
    %v4658 = vpack.c.b16 %v4266, %v4259
    %v4659 = vpack.c.b16 %v4267, %v4260
    %v4660 = vpack.c.b16 %v4268, %v4261
    %v4661 = vpack.c.b16 %v4269, %v4262
    %v4662 = vpack.c.b16 %v4270, %v4263
    %v4663 = vpack.c.b16 %v4271, %v4264
    %v4664 = vpack.c.b16 %v4279, %v4272
    %v4665 = vpack.c.b16 %v4280, %v4273
    %v4666 = vpack.c.b16 %v4281, %v4274
    %v4667 = vpack.c.b16 %v4282, %v4275
    %v4668 = vpack.c.b16 %v4283, %v4276
    %v4669 = vpack.c.b16 %v4284, %v4277
    %v4670 = vpack.c.b16 %v4285, %v4278
    %v4671 = vpack.c.b16 %v4293, %v4286
    %v4672 = vpack.c.b16 %v4294, %v4287
    %v4673 = vpack.c.b16 %v4295, %v4288
    %v4674 = vpack.c.b16 %v4296, %v4289
    %v4675 = vpack.c.b16 %v4297, %v4290
    %v4676 = vpack.c.b16 %v4298, %v4291
    %v4677 = vpack.c.b16 %v4299, %v4292
    %v4678 = vpack.c.b16 %v4307, %v4300
    %v4679 = vpack.c.b16 %v4308, %v4301
    %v4680 = vpack.c.b16 %v4309, %v4302
    %v4681 = vpack.c.b16 %v4310, %v4303
    %v4682 = vpack.c.b16 %v4311, %v4304
    %v4683 = vpack.c.b16 %v4312, %v4305
    %v4684 = vpack.c.b16 %v4313, %v4306
    %v4685 = vpack.c.b16 %v4321, %v4314
    %v4686 = vpack.c.b16 %v4322, %v4315
    %v4687 = vpack.c.b16 %v4323, %v4316
    %v4688 = vpack.c.b16 %v4324, %v4317
    %v4689 = vpack.c.b16 %v4325, %v4318
    %v4690 = vpack.c.b16 %v4326, %v4319
    %v4691 = vpack.c.b16 %v4327, %v4320
    %v4692 = vpack.c.b16 %v4335, %v4328
    %v4693 = vpack.c.b16 %v4336, %v4329
    %v4694 = vpack.c.b16 %v4337, %v4330
    %v4695 = vpack.c.b16 %v4338, %v4331
    %v4696 = vpack.c.b16 %v4339, %v4332
    %v4697 = vpack.c.b16 %v4340, %v4333
    %v4698 = vpack.c.b16 %v4341, %v4334
    %v4699 = vpack.c.b16 %v4349, %v4342
    %v4700 = vpack.c.b16 %v4350, %v4343
    %v4701 = vpack.c.b16 %v4351, %v4344
    %v4702 = vpack.c.b16 %v4352, %v4345
    %v4703 = vpack.c.b16 %v4353, %v4346
    %v4704 = vpack.c.b16 %v4354, %v4347
    %v4705 = vpack.c.b16 %v4355, %v4348
    %v4706 = vpack.c.b16 %v4363, %v4356
    %v4707 = vpack.c.b16 %v4364, %v4357
    %v4708 = vpack.c.b16 %v4365, %v4358
    %v4709 = vpack.c.b16 %v4366, %v4359
    %v4710 = vpack.c.b16 %v4367, %v4360
    %v4711 = vpack.c.b16 %v4368, %v4361
    %v4712 = vpack.c.b16 %v4369, %v4362
    %v4713 = vpack.c.b16 %v4377, %v4370
    %v4714 = vpack.c.b16 %v4378, %v4371
    %v4715 = vpack.c.b16 %v4379, %v4372
    %v4716 = vpack.c.b16 %v4380, %v4373
    %v4717 = vpack.c.b16 %v4381, %v4374
    %v4718 = vpack.c.b16 %v4382, %v4375
    %v4719 = vpack.c.b16 %v4383, %v4376
    %v4720 = vpack.c.b16 %v4391, %v4384
    %v4721 = vpack.c.b16 %v4392, %v4385
    %v4722 = vpack.c.b16 %v4393, %v4386
    %v4723 = vpack.c.b16 %v4394, %v4387
    %v4724 = vpack.c.b16 %v4395, %v4388
    %v4725 = vpack.c.b16 %v4396, %v4389
    %v4726 = vpack.c.b16 %v4397, %v4390
    %v4727 = vpack.c.b16 %v4405, %v4398
    %v4728 = vpack.c.b16 %v4406, %v4399
    %v4729 = vpack.c.b16 %v4407, %v4400
    %v4730 = vpack.c.b16 %v4408, %v4401
    %v4731 = vpack.c.b16 %v4409, %v4402
    %v4732 = vpack.c.b16 %v4410, %v4403
    %v4733 = vpack.c.b16 %v4411, %v4404
    %v4734 = vpack.c.b16 %v4419, %v4412
    %v4735 = vpack.c.b16 %v4420, %v4413
    %v4736 = vpack.c.b16 %v4421, %v4414
    %v4737 = vpack.c.b16 %v4422, %v4415
    %v4738 = vpack.c.b16 %v4423, %v4416
    %v4739 = vpack.c.b16 %v4424, %v4417
    %v4740 = vpack.c.b16 %v4425, %v4418
    %v4741 = vpack.c.b16 %v4433, %v4426
    %v4742 = vpack.c.b16 %v4434, %v4427
    %v4743 = vpack.c.b16 %v4435, %v4428
    %v4744 = vpack.c.b16 %v4436, %v4429
    %v4745 = vpack.c.b16 %v4437, %v4430
    %v4746 = vpack.c.b16 %v4438, %v4431
    %v4747 = vpack.c.b16 %v4439, %v4432
    %v4748 = vpack.c.b16 %v4447, %v4440
    %v4749 = vpack.c.b16 %v4448, %v4441
    %v4750 = vpack.c.b16 %v4449, %v4442
    %v4751 = vpack.c.b16 %v4450, %v4443
    %v4752 = vpack.c.b16 %v4451, %v4444
    %v4753 = vpack.c.b16 %v4452, %v4445
    %v4754 = vpack.c.b16 %v4453, %v4446
    %v4755 = vpack.c.b16 %v4461, %v4454
    %v4756 = vpack.c.b16 %v4462, %v4455
    %v4757 = vpack.c.b16 %v4463, %v4456
    %v4758 = vpack.c.b16 %v4464, %v4457
    %v4759 = vpack.c.b16 %v4465, %v4458
    %v4760 = vpack.c.b16 %v4466, %v4459
    %v4761 = vpack.c.b16 %v4467, %v4460
    %v4762 = vpack.c.b16 %v4475, %v4468
    %v4763 = vpack.c.b16 %v4476, %v4469
    %v4764 = vpack.c.b16 %v4477, %v4470
    %v4765 = vpack.c.b16 %v4478, %v4471
    %v4766 = vpack.c.b16 %v4479, %v4472
    %v4767 = vpack.c.b16 %v4480, %v4473
    %v4768 = vpack.c.b16 %v4481, %v4474
    %v4769 = vpack.c.b16 %v4489, %v4482
    %v4770 = vpack.c.b16 %v4490, %v4483
    %v4771 = vpack.c.b16 %v4491, %v4484
    %v4772 = vpack.c.b16 %v4492, %v4485
    %v4773 = vpack.c.b16 %v4493, %v4486
    %v4774 = vpack.c.b16 %v4494, %v4487
    %v4775 = vpack.c.b16 %v4495, %v4488
    %v4776 = vpack.c.b16 %v4503, %v4496
    %v4777 = vpack.c.b16 %v4504, %v4497
    %v4778 = vpack.c.b16 %v4505, %v4498
    %v4779 = vpack.c.b16 %v4506, %v4499
    %v4780 = vpack.c.b16 %v4507, %v4500
    %v4781 = vpack.c.b16 %v4508, %v4501
    %v4782 = vpack.c.b16 %v4509, %v4502
    %v4783 = vpack.c.b16 %v4517, %v4510
    %v4784 = vpack.c.b16 %v4518, %v4511
    %v4785 = vpack.c.b16 %v4519, %v4512
    %v4786 = vpack.c.b16 %v4520, %v4513
    %v4787 = vpack.c.b16 %v4521, %v4514
    %v4788 = vpack.c.b16 %v4522, %v4515
    %v4789 = vpack.c.b16 %v4523, %v4516
    %v4790 = vpack.c.b16 %v4531, %v4524
    %v4791 = vpack.c.b16 %v4532, %v4525
    %v4792 = vpack.c.b16 %v4533, %v4526
    %v4793 = vpack.c.b16 %v4534, %v4527
    %v4794 = vpack.c.b16 %v4535, %v4528
    %v4795 = vpack.c.b16 %v4536, %v4529
    %v4796 = vpack.c.b16 %v4537, %v4530
    %v4797 = vpack.c.b16 %v4545, %v4538
    %v4798 = vpack.c.b16 %v4546, %v4539
    %v4799 = vpack.c.b16 %v4547, %v4540
    %v4800 = vpack.c.b16 %v4548, %v4541
    %v4801 = vpack.c.b16 %v4549, %v4542
    %v4802 = vpack.c.b16 %v4550, %v4543
    %v4803 = vpack.c.b16 %v4551, %v4544
    %v4804 = vpack.c.b16 %v4559, %v4552
    %v4805 = vpack.c.b16 %v4560, %v4553
    %v4806 = vpack.c.b16 %v4561, %v4554
    %v4807 = vpack.c.b16 %v4562, %v4555
    %v4808 = vpack.c.b16 %v4563, %v4556
    %v4809 = vpack.c.b16 %v4564, %v4557
    %v4810 = vpack.c.b16 %v4565, %v4558
    %v4811 = vpack.c.b16 %v4573, %v4566
    %v4812 = vpack.c.b16 %v4574, %v4567
    %v4813 = vpack.c.b16 %v4575, %v4568
    %v4814 = vpack.c.b16 %v4576, %v4569
    %v4815 = vpack.c.b16 %v4577, %v4570
    %v4816 = vpack.c.b16 %v4578, %v4571
    %v4817 = vpack.c.b16 %v4579, %v4572
    %v4818 = vpack.c.b16 %v4587, %v4580
    %v4819 = vpack.c.b16 %v4588, %v4581
    %v4820 = vpack.c.b16 %v4589, %v4582
    %v4821 = vpack.c.b16 %v4590, %v4583
    %v4822 = vpack.c.b16 %v4591, %v4584
    %v4823 = vpack.c.b16 %v4592, %v4585
    %v4824 = vpack.c.b16 %v4593, %v4586
    %v4825 = vpack.c.b16 %v4601, %v4594
    %v4826 = vpack.c.b16 %v4602, %v4595
    %v4827 = vpack.c.b16 %v4603, %v4596
    %v4828 = vpack.c.b16 %v4604, %v4597
    %v4829 = vpack.c.b16 %v4605, %v4598
    %v4830 = vpack.c.b16 %v4606, %v4599
    %v4831 = vpack.c.b16 %v4607, %v4600
    %5056 = vmatprep.subr.bf16.mxu0 %v4609
    %5057 = vmatpush1.bf16.msra.mxu0 %v4608
    %5058 = vmatprep.subr.bf16.mxu0 %v4616
    %5059 = vmatpush1.bf16.msra.mxu0 %v4615
    %5060 = vmatprep.subr.bf16.mxu0 %v4623
    %5061 = vmatpush1.bf16.msra.mxu0 %v4622
    %5062 = vmatprep.subr.bf16.mxu0 %v4630
    %5063 = vmatpush1.bf16.msra.mxu0 %v4629
    %5064 = vmatprep.subr.bf16.mxu0 %v4637
    %5065 = vmatpush1.bf16.msra.mxu0 %v4636
    %5066 = vmatprep.subr.bf16.mxu0 %v4644
    %5067 = vmatpush1.bf16.msra.mxu0 %v4643
    %5068 = vmatprep.subr.bf16.mxu0 %v4651
    %5069 = vmatpush1.bf16.msra.mxu0 %v4650
    %5070 = vmatprep.subr.bf16.mxu0 %v4658
    %5071 = vmatpush1.bf16.msra.mxu0 %v4657
    %5072 = vmatprep.subr.bf16.mxu0 %v4665
    %5073 = vmatpush1.bf16.msra.mxu0 %v4664
    %5074 = vmatprep.subr.bf16.mxu0 %v4672
    %5075 = vmatpush1.bf16.msra.mxu0 %v4671
    %5076 = vmatprep.subr.bf16.mxu0 %v4679
    %5077 = vmatpush1.bf16.msra.mxu0 %v4678
    %5078 = vmatprep.subr.bf16.mxu0 %v4686
    %5079 = vmatpush1.bf16.msra.mxu0 %v4685
    %5080 = vmatprep.subr.bf16.mxu0 %v4693
    %5081 = vmatpush1.bf16.msra.mxu0 %v4692
    %5082 = vmatprep.subr.bf16.mxu0 %v4700
    %5083 = vmatpush1.bf16.msra.mxu0 %v4699
    %5084 = vmatprep.subr.bf16.mxu0 %v4707
    %5085 = vmatpush1.bf16.msra.mxu0 %v4706
    %5086 = vmatprep.subr.bf16.mxu0 %v4714
    %5087 = vmatpush1.bf16.msra.mxu0 %v4713
    %5088 = vmatprep.mubr.bf16.mxu0 %v3608
    %5089 = vmatmul.mubr.bf16.gmra.mrb[0].mxu0 %v3607
    %v5090 = vpop.f32.mrb[0].mxu0
    %v5091 = vadd.f32 %v3872, %v5090
    %v5092 = vpop.f32.mrb[0].mxu0
    %v5093 = vadd.f32 %v3876, %v5092
    %v5094 = vpop.f32.mrb[0].mxu0
    %v5095 = vadd.f32 %v3872, %v5094
    %v5096 = vpop.f32.mrb[0].mxu0
    %v5097 = vadd.f32 %v3876, %v5096
    %5098 = vdwg.mxu0
    %5099 = vmatprep.subr.bf16.mxu0 %v4721
    %5100 = vmatpush1.bf16.msra.mxu0 %v4720
    %5101 = vmatprep.subr.bf16.mxu0 %v4728
    %5102 = vmatpush1.bf16.msra.mxu0 %v4727
    %5103 = vmatprep.subr.bf16.mxu0 %v4735
    %5104 = vmatpush1.bf16.msra.mxu0 %v4734
    %5105 = vmatprep.subr.bf16.mxu0 %v4742
    %5106 = vmatpush1.bf16.msra.mxu0 %v4741
    %5107 = vmatprep.subr.bf16.mxu0 %v4749
    %5108 = vmatpush1.bf16.msra.mxu0 %v4748
    %5109 = vmatprep.subr.bf16.mxu0 %v4756
    %5110 = vmatpush1.bf16.msra.mxu0 %v4755
    %5111 = vmatprep.subr.bf16.mxu0 %v4763
    %5112 = vmatpush1.bf16.msra.mxu0 %v4762
    %5113 = vmatprep.subr.bf16.mxu0 %v4770
    %5114 = vmatpush1.bf16.msra.mxu0 %v4769
    %5115 = vmatprep.subr.bf16.mxu0 %v4777
    %5116 = vmatpush1.bf16.msra.mxu0 %v4776
    %5117 = vmatprep.subr.bf16.mxu0 %v4784
    %5118 = vmatpush1.bf16.msra.mxu0 %v4783
    %5119 = vmatprep.subr.bf16.mxu0 %v4791
    %5120 = vmatpush1.bf16.msra.mxu0 %v4790
    %5121 = vmatprep.subr.bf16.mxu0 %v4798
    %5122 = vmatpush1.bf16.msra.mxu0 %v4797
    %5123 = vmatprep.subr.bf16.mxu0 %v4805
    %5124 = vmatpush1.bf16.msra.mxu0 %v4804
    %5125 = vmatprep.subr.bf16.mxu0 %v4812
    %5126 = vmatpush1.bf16.msra.mxu0 %v4811
    %5127 = vmatprep.subr.bf16.mxu0 %v4819
    %5128 = vmatpush1.bf16.msra.mxu0 %v4818
    %5129 = vmatprep.subr.bf16.mxu0 %v4826
    %5130 = vmatpush1.bf16.msra.mxu0 %v4825
    %5131 = vmatprep.mubr.bf16.mxu0 %v3610
    %5132 = vmatmul.mubr.bf16.gmra.mrb[0].mxu0 %v3609
    %v5133 = vpop.f32.mrb[0].mxu0
    %v5134 = vadd.f32 %v5091, %v5133
    %v5135 = vpop.f32.mrb[0].mxu0
    %v5136 = vadd.f32 %v5093, %v5135
    %v5137 = vpop.f32.mrb[0].mxu0
    %v5138 = vadd.f32 %v5095, %v5137
    %v5139 = vpop.f32.mrb[0].mxu0
    %v5140 = vadd.f32 %v5097, %v5139
    %5141 = vdwg.mxu0
    %5142 = vmatprep.subr.bf16.mxu0 %v4611
    %5143 = vmatpush1.bf16.msra.mxu0 %v4610
    %5144 = vmatprep.subr.bf16.mxu0 %v4618
    %5145 = vmatpush1.bf16.msra.mxu0 %v4617
    %5146 = vmatprep.subr.bf16.mxu0 %v4625
    %5147 = vmatpush1.bf16.msra.mxu0 %v4624
    %5148 = vmatprep.subr.bf16.mxu0 %v4632
    %5149 = vmatpush1.bf16.msra.mxu0 %v4631
    %5150 = vmatprep.subr.bf16.mxu0 %v4639
    %5151 = vmatpush1.bf16.msra.mxu0 %v4638
    %5152 = vmatprep.subr.bf16.mxu0 %v4646
    %5153 = vmatpush1.bf16.msra.mxu0 %v4645
    %5154 = vmatprep.subr.bf16.mxu0 %v4653
    %5155 = vmatpush1.bf16.msra.mxu0 %v4652
    %5156 = vmatprep.subr.bf16.mxu0 %v4660
    %5157 = vmatpush1.bf16.msra.mxu0 %v4659
    %5158 = vmatprep.subr.bf16.mxu0 %v4667
    %5159 = vmatpush1.bf16.msra.mxu0 %v4666
    %5160 = vmatprep.subr.bf16.mxu0 %v4674
    %5161 = vmatpush1.bf16.msra.mxu0 %v4673
    %5162 = vmatprep.subr.bf16.mxu0 %v4681
    %5163 = vmatpush1.bf16.msra.mxu0 %v4680
    %5164 = vmatprep.subr.bf16.mxu0 %v4688
    %5165 = vmatpush1.bf16.msra.mxu0 %v4687
    %5166 = vmatprep.subr.bf16.mxu0 %v4695
    %5167 = vmatpush1.bf16.msra.mxu0 %v4694
    %5168 = vmatprep.subr.bf16.mxu0 %v4702
    %5169 = vmatpush1.bf16.msra.mxu0 %v4701
    %5170 = vmatprep.subr.bf16.mxu0 %v4709
    %5171 = vmatpush1.bf16.msra.mxu0 %v4708
    %5172 = vmatprep.subr.bf16.mxu0 %v4716
    %5173 = vmatpush1.bf16.msra.mxu0 %v4715
    %5174 = vmatprep.mubr.bf16.mxu0 %v3608
    %5175 = vmatmul.mubr.bf16.gmra.mrb[0].mxu0 %v3607
    %v5176 = vpop.f32.mrb[0].mxu0
    %v5177 = vadd.f32 %v3880, %v5176
    %v5178 = vpop.f32.mrb[0].mxu0
    %v5179 = vadd.f32 %v3884, %v5178
    %v5180 = vpop.f32.mrb[0].mxu0
    %v5181 = vadd.f32 %v3880, %v5180
    %v5182 = vpop.f32.mrb[0].mxu0
    %v5183 = vadd.f32 %v3884, %v5182
    %5184 = vdwg.mxu0
    %5185 = vmatprep.subr.bf16.mxu0 %v4723
    %5186 = vmatpush1.bf16.msra.mxu0 %v4722
    %5187 = vmatprep.subr.bf16.mxu0 %v4730
    %5188 = vmatpush1.bf16.msra.mxu0 %v4729
    %5189 = vmatprep.subr.bf16.mxu0 %v4737
    %5190 = vmatpush1.bf16.msra.mxu0 %v4736
    %5191 = vmatprep.subr.bf16.mxu0 %v4744
    %5192 = vmatpush1.bf16.msra.mxu0 %v4743
    %5193 = vmatprep.subr.bf16.mxu0 %v4751
    %5194 = vmatpush1.bf16.msra.mxu0 %v4750
    %5195 = vmatprep.subr.bf16.mxu0 %v4758
    %5196 = vmatpush1.bf16.msra.mxu0 %v4757
    %5197 = vmatprep.subr.bf16.mxu0 %v4765
    %5198 = vmatpush1.bf16.msra.mxu0 %v4764
    %5199 = vmatprep.subr.bf16.mxu0 %v4772
    %5200 = vmatpush1.bf16.msra.mxu0 %v4771
    %5201 = vmatprep.subr.bf16.mxu0 %v4779
    %5202 = vmatpush1.bf16.msra.mxu0 %v4778
    %5203 = vmatprep.subr.bf16.mxu0 %v4786
    %5204 = vmatpush1.bf16.msra.mxu0 %v4785
    %5205 = vmatprep.subr.bf16.mxu0 %v4793
    %5206 = vmatpush1.bf16.msra.mxu0 %v4792
    %5207 = vmatprep.subr.bf16.mxu0 %v4800
    %5208 = vmatpush1.bf16.msra.mxu0 %v4799
    %5209 = vmatprep.subr.bf16.mxu0 %v4807
    %5210 = vmatpush1.bf16.msra.mxu0 %v4806
    %5211 = vmatprep.subr.bf16.mxu0 %v4814
    %5212 = vmatpush1.bf16.msra.mxu0 %v4813
    %5213 = vmatprep.subr.bf16.mxu0 %v4821
    %5214 = vmatpush1.bf16.msra.mxu0 %v4820
    %5215 = vmatprep.subr.bf16.mxu0 %v4828
    %5216 = vmatpush1.bf16.msra.mxu0 %v4827
    %5217 = vmatprep.mubr.bf16.mxu0 %v3610
    %5218 = vmatmul.mubr.bf16.gmra.mrb[0].mxu0 %v3609
    %v5219 = vpop.f32.mrb[0].mxu0
    %v5220 = vadd.f32 %v5177, %v5219
    %v5221 = vpop.f32.mrb[0].mxu0
    %v5222 = vadd.f32 %v5179, %v5221
    %v5223 = vpop.f32.mrb[0].mxu0
    %v5224 = vadd.f32 %v5181, %v5223
    %v5225 = vpop.f32.mrb[0].mxu0
    %v5226 = vadd.f32 %v5183, %v5225
    %5227 = vdwg.mxu0
    %5228 = vmatprep.subr.bf16.mxu0 %v4613
    %5229 = vmatpush1.bf16.msra.mxu0 %v4612
    %5230 = vmatprep.subr.bf16.mxu0 %v4620
    %5231 = vmatpush1.bf16.msra.mxu0 %v4619
    %5232 = vmatprep.subr.bf16.mxu0 %v4627
    %5233 = vmatpush1.bf16.msra.mxu0 %v4626
    %5234 = vmatprep.subr.bf16.mxu0 %v4634
    %5235 = vmatpush1.bf16.msra.mxu0 %v4633
    %5236 = vmatprep.subr.bf16.mxu0 %v4641
    %5237 = vmatpush1.bf16.msra.mxu0 %v4640
    %5238 = vmatprep.subr.bf16.mxu0 %v4648
    %5239 = vmatpush1.bf16.msra.mxu0 %v4647
    %5240 = vmatprep.subr.bf16.mxu0 %v4655
    %5241 = vmatpush1.bf16.msra.mxu0 %v4654
    %5242 = vmatprep.subr.bf16.mxu0 %v4662
    %5243 = vmatpush1.bf16.msra.mxu0 %v4661
    %5244 = vmatprep.subr.bf16.mxu0 %v4669
    %5245 = vmatpush1.bf16.msra.mxu0 %v4668
    %5246 = vmatprep.subr.bf16.mxu0 %v4676
    %5247 = vmatpush1.bf16.msra.mxu0 %v4675
    %5248 = vmatprep.subr.bf16.mxu0 %v4683
    %5249 = vmatpush1.bf16.msra.mxu0 %v4682
    %5250 = vmatprep.subr.bf16.mxu0 %v4690
    %5251 = vmatpush1.bf16.msra.mxu0 %v4689
    %5252 = vmatprep.subr.bf16.mxu0 %v4697
    %5253 = vmatpush1.bf16.msra.mxu0 %v4696
    %5254 = vmatprep.subr.bf16.mxu0 %v4704
    %5255 = vmatpush1.bf16.msra.mxu0 %v4703
    %5256 = vmatprep.subr.bf16.mxu0 %v4711
    %5257 = vmatpush1.bf16.msra.mxu0 %v4710
    %5258 = vmatprep.subr.bf16.mxu0 %v4718
    %5259 = vmatpush1.bf16.msra.mxu0 %v4717
    %5260 = vmatprep.mubr.bf16.mxu0 %v3608
    %5261 = vmatmul.mubr.bf16.gmra.mrb[0].mxu0 %v3607
    %v5262 = vpop.f32.mrb[0].mxu0
    %v5263 = vadd.f32 %v3888, %v5262
    %v5264 = vpop.f32.mrb[0].mxu0
    %v5265 = vadd.f32 %v3892, %v5264
    %v5266 = vpop.f32.mrb[0].mxu0
    %v5267 = vadd.f32 %v3888, %v5266
    %v5268 = vpop.f32.mrb[0].mxu0
    %v5269 = vadd.f32 %v3892, %v5268
    %5270 = vdwg.mxu0
    %5271 = vmatprep.subr.bf16.mxu0 %v4725
    %5272 = vmatpush1.bf16.msra.mxu0 %v4724
    %5273 = vmatprep.subr.bf16.mxu0 %v4732
    %5274 = vmatpush1.bf16.msra.mxu0 %v4731
    %5275 = vmatprep.subr.bf16.mxu0 %v4739
    %5276 = vmatpush1.bf16.msra.mxu0 %v4738
    %5277 = vmatprep.subr.bf16.mxu0 %v4746
    %5278 = vmatpush1.bf16.msra.mxu0 %v4745
    %5279 = vmatprep.subr.bf16.mxu0 %v4753
    %5280 = vmatpush1.bf16.msra.mxu0 %v4752
    %5281 = vmatprep.subr.bf16.mxu0 %v4760
    %5282 = vmatpush1.bf16.msra.mxu0 %v4759
    %5283 = vmatprep.subr.bf16.mxu0 %v4767
    %5284 = vmatpush1.bf16.msra.mxu0 %v4766
    %5285 = vmatprep.subr.bf16.mxu0 %v4774
    %5286 = vmatpush1.bf16.msra.mxu0 %v4773
    %5287 = vmatprep.subr.bf16.mxu0 %v4781
    %5288 = vmatpush1.bf16.msra.mxu0 %v4780
    %5289 = vmatprep.subr.bf16.mxu0 %v4788
    %5290 = vmatpush1.bf16.msra.mxu0 %v4787
    %5291 = vmatprep.subr.bf16.mxu0 %v4795
    %5292 = vmatpush1.bf16.msra.mxu0 %v4794
    %5293 = vmatprep.subr.bf16.mxu0 %v4802
    %5294 = vmatpush1.bf16.msra.mxu0 %v4801
    %5295 = vmatprep.subr.bf16.mxu0 %v4809
    %5296 = vmatpush1.bf16.msra.mxu0 %v4808
    %5297 = vmatprep.subr.bf16.mxu0 %v4816
    %5298 = vmatpush1.bf16.msra.mxu0 %v4815
    %5299 = vmatprep.subr.bf16.mxu0 %v4823
    %5300 = vmatpush1.bf16.msra.mxu0 %v4822
    %5301 = vmatprep.subr.bf16.mxu0 %v4830
    %5302 = vmatpush1.bf16.msra.mxu0 %v4829
    %5303 = vmatprep.mubr.bf16.mxu0 %v3610
    %5304 = vmatmul.mubr.bf16.gmra.mrb[0].mxu0 %v3609
    %v5305 = vpop.f32.mrb[0].mxu0
    %v5306 = vadd.f32 %v5263, %v5305
    %v5307 = vpop.f32.mrb[0].mxu0
    %v5308 = vadd.f32 %v5265, %v5307
    %v5309 = vpop.f32.mrb[0].mxu0
    %v5310 = vadd.f32 %v5267, %v5309
    %v5311 = vpop.f32.mrb[0].mxu0
    %v5312 = vadd.f32 %v5269, %v5311
    %5313 = vdwg.mxu0
    %5314 = vmatprep.subr.bf16.mxu0 0
    %5315 = vmatpush1.bf16.msra.mxu0 %v4614
    %5316 = vmatprep.subr.bf16.mxu0 0
    %5317 = vmatpush1.bf16.msra.mxu0 %v4621
    %5318 = vmatprep.subr.bf16.mxu0 0
    %5319 = vmatpush1.bf16.msra.mxu0 %v4628
    %5320 = vmatprep.subr.bf16.mxu0 0
    %5321 = vmatpush1.bf16.msra.mxu0 %v4635
    %5322 = vmatprep.subr.bf16.mxu0 0
    %5323 = vmatpush1.bf16.msra.mxu0 %v4642
    %5324 = vmatprep.subr.bf16.mxu0 0
    %5325 = vmatpush1.bf16.msra.mxu0 %v4649
    %5326 = vmatprep.subr.bf16.mxu0 0
    %5327 = vmatpush1.bf16.msra.mxu0 %v4656
    %5328 = vmatprep.subr.bf16.mxu0 0
    %5329 = vmatpush1.bf16.msra.mxu0 %v4663
    %5330 = vmatprep.subr.bf16.mxu0 0
    %5331 = vmatpush1.bf16.msra.mxu0 %v4670
    %5332 = vmatprep.subr.bf16.mxu0 0
    %5333 = vmatpush1.bf16.msra.mxu0 %v4677
    %5334 = vmatprep.subr.bf16.mxu0 0
    %5335 = vmatpush1.bf16.msra.mxu0 %v4684
    %5336 = vmatprep.subr.bf16.mxu0 0
    %5337 = vmatpush1.bf16.msra.mxu0 %v4691
    %5338 = vmatprep.subr.bf16.mxu0 0
    %5339 = vmatpush1.bf16.msra.mxu0 %v4698
    %5340 = vmatprep.subr.bf16.mxu0 0
    %5341 = vmatpush1.bf16.msra.mxu0 %v4705
    %5342 = vmatprep.subr.bf16.mxu0 0
    %5343 = vmatpush1.bf16.msra.mxu0 %v4712
    %5344 = vmatprep.subr.bf16.mxu0 0
    %5345 = vmatpush1.bf16.msra.mxu0 %v4719
    %5346 = vmatprep.mubr.bf16.mxu0 %v3608
    %5347 = vmatmul.mubr.bf16.gmra.mrb[0].mxu0 %v3607
    %v5348 = vpop.f32.mrb[0].mxu0
    %v5349 = vadd.f32 %v3896, %v5348
    %v5350 = vpop.f32.mrb[0].mxu0
    %v5351 = vpop.f32.mrb[0].mxu0
    %v5352 = vadd.f32 %v3896, %v5351
    %v5353 = vpop.f32.mrb[0].mxu0
    %5354 = vdwg.mxu0
    %5355 = vmatprep.subr.bf16.mxu0 0
    %5356 = vmatpush1.bf16.msra.mxu0 %v4726
    %5357 = vmatprep.subr.bf16.mxu0 0
    %5358 = vmatpush1.bf16.msra.mxu0 %v4733
    %5359 = vmatprep.subr.bf16.mxu0 0
    %5360 = vmatpush1.bf16.msra.mxu0 %v4740
    %5361 = vmatprep.subr.bf16.mxu0 0
    %5362 = vmatpush1.bf16.msra.mxu0 %v4747
    %5363 = vmatprep.subr.bf16.mxu0 0
    %5364 = vmatpush1.bf16.msra.mxu0 %v4754
    %5365 = vmatprep.subr.bf16.mxu0 0
    %5366 = vmatpush1.bf16.msra.mxu0 %v4761
    %5367 = vmatprep.subr.bf16.mxu0 0
    %5368 = vmatpush1.bf16.msra.mxu0 %v4768
    %5369 = vmatprep.subr.bf16.mxu0 0
    %5370 = vmatpush1.bf16.msra.mxu0 %v4775
    %5371 = vmatprep.subr.bf16.mxu0 0
    %5372 = vmatpush1.bf16.msra.mxu0 %v4782
    %5373 = vmatprep.subr.bf16.mxu0 0
    %5374 = vmatpush1.bf16.msra.mxu0 %v4789
    %5375 = vmatprep.subr.bf16.mxu0 0
    %5376 = vmatpush1.bf16.msra.mxu0 %v4796
    %5377 = vmatprep.subr.bf16.mxu0 0
    %5378 = vmatpush1.bf16.msra.mxu0 %v4803
    %5379 = vmatprep.subr.bf16.mxu0 0
    %5380 = vmatpush1.bf16.msra.mxu0 %v4810
    %5381 = vmatprep.subr.bf16.mxu0 0
    %5382 = vmatpush1.bf16.msra.mxu0 %v4817
    %5383 = vmatprep.subr.bf16.mxu0 0
    %5384 = vmatpush1.bf16.msra.mxu0 %v4824
    %5385 = vmatprep.subr.bf16.mxu0 0
    %5386 = vmatpush1.bf16.msra.mxu0 %v4831
    %5387 = vmatprep.mubr.bf16.mxu0 %v3610
    %5388 = vmatmul.mubr.bf16.gmra.mrb[0].mxu0 %v3609
    %v5389 = vpop.f32.mrb[0].mxu0
    %v5390 = vadd.f32 %v5349, %v5389
    %v5391 = vpop.f32.mrb[0].mxu0
    %v5392 = vpop.f32.mrb[0].mxu0
    %v5393 = vadd.f32 %v5352, %v5392
    %v5394 = vpop.f32.mrb[0].mxu0
    %5395 = vdwg.mxu0
    %v5410 = vcombine.low %v5134, %v5136
    %v5411 = vcombine.high %v5134, %v5136
    %v5412 = vcombine.low %v5220, %v5222
    %v5413 = vcombine.high %v5220, %v5222
    %v5415 = vunpack.c.l.s4 1983009808
    %v5416 = vunpack.c.0.s8 %v5415
    %v5417 = vlaneseq
    %v5418 = vshrl.u32 %v5417, 7
    %v5419 = vsub.s32 %v5416, %v5418
    %v5420 = vrot.slane %v5410, %v5419
    %v5422 = vunpack.c.l.s4 1983009808
    %v5423 = vunpack.c.0.s8 %v5422
    %v5424 = vlaneseq
    %v5425 = vshrl.u32 %v5424, 7
    %v5426 = vsub.s32 %v5423, %v5425
    %v5427 = vrot.slane %v5411, %v5426
    %v5429 = vunpack.c.l.s4 1983009808
    %v5430 = vunpack.c.0.s8 %v5429
    %v5431 = vlaneseq
    %v5432 = vshrl.u32 %v5431, 7
    %v5433 = vsub.s32 %v5430, %v5432
    %v5434 = vrot.slane %v5412, %v5433
    %v5436 = vunpack.c.l.s4 1983009808
    %v5437 = vunpack.c.0.s8 %v5436
    %v5438 = vlaneseq
    %v5439 = vshrl.u32 %v5438, 7
    %v5440 = vsub.s32 %v5437, %v5439
    %v5441 = vrot.slane %v5413, %v5440
    %v5442 = vcombine.low %v5420, %v5434
    %v5443 = vcombine.high %v5420, %v5434
    %v5444 = vcombine.low %v5427, %v5441
    %v5445 = vcombine.high %v5427, %v5441
    %v5446 = vcombine.low %v5306, %v5308
    %v5447 = vcombine.high %v5306, %v5308
    %v5448 = vcombine.high %v5390, %v5390
    %v5450 = vunpack.c.l.s4 1983009808
    %v5451 = vunpack.c.0.s8 %v5450
    %v5452 = vlaneseq
    %v5453 = vshrl.u32 %v5452, 7
    %v5454 = vsub.s32 %v5451, %v5453
    %v5455 = vrot.slane %v5446, %v5454
    %v5457 = vunpack.c.l.s4 1983009808
    %v5458 = vunpack.c.0.s8 %v5457
    %v5459 = vlaneseq
    %v5460 = vshrl.u32 %v5459, 7
    %v5461 = vsub.s32 %v5458, %v5460
    %v5462 = vrot.slane %v5447, %v5461
    %v5464 = vunpack.c.l.s4 1983009808
    %v5465 = vunpack.c.0.s8 %v5464
    %v5466 = vlaneseq
    %v5467 = vshrl.u32 %v5466, 7
    %v5468 = vsub.s32 %v5465, %v5467
    %v5469 = vrot.slane %v5390, %v5468
    %v5471 = vunpack.c.l.s4 1983009808
    %v5472 = vunpack.c.0.s8 %v5471
    %v5473 = vlaneseq
    %v5474 = vshrl.u32 %v5473, 7
    %v5475 = vsub.s32 %v5472, %v5474
    %v5476 = vrot.slane %v5448, %v5475
    %v5477 = vcombine.low %v5455, %v5469
    %v5478 = vcombine.high %v5455, %v5469
    %v5479 = vcombine.low %v5462, %v5476
    %v5480 = vcombine.high %v5462, %v5476
    %v5481 = vcombine.low %v5138, %v5140
    %v5482 = vcombine.high %v5138, %v5140
    %v5483 = vcombine.low %v5224, %v5226
    %v5484 = vcombine.high %v5224, %v5226
    %v5486 = vunpack.c.l.s4 1983009808
    %v5487 = vunpack.c.0.s8 %v5486
    %v5488 = vlaneseq
    %v5489 = vshrl.u32 %v5488, 7
    %v5490 = vsub.s32 %v5487, %v5489
    %v5491 = vrot.slane %v5481, %v5490
    %v5493 = vunpack.c.l.s4 1983009808
    %v5494 = vunpack.c.0.s8 %v5493
    %v5495 = vlaneseq
    %v5496 = vshrl.u32 %v5495, 7
    %v5497 = vsub.s32 %v5494, %v5496
    %v5498 = vrot.slane %v5482, %v5497
    %v5500 = vunpack.c.l.s4 1983009808
    %v5501 = vunpack.c.0.s8 %v5500
    %v5502 = vlaneseq
    %v5503 = vshrl.u32 %v5502, 7
    %v5504 = vsub.s32 %v5501, %v5503
    %v5505 = vrot.slane %v5483, %v5504
    %v5507 = vunpack.c.l.s4 1983009808
    %v5508 = vunpack.c.0.s8 %v5507
    %v5509 = vlaneseq
    %v5510 = vshrl.u32 %v5509, 7
    %v5511 = vsub.s32 %v5508, %v5510
    %v5512 = vrot.slane %v5484, %v5511
    %v5513 = vcombine.low %v5491, %v5505
    %v5514 = vcombine.high %v5491, %v5505
    %v5515 = vcombine.low %v5498, %v5512
    %v5516 = vcombine.high %v5498, %v5512
    %v5517 = vcombine.low %v5310, %v5312
    %v5518 = vcombine.high %v5310, %v5312
    %v5519 = vcombine.high %v5393, %v5393
    %v5521 = vunpack.c.l.s4 1983009808
    %v5522 = vunpack.c.0.s8 %v5521
    %v5523 = vlaneseq
    %v5524 = vshrl.u32 %v5523, 7
    %v5525 = vsub.s32 %v5522, %v5524
    %v5526 = vrot.slane %v5517, %v5525
    %v5528 = vunpack.c.l.s4 1983009808
    %v5529 = vunpack.c.0.s8 %v5528
    %v5530 = vlaneseq
    %v5531 = vshrl.u32 %v5530, 7
    %v5532 = vsub.s32 %v5529, %v5531
    %v5533 = vrot.slane %v5518, %v5532
    %v5535 = vunpack.c.l.s4 1983009808
    %v5536 = vunpack.c.0.s8 %v5535
    %v5537 = vlaneseq
    %v5538 = vshrl.u32 %v5537, 7
    %v5539 = vsub.s32 %v5536, %v5538
    %v5540 = vrot.slane %v5393, %v5539
    %v5542 = vunpack.c.l.s4 1983009808
    %v5543 = vunpack.c.0.s8 %v5542
    %v5544 = vlaneseq
    %v5545 = vshrl.u32 %v5544, 7
    %v5546 = vsub.s32 %v5543, %v5545
    %v5547 = vrot.slane %v5519, %v5546
    %v5548 = vcombine.low %v5526, %v5540
    %v5549 = vcombine.high %v5526, %v5540
    %v5550 = vcombine.low %v5533, %v5547
    %v5551 = vcombine.high %v5533, %v5547
    %5568 = vst [vmem:[#allocation3] sm:$0xff] %v5442
    %vm5569 = vcmask 1041408
    %vm5570 = vcmask 1043458
    %vm5571 = vmor %vm5570, %vm5569
    %vm5572 = vcmask 128004
    %vm5573 = vmor %vm5572, %vm5571
    %5574 = vst.msk [vmem:[#allocation3 + $0x8] sm:$0x3f] %vm5573, %v5477
    %5575 = vst [vmem:[#allocation3 + $0xe] sm:$0xff] %v5443
    %5576 = vst.msk [vmem:[#allocation3 + $0x16] sm:$0x3f] %vm5573, %v5478
    %5577 = vst [vmem:[#allocation3 + $0x1c] sm:$0xff] %v5444
    %5578 = vst.msk [vmem:[#allocation3 + $0x24] sm:$0x3f] %vm5573, %v5479
    %5579 = vst [vmem:[#allocation3 + $0x2a] sm:$0xff] %v5445
    %5580 = vst.msk [vmem:[#allocation3 + $0x32] sm:$0x3f] %vm5573, %v5480
    %5581 = vst [vmem:[#allocation3 + $0x38] sm:$0xff] %v5513
    %5582 = vst.msk [vmem:[#allocation3 + $0x40] sm:$0x3f] %vm5573, %v5548
    %5583 = vst [vmem:[#allocation3 + $0x46] sm:$0xff] %v5514
    %5584 = vst.msk [vmem:[#allocation3 + $0x4e] sm:$0x3f] %vm5573, %v5549
    %5585 = vst [vmem:[#allocation3 + $0x54] sm:$0xff] %v5515
    %5586 = vst.msk [vmem:[#allocation3 + $0x5c] sm:$0x3f] %vm5573, %v5550
    %5587 = vst [vmem:[#allocation3 + $0x62] sm:$0xff] %v5516
    %5588 = vst.msk [vmem:[#allocation3 + $0x6a] sm:$0x3f] %vm5573, %v5551
    // Predicated region
    $region66: #{vae_gumbel_forward.1} parent=1 // pred_check
      _
    $region67: #{vae_gumbel_forward.1} parent=1 // pred_check_branch
      %5590 = sbr.rel (0) target = $region69
    $region68: #{vae_gumbel_forward.1} parent=1 // pred_region
      %s5592 = ssub.s32 1792, 224
      %5593 = vsyncadd [#allocation4], %s5592
      %s5594 = sshll.u32 [#allocation3], 4
      %s5595 = int_to_ptr.vmem [resolvable:$true] %s5594
      %5600 = dma.vmem_to_hbm [thread:$0]  %s5595, 224, %s16, [#allocation4], 224, 224, 14
    $region69: #{vae_gumbel_forward.1} parent=1 // pred_fallthru
      _
    // Predicated region
    $region70: #{vae_gumbel_forward.1} parent=1 // pred_check
      _
    $region71: #{vae_gumbel_forward.1} parent=1 // pred_check_branch
      %5602 = sbr.rel (0) target = $region73
    $region72: #{vae_gumbel_forward.1} parent=1 // pred_region
      %s5604 = ssub.s32 256, 32
      %5605 = vsyncadd [#allocation6], %s5604
      %s5606 = sshll.u32 [#allocation5], 4
      %s5607 = int_to_ptr.vmem [resolvable:$true] %s5606
      %5612 = dma.vmem_to_hbm [thread:$0]  %s5607, 32, %s17, [#allocation6], 32, 32, 2
    $region73: #{vae_gumbel_forward.1} parent=1 // pred_fallthru
      _
    // Predicated region
    $region74: #{vae_gumbel_forward.1} parent=1 // pred_check
      _
    $region75: #{vae_gumbel_forward.1} parent=1 // pred_check_branch
      %5614 = sbr.rel (0) target = $region77
    $region76: #{vae_gumbel_forward.1} parent=1 // pred_region
      %5615 = dma.done [#allocation4], 1792
    $region77: #{vae_gumbel_forward.1} parent=1 // pred_fallthru
      _
    // Predicated region
    $region78: #{vae_gumbel_forward.1} parent=1 // pred_check
      _
    $region79: #{vae_gumbel_forward.1} parent=1 // pred_check_branch
      %5617 = sbr.rel (0) target = $region81
    $region80: #{vae_gumbel_forward.1} parent=1 // pred_region
      %5618 = dma.done [#allocation6], 256
    $region81: #{vae_gumbel_forward.1} parent=1 // pred_fallthru
      _
    %5619 = vsyncpa [#allocation4], 1
    %5620 = vsyncpa [#allocation6], 1

</llo_original>
